<compile_context>
chip_gen: v7x
topology: tpu7x:2x2x1
jax: 0.10.0
libtpu: 0.0.40
codegen_flags: <defaults>
</compile_context>

<pallas_src>
import jax
import jax.numpy as jnp
import numpy as np
from jax.experimental import pallas as pl
from jax.experimental.pallas import tpu as pltpu

K = 9  # conv kernel size


def make_net_kernel(L, Bt):
    L1 = L - (K - 1)          # after conv1
    P1 = L1 // 4              # after maxpool1 (ceil_mode=False)
    L2 = P1 - (K - 1)         # after conv2
    P2 = L2 // 4              # after maxpool2
    L3 = P2 - (K - 1)         # after conv3
    assert L3 >= 1, "sequence too short for the conv/pool stack"
    Lh1 = L1 - 3              # sliding-max length before stride-4 decimation
    Lh2 = L2 - 3

    def kernel(x_ref, w1_ref, b1_ref, w2_ref, b2_ref, w3_ref, b3_ref,
               wf1_ref, bf1_ref, wf2_ref, bf2_ref,
               feat_ref, logit_ref, s1, s2):
        # Weights: constant index_map -> fetched once, reused every grid step.
        w1 = w1_ref[...]                      # (27, 64)    bf16 (im2col layout)
        w2 = w2_ref[...]                      # (576, 128)  bf16
        w3 = w3_ref[...]                      # (1152, 128) bf16
        b1 = b1_ref[...]                      # (1, 64)  f32
        b2 = b2_ref[...]                      # (1, 128) f32
        b3 = b3_ref[...]                      # (1, 128) f32

        for s in range(Bt):                   # static, unrolled batch-tile loop
            x = x_ref[s]                      # (L, 3) f32

            # ---- Conv1d(3 -> 64, k=9) + ReLU: one (L1,27)@(27,64) matmul ----
            lhs1 = jnp.concatenate([x[k:k + L1, :] for k in range(K)], axis=1)
            h1 = jnp.maximum(
                jnp.dot(lhs1.astype(jnp.bfloat16), w1,
                        preferred_element_type=jnp.float32) + b1, 0.0)   # (L1,64)

            # ---- MaxPool1d(4): in-register sliding max + stride-4 read ------
            hm1 = h1[0:Lh1, :]
            for j in range(1, 4):
                hm1 = jnp.maximum(hm1, h1[j:j + Lh1, :])
            s1[...] = hm1
            m1 = s1[pl.ds(0, P1, stride=4), :]                           # (P1,64)

            # ---- Conv1d(64 -> 128, k=9) + ReLU: (L2,576)@(576,128) ----------
            lhs2 = jnp.concatenate([m1[k:k + L2, :] for k in range(K)], axis=1)
            h2 = jnp.maximum(
                jnp.dot(lhs2.astype(jnp.bfloat16), w2,
                        preferred_element_type=jnp.float32) + b2, 0.0)   # (L2,128)

            # ---- MaxPool1d(4) ------------------------------------------------
            hm2 = h2[0:Lh2, :]
            for j in range(1, 4):
                hm2 = jnp.maximum(hm2, h2[j:j + Lh2, :])
            s2[...] = hm2
            m2 = s2[pl.ds(0, P2, stride=4), :]                           # (P2,128)

            # ---- Conv1d(128 -> 128, k=9) + ReLU: (L3,1152)@(1152,128) -------
            lhs3 = jnp.concatenate([m2[k:k + L3, :] for k in range(K)], axis=1)
            h3 = jnp.maximum(
                jnp.dot(lhs3.astype(jnp.bfloat16), w3,
                        preferred_element_type=jnp.float32) + b3, 0.0)   # (L3,128)

            # ---- AdaptiveMaxPool1d(1): global max over time -> feature row --
            feat_ref[pl.ds(s, 1), :] = jnp.max(h3, axis=0, keepdims=True)

        # ---- FC head, batched over the whole block (M = Bt), f32 ------------
        feats = feat_ref[...]                                            # (Bt,128)
        hf = jnp.maximum(
            jnp.dot(feats, wf1_ref[...],
                    preferred_element_type=jnp.float32) + bf1_ref[...], 0.0)
        # TODO(synk): Dropout(0.1) implemented as identity (inference semantics).
        logit_ref[...] = (jnp.dot(hf, wf2_ref[...],
                                  preferred_element_type=jnp.float32)
                          + bf2_ref[...])       # (Bt, 128); real logit in col 0

    return kernel, (Lh1, Lh2)


def net_forward(x_nchw, p, block_b=8):
    """x_nchw: (B, 3, L) float32 (PyTorch layout). Returns (features, logits)."""
    B, Cin, L = x_nchw.shape
    assert Cin == 3
    x_blc = jnp.transpose(x_nchw, (0, 2, 1))          # (B, L, 3) channels-last

    # Batch tiling: Bt samples per grid step; pad batch to a multiple of Bt.
    Bt = min(block_b, B)
    G = -(-B // Bt)
    Bpad = G * Bt
    if Bpad != B:
        x_blc = jnp.pad(x_blc, ((0, Bpad - B), (0, 0), (0, 0)))

    # Kernel-layout parameters (im2col-flattened conv weights, bf16 for MXU).
    w1k = jnp.transpose(p["w1"], (2, 1, 0)).reshape(K * 3, 64).astype(jnp.bfloat16)
    w2k = jnp.transpose(p["w2"], (2, 1, 0)).reshape(K * 64, 128).astype(jnp.bfloat16)
    w3k = jnp.transpose(p["w3"], (2, 1, 0)).reshape(K * 128, 128).astype(jnp.bfloat16)
    b1r = p["b1"].reshape(1, 64).astype(jnp.float32)
    b2r = p["b2"].reshape(1, 128).astype(jnp.float32)
    b3r = p["b3"].reshape(1, 128).astype(jnp.float32)
    wf1 = p["wfc1"].T.astype(jnp.float32)             # (128, 128)
    bf1 = p["bfc1"].reshape(1, 128).astype(jnp.float32)
    # Pad the 1-wide logit projection to 128 lanes for a lane-dense output.
    wf2p = jnp.zeros((128, 128), jnp.float32).at[:, 0].set(p["wfc2"][0])
    bf2p = jnp.zeros((1, 128), jnp.float32).at[0, 0].set(p["bfc2"][0])

    kernel, (Lh1, Lh2) = make_net_kernel(L, Bt)

    full = lambda arr: pl.BlockSpec(arr.shape, lambda g: (0,) * arr.ndim)

    # NOTE: VMEM use scales ~linearly with L (x block + two scratch slabs).
    # At L up to a few thousand this is < 2 MiB; for very large L tile the time
    # axis with a K-1 halo and set vmem_limit_bytes (matters first on v7x).
    feat_pad, logit_pad = pl.pallas_call(
        kernel,
        out_shape=(jax.ShapeDtypeStruct((Bpad, 128), jnp.float32),
                   jax.ShapeDtypeStruct((Bpad, 128), jnp.float32)),
        grid_spec=pltpu.PrefetchScalarGridSpec(
            num_scalar_prefetch=0,
            grid=(G,),
            in_specs=[
                pl.BlockSpec((Bt, L, 3), lambda g: (g, 0, 0)),   # x
                full(w1k), full(b1r),
                full(w2k), full(b2r),
                full(w3k), full(b3r),
                full(wf1), full(bf1),
                full(wf2p), full(bf2p),
            ],
            out_specs=[
                pl.BlockSpec((Bt, 128), lambda g: (g, 0)),       # features
                pl.BlockSpec((Bt, 128), lambda g: (g, 0)),       # padded logits
            ],
            scratch_shapes=[
                pltpu.VMEM((Lh1, 64), jnp.float32),
                pltpu.VMEM((Lh2, 128), jnp.float32),
            ],
        ),
        compiler_params=pltpu.CompilerParams(
            dimension_semantics=("parallel",)),
    )(x_blc, w1k, b1r, w2k, b2r, w3k, b3r, wf1, bf1, wf2p, bf2p)

    return feat_pad[:B], logit_pad[:B, :1]


def reference_forward(x, p):
    """Pure-JAX reference matching the PyTorch module (eval mode)."""
    hp = jax.lax.Precision.HIGHEST

    def conv1d(h, w, b):
        y = jax.lax.conv_general_dilated(
            h, w, window_strides=(1,), padding="VALID",
            dimension_numbers=("NCH", "OIH", "NCH"), precision=hp)
        return y + b[None, :, None]

    def maxpool(h, k):
        return jax.lax.reduce_window(h, -jnp.inf, jax.lax.max,
                                     (1, 1, k), (1, 1, k), "VALID")

    h = jax.nn.relu(conv1d(x, p["w1"], p["b1"]))
    h = maxpool(h, 4)
    h = jax.nn.relu(conv1d(h, p["w2"], p["b2"]))
    h = maxpool(h, 4)
    h = jax.nn.relu(conv1d(h, p["w3"], p["b3"]))
    feat = jnp.max(h, axis=-1)                         # AdaptiveMaxPool1d(1) + view
    hf = jax.nn.relu(jnp.dot(feat, p["wfc1"].T, precision=hp) + p["bfc1"])
    logits = jnp.dot(hf, p["wfc2"].T, precision=hp) + p["bfc2"]
    return feat, logits


def init_params(key):
    ks = jax.random.split(key, 10)

    def init(k, shape, fan_in):
        return jax.random.normal(k, shape, jnp.float32) * (2.0 / fan_in) ** 0.5

    return {
        # PyTorch Conv1d weight layout: (Cout, Cin, K); Linear: (out, in).
        "w1": init(ks[0], (64, 3, 9), 3 * 9),    "b1": init(ks[1], (64,), 3 * 9),
        "w2": init(ks[2], (128, 64, 9), 64 * 9), "b2": init(ks[3], (128,), 64 * 9),
        "w3": init(ks[4], (128, 128, 9), 128 * 9), "b3": init(ks[5], (128,), 128 * 9),
        "wfc1": init(ks[6], (128, 128), 128),    "bfc1": init(ks[7], (128,), 128),
        "wfc2": init(ks[8], (1, 128), 128),      "bfc2": init(ks[9], (1,), 128),
    }


if __name__ == "__main__":
    key = jax.random.PRNGKey(0)
    pkey, xkey = jax.random.split(key)
    params = init_params(pkey)

    B, C, L = 2, 3, 200          # small but long enough for the conv/pool stack
    x = jax.random.normal(xkey, (B, C, L), jnp.float32)

    feat, logits = net_forward(x, params)
    jax.block_until_ready((feat, logits))

    feat_ref, logits_ref = reference_forward(x, params)
    # bf16 MXU inputs in the conv path -> slightly wider tolerance than f32.
    np.testing.assert_allclose(np.asarray(feat), np.asarray(feat_ref),
                               rtol=2e-2, atol=2e-2)
    np.testing.assert_allclose(np.asarray(logits), np.asarray(logits_ref),
                               rtol=2e-2, atol=2e-2)

    assert feat.shape == (B, 128) and logits.shape == (B, 1)
    print("KERNEL_OK")
</pallas_src>

<mosaic_0001>
module attributes {stable_mosaic.version = 11 : i64} {
  func.func @kernel(%arg0: i32, %arg1: memref<2x200x3xf32, #tpu.memory_space<vmem>>, %arg2: memref<27x64xbf16, #tpu.memory_space<vmem>>, %arg3: memref<1x64xf32, #tpu.memory_space<vmem>>, %arg4: memref<576x128xbf16, #tpu.memory_space<vmem>>, %arg5: memref<1x128xf32, #tpu.memory_space<vmem>>, %arg6: memref<1152x128xbf16, #tpu.memory_space<vmem>>, %arg7: memref<1x128xf32, #tpu.memory_space<vmem>>, %arg8: memref<128x128xf32, #tpu.memory_space<vmem>>, %arg9: memref<1x128xf32, #tpu.memory_space<vmem>>, %arg10: memref<128x128xf32, #tpu.memory_space<vmem>>, %arg11: memref<1x128xf32, #tpu.memory_space<vmem>>, %arg12: memref<2x128xf32, #tpu.memory_space<vmem>>, %arg13: memref<2x128xf32, #tpu.memory_space<vmem>>, %arg14: memref<189x64xf32, #tpu.memory_space<vmem>>, %arg15: memref<37x128xf32, #tpu.memory_space<vmem>>) attributes {dimension_semantics = [#tpu.dimension_semantics<parallel>], iteration_bounds = array<i64: 1>, scalar_prefetch = 0 : i64, scratch_operands = 2 : i64, tpu.core_type = #tpu.core_type<tc>, window_params = [{transform_indices = @transform_0, window_bounds = array<i64: 2, 200, 3>}, {pipeline_mode = #tpu.pipeline_mode<synchronous>, transform_indices = @transform_1, window_bounds = array<i64: 27, 64>}, {pipeline_mode = #tpu.pipeline_mode<synchronous>, transform_indices = @transform_2, window_bounds = array<i64: 1, 64>}, {pipeline_mode = #tpu.pipeline_mode<synchronous>, transform_indices = @transform_3, window_bounds = array<i64: 576, 128>}, {pipeline_mode = #tpu.pipeline_mode<synchronous>, transform_indices = @transform_4, window_bounds = array<i64: 1, 128>}, {pipeline_mode = #tpu.pipeline_mode<synchronous>, transform_indices = @transform_5, window_bounds = array<i64: 1152, 128>}, {pipeline_mode = #tpu.pipeline_mode<synchronous>, transform_indices = @transform_6, window_bounds = array<i64: 1, 128>}, {pipeline_mode = #tpu.pipeline_mode<synchronous>, transform_indices = @transform_7, window_bounds = array<i64: 128, 128>}, {pipeline_mode = #tpu.pipeline_mode<synchronous>, transform_indices = @transform_8, window_bounds = array<i64: 1, 128>}, {pipeline_mode = #tpu.pipeline_mode<synchronous>, transform_indices = @transform_9, window_bounds = array<i64: 128, 128>}, {pipeline_mode = #tpu.pipeline_mode<synchronous>, transform_indices = @transform_10, window_bounds = array<i64: 1, 128>}, {transform_indices = @transform_11, window_bounds = array<i64: 2, 128>}, {transform_indices = @transform_12, window_bounds = array<i64: 2, 128>}]} {
    %c0 = arith.constant 0 : index
    %c0_0 = arith.constant 0 : index
    %0 = vector.load %arg2[%c0, %c0_0] : memref<27x64xbf16, #tpu.memory_space<vmem>>, vector<27x64xbf16>
    %c0_1 = arith.constant 0 : index
    %c0_2 = arith.constant 0 : index
    %1 = vector.load %arg4[%c0_1, %c0_2] : memref<576x128xbf16, #tpu.memory_space<vmem>>, vector<576x128xbf16>
    %c0_3 = arith.constant 0 : index
    %c0_4 = arith.constant 0 : index
    %2 = vector.load %arg6[%c0_3, %c0_4] : memref<1152x128xbf16, #tpu.memory_space<vmem>>, vector<1152x128xbf16>
    %c0_5 = arith.constant 0 : index
    %c0_6 = arith.constant 0 : index
    %3 = vector.load %arg3[%c0_5, %c0_6] : memref<1x64xf32, #tpu.memory_space<vmem>>, vector<1x64xf32>
    %c0_7 = arith.constant 0 : index
    %c0_8 = arith.constant 0 : index
    %4 = vector.load %arg5[%c0_7, %c0_8] : memref<1x128xf32, #tpu.memory_space<vmem>>, vector<1x128xf32>
    %c0_9 = arith.constant 0 : index
    %c0_10 = arith.constant 0 : index
    %5 = vector.load %arg7[%c0_9, %c0_10] : memref<1x128xf32, #tpu.memory_space<vmem>>, vector<1x128xf32>
    %c0_11 = arith.constant 0 : index
    %c0_12 = arith.constant 0 : index
    %c0_13 = arith.constant 0 : index
    %6 = vector.load %arg1[%c0_11, %c0_12, %c0_13] : memref<2x200x3xf32, #tpu.memory_space<vmem>>, vector<1x200x3xf32>
    %7 = vector.shape_cast %6 : vector<1x200x3xf32> to vector<200x3xf32>
    %8 = vector.extract_strided_slice %7 {offsets = [0, 0], sizes = [192, 3], strides = [1, 1]} : vector<200x3xf32> to vector<192x3xf32>
    %9 = vector.extract_strided_slice %7 {offsets = [1, 0], sizes = [192, 3], strides = [1, 1]} : vector<200x3xf32> to vector<192x3xf32>
    %10 = vector.extract_strided_slice %7 {offsets = [2, 0], sizes = [192, 3], strides = [1, 1]} : vector<200x3xf32> to vector<192x3xf32>
    %11 = vector.extract_strided_slice %7 {offsets = [3, 0], sizes = [192, 3], strides = [1, 1]} : vector<200x3xf32> to vector<192x3xf32>
    %12 = vector.extract_strided_slice %7 {offsets = [4, 0], sizes = [192, 3], strides = [1, 1]} : vector<200x3xf32> to vector<192x3xf32>
    %13 = vector.extract_strided_slice %7 {offsets = [5, 0], sizes = [192, 3], strides = [1, 1]} : vector<200x3xf32> to vector<192x3xf32>
    %14 = vector.extract_strided_slice %7 {offsets = [6, 0], sizes = [192, 3], strides = [1, 1]} : vector<200x3xf32> to vector<192x3xf32>
    %15 = vector.extract_strided_slice %7 {offsets = [7, 0], sizes = [192, 3], strides = [1, 1]} : vector<200x3xf32> to vector<192x3xf32>
    %16 = vector.extract_strided_slice %7 {offsets = [8, 0], sizes = [192, 3], strides = [1, 1]} : vector<200x3xf32> to vector<192x3xf32>
    %17 = tpu.concatenate %8, %9, %10, %11, %12, %13, %14, %15, %16 in 1 : vector<192x3xf32>, vector<192x3xf32>, vector<192x3xf32>, vector<192x3xf32>, vector<192x3xf32>, vector<192x3xf32>, vector<192x3xf32>, vector<192x3xf32>, vector<192x3xf32> -> vector<192x27xf32>
    %18 = arith.truncf %17 : vector<192x27xf32> to vector<192x27xbf16>
    %cst = arith.constant dense<0.000000e+00> : vector<192x64xf32>
    %19 = tpu.matmul %18, %0, %cst {dimension_numbers = #tpu.dot_dimension_numbers<[1], [0], [0], [1], [0, 0, 1, 1], [], []>} : vector<192x27xbf16>, vector<27x64xbf16>, vector<192x64xf32> -> vector<192x64xf32>
    %20 = vector.broadcast %3 : vector<1x64xf32> to vector<192x64xf32>
    %21 = arith.addf %19, %20 : vector<192x64xf32>
    %cst_14 = arith.constant 0.000000e+00 : f32
    %22 = vector.broadcast %cst_14 : f32 to vector<192x64xf32>
    %23 = arith.maximumf %21, %22 : vector<192x64xf32>
    %24 = vector.extract_strided_slice %23 {offsets = [0, 0], sizes = [189, 64], strides = [1, 1]} : vector<192x64xf32> to vector<189x64xf32>
    %25 = vector.extract_strided_slice %23 {offsets = [1, 0], sizes = [189, 64], strides = [1, 1]} : vector<192x64xf32> to vector<189x64xf32>
    %26 = arith.maximumf %24, %25 : vector<189x64xf32>
    %27 = vector.extract_strided_slice %23 {offsets = [2, 0], sizes = [189, 64], strides = [1, 1]} : vector<192x64xf32> to vector<189x64xf32>
    %28 = arith.maximumf %26, %27 : vector<189x64xf32>
    %29 = vector.extract_strided_slice %23 {offsets = [3, 0], sizes = [189, 64], strides = [1, 1]} : vector<192x64xf32> to vector<189x64xf32>
    %30 = arith.maximumf %28, %29 : vector<189x64xf32>
    %c0_15 = arith.constant 0 : index
    %c0_16 = arith.constant 0 : index
    %31 = vector.load %arg14[%c0_15, %c0_16] : memref<189x64xf32, #tpu.memory_space<vmem>>, vector<189x64xf32>
    tpu.vector_store %arg14[%c0_15, %c0_16], %30 {strides = array<i32>} : memref<189x64xf32, #tpu.memory_space<vmem>>, vector<189x64xf32>,
    %c0_17 = arith.constant 0 : index
    %c0_18 = arith.constant 0 : index
    %32 = tpu.strided_load %arg14[%c0_17, %c0_18] {strides = array<i32: 4, 1>} : memref<189x64xf32, #tpu.memory_space<vmem>>, vector<48x64xf32>
    %33 = vector.extract_strided_slice %32 {offsets = [0, 0], sizes = [40, 64], strides = [1, 1]} : vector<48x64xf32> to vector<40x64xf32>
    %34 = vector.extract_strided_slice %32 {offsets = [1, 0], sizes = [40, 64], strides = [1, 1]} : vector<48x64xf32> to vector<40x64xf32>
    %35 = vector.extract_strided_slice %32 {offsets = [2, 0], sizes = [40, 64], strides = [1, 1]} : vector<48x64xf32> to vector<40x64xf32>
    %36 = vector.extract_strided_slice %32 {offsets = [3, 0], sizes = [40, 64], strides = [1, 1]} : vector<48x64xf32> to vector<40x64xf32>
    %37 = vector.extract_strided_slice %32 {offsets = [4, 0], sizes = [40, 64], strides = [1, 1]} : vector<48x64xf32> to vector<40x64xf32>
    %38 = vector.extract_strided_slice %32 {offsets = [5, 0], sizes = [40, 64], strides = [1, 1]} : vector<48x64xf32> to vector<40x64xf32>
    %39 = vector.extract_strided_slice %32 {offsets = [6, 0], sizes = [40, 64], strides = [1, 1]} : vector<48x64xf32> to vector<40x64xf32>
    %40 = vector.extract_strided_slice %32 {offsets = [7, 0], sizes = [40, 64], strides = [1, 1]} : vector<48x64xf32> to vector<40x64xf32>
    %41 = vector.extract_strided_slice %32 {offsets = [8, 0], sizes = [40, 64], strides = [1, 1]} : vector<48x64xf32> to vector<40x64xf32>
    %42 = tpu.concatenate %33, %34, %35, %36, %37, %38, %39, %40, %41 in 1 : vector<40x64xf32>, vector<40x64xf32>, vector<40x64xf32>, vector<40x64xf32>, vector<40x64xf32>, vector<40x64xf32>, vector<40x64xf32>, vector<40x64xf32>, vector<40x64xf32> -> vector<40x576xf32>
    %43 = arith.truncf %42 : vector<40x576xf32> to vector<40x576xbf16>
    %cst_19 = arith.constant dense<0.000000e+00> : vector<40x128xf32>
    %44 = tpu.matmul %43, %1, %cst_19 {dimension_numbers = #tpu.dot_dimension_numbers<[1], [0], [0], [1], [0, 0, 1, 1], [], []>} : vector<40x576xbf16>, vector<576x128xbf16>, vector<40x128xf32> -> vector<40x128xf32>
    %45 = vector.broadcast %4 : vector<1x128xf32> to vector<40x128xf32>
    %46 = arith.addf %44, %45 : vector<40x128xf32>
    %cst_20 = arith.constant 0.000000e+00 : f32
    %47 = vector.broadcast %cst_20 : f32 to vector<40x128xf32>
    %48 = arith.maximumf %46, %47 : vector<40x128xf32>
    %49 = vector.extract_strided_slice %48 {offsets = [0, 0], sizes = [37, 128], strides = [1, 1]} : vector<40x128xf32> to vector<37x128xf32>
    %50 = vector.extract_strided_slice %48 {offsets = [1, 0], sizes = [37, 128], strides = [1, 1]} : vector<40x128xf32> to vector<37x128xf32>
    %51 = arith.maximumf %49, %50 : vector<37x128xf32>
    %52 = vector.extract_strided_slice %48 {offsets = [2, 0], sizes = [37, 128], strides = [1, 1]} : vector<40x128xf32> to vector<37x128xf32>
    %53 = arith.maximumf %51, %52 : vector<37x128xf32>
    %54 = vector.extract_strided_slice %48 {offsets = [3, 0], sizes = [37, 128], strides = [1, 1]} : vector<40x128xf32> to vector<37x128xf32>
    %55 = arith.maximumf %53, %54 : vector<37x128xf32>
    %c0_21 = arith.constant 0 : index
    %c0_22 = arith.constant 0 : index
    %56 = vector.load %arg15[%c0_21, %c0_22] : memref<37x128xf32, #tpu.memory_space<vmem>>, vector<37x128xf32>
    tpu.vector_store %arg15[%c0_21, %c0_22], %55 {strides = array<i32>} : memref<37x128xf32, #tpu.memory_space<vmem>>, vector<37x128xf32>,
    %c0_23 = arith.constant 0 : index
    %c0_24 = arith.constant 0 : index
    %57 = tpu.strided_load %arg15[%c0_23, %c0_24] {strides = array<i32: 4, 1>} : memref<37x128xf32, #tpu.memory_space<vmem>>, vector<10x128xf32>
    %58 = vector.extract_strided_slice %57 {offsets = [0, 0], sizes = [2, 128], strides = [1, 1]} : vector<10x128xf32> to vector<2x128xf32>
    %59 = vector.extract_strided_slice %57 {offsets = [1, 0], sizes = [2, 128], strides = [1, 1]} : vector<10x128xf32> to vector<2x128xf32>
    %60 = vector.extract_strided_slice %57 {offsets = [2, 0], sizes = [2, 128], strides = [1, 1]} : vector<10x128xf32> to vector<2x128xf32>
    %61 = vector.extract_strided_slice %57 {offsets = [3, 0], sizes = [2, 128], strides = [1, 1]} : vector<10x128xf32> to vector<2x128xf32>
    %62 = vector.extract_strided_slice %57 {offsets = [4, 0], sizes = [2, 128], strides = [1, 1]} : vector<10x128xf32> to vector<2x128xf32>
    %63 = vector.extract_strided_slice %57 {offsets = [5, 0], sizes = [2, 128], strides = [1, 1]} : vector<10x128xf32> to vector<2x128xf32>
    %64 = vector.extract_strided_slice %57 {offsets = [6, 0], sizes = [2, 128], strides = [1, 1]} : vector<10x128xf32> to vector<2x128xf32>
    %65 = vector.extract_strided_slice %57 {offsets = [7, 0], sizes = [2, 128], strides = [1, 1]} : vector<10x128xf32> to vector<2x128xf32>
    %66 = vector.extract_strided_slice %57 {offsets = [8, 0], sizes = [2, 128], strides = [1, 1]} : vector<10x128xf32> to vector<2x128xf32>
    %67 = tpu.concatenate %58, %59, %60, %61, %62, %63, %64, %65, %66 in 1 : vector<2x128xf32>, vector<2x128xf32>, vector<2x128xf32>, vector<2x128xf32>, vector<2x128xf32>, vector<2x128xf32>, vector<2x128xf32>, vector<2x128xf32>, vector<2x128xf32> -> vector<2x1152xf32>
    %68 = arith.truncf %67 : vector<2x1152xf32> to vector<2x1152xbf16>
    %cst_25 = arith.constant dense<0.000000e+00> : vector<2x128xf32>
    %69 = tpu.matmul %68, %2, %cst_25 {dimension_numbers = #tpu.dot_dimension_numbers<[1], [0], [0], [1], [0, 0, 1, 1], [], []>} : vector<2x1152xbf16>, vector<1152x128xbf16>, vector<2x128xf32> -> vector<2x128xf32>
    %70 = vector.broadcast %5 : vector<1x128xf32> to vector<2x128xf32>
    %71 = arith.addf %69, %70 : vector<2x128xf32>
    %cst_26 = arith.constant 0.000000e+00 : f32
    %72 = vector.broadcast %cst_26 : f32 to vector<2x128xf32>
    %73 = arith.maximumf %71, %72 : vector<2x128xf32>
    %cst_27 = arith.constant dense<0xFF800000> : vector<128xf32>
    %74 = vector.multi_reduction <maximumf>, %73, %cst_27 [0] : vector<2x128xf32> to vector<128xf32>
    %75 = vector.shape_cast %74 : vector<128xf32> to vector<1x128xf32>
    %c0_28 = arith.constant 0 : index
    %c0_29 = arith.constant 0 : index
    %76 = vector.load %arg12[%c0_28, %c0_29] : memref<2x128xf32, #tpu.memory_space<vmem>>, vector<1x128xf32>
    tpu.vector_store %arg12[%c0_28, %c0_29], %75 {strides = array<i32>} : memref<2x128xf32, #tpu.memory_space<vmem>>, vector<1x128xf32>,
    %c1 = arith.constant 1 : index
    %c0_30 = arith.constant 0 : index
    %c0_31 = arith.constant 0 : index
    %77 = vector.load %arg1[%c1, %c0_30, %c0_31] : memref<2x200x3xf32, #tpu.memory_space<vmem>>, vector<1x200x3xf32>
    %78 = vector.shape_cast %77 : vector<1x200x3xf32> to vector<200x3xf32>
    %79 = vector.extract_strided_slice %78 {offsets = [0, 0], sizes = [192, 3], strides = [1, 1]} : vector<200x3xf32> to vector<192x3xf32>
    %80 = vector.extract_strided_slice %78 {offsets = [1, 0], sizes = [192, 3], strides = [1, 1]} : vector<200x3xf32> to vector<192x3xf32>
    %81 = vector.extract_strided_slice %78 {offsets = [2, 0], sizes = [192, 3], strides = [1, 1]} : vector<200x3xf32> to vector<192x3xf32>
    %82 = vector.extract_strided_slice %78 {offsets = [3, 0], sizes = [192, 3], strides = [1, 1]} : vector<200x3xf32> to vector<192x3xf32>
    %83 = vector.extract_strided_slice %78 {offsets = [4, 0], sizes = [192, 3], strides = [1, 1]} : vector<200x3xf32> to vector<192x3xf32>
    %84 = vector.extract_strided_slice %78 {offsets = [5, 0], sizes = [192, 3], strides = [1, 1]} : vector<200x3xf32> to vector<192x3xf32>
    %85 = vector.extract_strided_slice %78 {offsets = [6, 0], sizes = [192, 3], strides = [1, 1]} : vector<200x3xf32> to vector<192x3xf32>
    %86 = vector.extract_strided_slice %78 {offsets = [7, 0], sizes = [192, 3], strides = [1, 1]} : vector<200x3xf32> to vector<192x3xf32>
    %87 = vector.extract_strided_slice %78 {offsets = [8, 0], sizes = [192, 3], strides = [1, 1]} : vector<200x3xf32> to vector<192x3xf32>
    %88 = tpu.concatenate %79, %80, %81, %82, %83, %84, %85, %86, %87 in 1 : vector<192x3xf32>, vector<192x3xf32>, vector<192x3xf32>, vector<192x3xf32>, vector<192x3xf32>, vector<192x3xf32>, vector<192x3xf32>, vector<192x3xf32>, vector<192x3xf32> -> vector<192x27xf32>
    %89 = arith.truncf %88 : vector<192x27xf32> to vector<192x27xbf16>
    %cst_32 = arith.constant dense<0.000000e+00> : vector<192x64xf32>
    %90 = tpu.matmul %89, %0, %cst_32 {dimension_numbers = #tpu.dot_dimension_numbers<[1], [0], [0], [1], [0, 0, 1, 1], [], []>} : vector<192x27xbf16>, vector<27x64xbf16>, vector<192x64xf32> -> vector<192x64xf32>
    %91 = vector.broadcast %3 : vector<1x64xf32> to vector<192x64xf32>
    %92 = arith.addf %90, %91 : vector<192x64xf32>
    %cst_33 = arith.constant 0.000000e+00 : f32
    %93 = vector.broadcast %cst_33 : f32 to vector<192x64xf32>
    %94 = arith.maximumf %92, %93 : vector<192x64xf32>
    %95 = vector.extract_strided_slice %94 {offsets = [0, 0], sizes = [189, 64], strides = [1, 1]} : vector<192x64xf32> to vector<189x64xf32>
    %96 = vector.extract_strided_slice %94 {offsets = [1, 0], sizes = [189, 64], strides = [1, 1]} : vector<192x64xf32> to vector<189x64xf32>
    %97 = arith.maximumf %95, %96 : vector<189x64xf32>
    %98 = vector.extract_strided_slice %94 {offsets = [2, 0], sizes = [189, 64], strides = [1, 1]} : vector<192x64xf32> to vector<189x64xf32>
    %99 = arith.maximumf %97, %98 : vector<189x64xf32>
    %100 = vector.extract_strided_slice %94 {offsets = [3, 0], sizes = [189, 64], strides = [1, 1]} : vector<192x64xf32> to vector<189x64xf32>
    %101 = arith.maximumf %99, %100 : vector<189x64xf32>
    %c0_34 = arith.constant 0 : index
    %c0_35 = arith.constant 0 : index
    %102 = vector.load %arg14[%c0_34, %c0_35] : memref<189x64xf32, #tpu.memory_space<vmem>>, vector<189x64xf32>
    tpu.vector_store %arg14[%c0_34, %c0_35], %101 {strides = array<i32>} : memref<189x64xf32, #tpu.memory_space<vmem>>, vector<189x64xf32>,
    %c0_36 = arith.constant 0 : index
    %c0_37 = arith.constant 0 : index
    %103 = tpu.strided_load %arg14[%c0_36, %c0_37] {strides = array<i32: 4, 1>} : memref<189x64xf32, #tpu.memory_space<vmem>>, vector<48x64xf32>
    %104 = vector.extract_strided_slice %103 {offsets = [0, 0], sizes = [40, 64], strides = [1, 1]} : vector<48x64xf32> to vector<40x64xf32>
    %105 = vector.extract_strided_slice %103 {offsets = [1, 0], sizes = [40, 64], strides = [1, 1]} : vector<48x64xf32> to vector<40x64xf32>
    %106 = vector.extract_strided_slice %103 {offsets = [2, 0], sizes = [40, 64], strides = [1, 1]} : vector<48x64xf32> to vector<40x64xf32>
    %107 = vector.extract_strided_slice %103 {offsets = [3, 0], sizes = [40, 64], strides = [1, 1]} : vector<48x64xf32> to vector<40x64xf32>
    %108 = vector.extract_strided_slice %103 {offsets = [4, 0], sizes = [40, 64], strides = [1, 1]} : vector<48x64xf32> to vector<40x64xf32>
    %109 = vector.extract_strided_slice %103 {offsets = [5, 0], sizes = [40, 64], strides = [1, 1]} : vector<48x64xf32> to vector<40x64xf32>
    %110 = vector.extract_strided_slice %103 {offsets = [6, 0], sizes = [40, 64], strides = [1, 1]} : vector<48x64xf32> to vector<40x64xf32>
    %111 = vector.extract_strided_slice %103 {offsets = [7, 0], sizes = [40, 64], strides = [1, 1]} : vector<48x64xf32> to vector<40x64xf32>
    %112 = vector.extract_strided_slice %103 {offsets = [8, 0], sizes = [40, 64], strides = [1, 1]} : vector<48x64xf32> to vector<40x64xf32>
    %113 = tpu.concatenate %104, %105, %106, %107, %108, %109, %110, %111, %112 in 1 : vector<40x64xf32>, vector<40x64xf32>, vector<40x64xf32>, vector<40x64xf32>, vector<40x64xf32>, vector<40x64xf32>, vector<40x64xf32>, vector<40x64xf32>, vector<40x64xf32> -> vector<40x576xf32>
    %114 = arith.truncf %113 : vector<40x576xf32> to vector<40x576xbf16>
    %cst_38 = arith.constant dense<0.000000e+00> : vector<40x128xf32>
    %115 = tpu.matmul %114, %1, %cst_38 {dimension_numbers = #tpu.dot_dimension_numbers<[1], [0], [0], [1], [0, 0, 1, 1], [], []>} : vector<40x576xbf16>, vector<576x128xbf16>, vector<40x128xf32> -> vector<40x128xf32>
    %116 = vector.broadcast %4 : vector<1x128xf32> to vector<40x128xf32>
    %117 = arith.addf %115, %116 : vector<40x128xf32>
    %cst_39 = arith.constant 0.000000e+00 : f32
    %118 = vector.broadcast %cst_39 : f32 to vector<40x128xf32>
    %119 = arith.maximumf %117, %118 : vector<40x128xf32>
    %120 = vector.extract_strided_slice %119 {offsets = [0, 0], sizes = [37, 128], strides = [1, 1]} : vector<40x128xf32> to vector<37x128xf32>
    %121 = vector.extract_strided_slice %119 {offsets = [1, 0], sizes = [37, 128], strides = [1, 1]} : vector<40x128xf32> to vector<37x128xf32>
    %122 = arith.maximumf %120, %121 : vector<37x128xf32>
    %123 = vector.extract_strided_slice %119 {offsets = [2, 0], sizes = [37, 128], strides = [1, 1]} : vector<40x128xf32> to vector<37x128xf32>
    %124 = arith.maximumf %122, %123 : vector<37x128xf32>
    %125 = vector.extract_strided_slice %119 {offsets = [3, 0], sizes = [37, 128], strides = [1, 1]} : vector<40x128xf32> to vector<37x128xf32>
    %126 = arith.maximumf %124, %125 : vector<37x128xf32>
    %c0_40 = arith.constant 0 : index
    %c0_41 = arith.constant 0 : index
    %127 = vector.load %arg15[%c0_40, %c0_41] : memref<37x128xf32, #tpu.memory_space<vmem>>, vector<37x128xf32>
    tpu.vector_store %arg15[%c0_40, %c0_41], %126 {strides = array<i32>} : memref<37x128xf32, #tpu.memory_space<vmem>>, vector<37x128xf32>,
    %c0_42 = arith.constant 0 : index
    %c0_43 = arith.constant 0 : index
    %128 = tpu.strided_load %arg15[%c0_42, %c0_43] {strides = array<i32: 4, 1>} : memref<37x128xf32, #tpu.memory_space<vmem>>, vector<10x128xf32>
    %129 = vector.extract_strided_slice %128 {offsets = [0, 0], sizes = [2, 128], strides = [1, 1]} : vector<10x128xf32> to vector<2x128xf32>
    %130 = vector.extract_strided_slice %128 {offsets = [1, 0], sizes = [2, 128], strides = [1, 1]} : vector<10x128xf32> to vector<2x128xf32>
    %131 = vector.extract_strided_slice %128 {offsets = [2, 0], sizes = [2, 128], strides = [1, 1]} : vector<10x128xf32> to vector<2x128xf32>
    %132 = vector.extract_strided_slice %128 {offsets = [3, 0], sizes = [2, 128], strides = [1, 1]} : vector<10x128xf32> to vector<2x128xf32>
    %133 = vector.extract_strided_slice %128 {offsets = [4, 0], sizes = [2, 128], strides = [1, 1]} : vector<10x128xf32> to vector<2x128xf32>
    %134 = vector.extract_strided_slice %128 {offsets = [5, 0], sizes = [2, 128], strides = [1, 1]} : vector<10x128xf32> to vector<2x128xf32>
    %135 = vector.extract_strided_slice %128 {offsets = [6, 0], sizes = [2, 128], strides = [1, 1]} : vector<10x128xf32> to vector<2x128xf32>
    %136 = vector.extract_strided_slice %128 {offsets = [7, 0], sizes = [2, 128], strides = [1, 1]} : vector<10x128xf32> to vector<2x128xf32>
    %137 = vector.extract_strided_slice %128 {offsets = [8, 0], sizes = [2, 128], strides = [1, 1]} : vector<10x128xf32> to vector<2x128xf32>
    %138 = tpu.concatenate %129, %130, %131, %132, %133, %134, %135, %136, %137 in 1 : vector<2x128xf32>, vector<2x128xf32>, vector<2x128xf32>, vector<2x128xf32>, vector<2x128xf32>, vector<2x128xf32>, vector<2x128xf32>, vector<2x128xf32>, vector<2x128xf32> -> vector<2x1152xf32>
    %139 = arith.truncf %138 : vector<2x1152xf32> to vector<2x1152xbf16>
    %cst_44 = arith.constant dense<0.000000e+00> : vector<2x128xf32>
    %140 = tpu.matmul %139, %2, %cst_44 {dimension_numbers = #tpu.dot_dimension_numbers<[1], [0], [0], [1], [0, 0, 1, 1], [], []>} : vector<2x1152xbf16>, vector<1152x128xbf16>, vector<2x128xf32> -> vector<2x128xf32>
    %141 = vector.broadcast %5 : vector<1x128xf32> to vector<2x128xf32>
    %142 = arith.addf %140, %141 : vector<2x128xf32>
    %cst_45 = arith.constant 0.000000e+00 : f32
    %143 = vector.broadcast %cst_45 : f32 to vector<2x128xf32>
    %144 = arith.maximumf %142, %143 : vector<2x128xf32>
    %cst_46 = arith.constant dense<0xFF800000> : vector<128xf32>
    %145 = vector.multi_reduction <maximumf>, %144, %cst_46 [0] : vector<2x128xf32> to vector<128xf32>
    %146 = vector.shape_cast %145 : vector<128xf32> to vector<1x128xf32>
    %c1_47 = arith.constant 1 : index
    %c0_48 = arith.constant 0 : index
    %147 = vector.load %arg12[%c1_47, %c0_48] : memref<2x128xf32, #tpu.memory_space<vmem>>, vector<1x128xf32>
    tpu.vector_store %arg12[%c1_47, %c0_48], %146 {strides = array<i32>} : memref<2x128xf32, #tpu.memory_space<vmem>>, vector<1x128xf32>,
    %c0_49 = arith.constant 0 : index
    %c0_50 = arith.constant 0 : index
    %148 = vector.load %arg12[%c0_49, %c0_50] : memref<2x128xf32, #tpu.memory_space<vmem>>, vector<2x128xf32>
    %c0_51 = arith.constant 0 : index
    %c0_52 = arith.constant 0 : index
    %149 = vector.load %arg8[%c0_51, %c0_52] : memref<128x128xf32, #tpu.memory_space<vmem>>, vector<128x128xf32>
    %cst_53 = arith.constant dense<0.000000e+00> : vector<2x128xf32>
    %150 = tpu.matmul %148, %149, %cst_53 {dimension_numbers = #tpu.dot_dimension_numbers<[1], [0], [0], [1], [0, 0, 1, 1], [], []>} : vector<2x128xf32>, vector<128x128xf32>, vector<2x128xf32> -> vector<2x128xf32>
    %c0_54 = arith.constant 0 : index
    %c0_55 = arith.constant 0 : index
    %151 = vector.load %arg9[%c0_54, %c0_55] : memref<1x128xf32, #tpu.memory_space<vmem>>, vector<1x128xf32>
    %152 = vector.broadcast %151 : vector<1x128xf32> to vector<2x128xf32>
    %153 = arith.addf %150, %152 : vector<2x128xf32>
    %cst_56 = arith.constant 0.000000e+00 : f32
    %154 = vector.broadcast %cst_56 : f32 to vector<2x128xf32>
    %155 = arith.maximumf %153, %154 : vector<2x128xf32>
    %c0_57 = arith.constant 0 : index
    %c0_58 = arith.constant 0 : index
    %156 = vector.load %arg10[%c0_57, %c0_58] : memref<128x128xf32, #tpu.memory_space<vmem>>, vector<128x128xf32>
    %cst_59 = arith.constant dense<0.000000e+00> : vector<2x128xf32>
    %157 = tpu.matmul %155, %156, %cst_59 {dimension_numbers = #tpu.dot_dimension_numbers<[1], [0], [0], [1], [0, 0, 1, 1], [], []>} : vector<2x128xf32>, vector<128x128xf32>, vector<2x128xf32> -> vector<2x128xf32>
    %c0_60 = arith.constant 0 : index
    %c0_61 = arith.constant 0 : index
    %158 = vector.load %arg11[%c0_60, %c0_61] : memref<1x128xf32, #tpu.memory_space<vmem>>, vector<1x128xf32>
    %159 = vector.broadcast %158 : vector<1x128xf32> to vector<2x128xf32>
    %160 = arith.addf %157, %159 : vector<2x128xf32>
    %c0_62 = arith.constant 0 : index
    %c0_63 = arith.constant 0 : index
    %161 = vector.load %arg13[%c0_62, %c0_63] : memref<2x128xf32, #tpu.memory_space<vmem>>, vector<2x128xf32>
    tpu.vector_store %arg13[%c0_62, %c0_63], %160 {strides = array<i32>} : memref<2x128xf32, #tpu.memory_space<vmem>>, vector<2x128xf32>,
    return
  }
  func.func @transform_0(%arg0: i32) -> (i32, i32, i32) {
    %c0_i32 = arith.constant 0 : i32
    %c0_i32_0 = arith.constant 0 : i32
    %c0_i32_1 = arith.constant 0 : i32
    return %arg0, %c0_i32, %c0_i32_0 : i32, i32, i32
  }
  func.func @transform_1(%arg0: i32) -> (i32, i32) {
    %c0_i32 = arith.constant 0 : i32
    %c0_i32_0 = arith.constant 0 : i32
    %c0_i32_1 = arith.constant 0 : i32
    return %c0_i32, %c0_i32_0 : i32, i32
  }
  func.func @transform_2(%arg0: i32) -> (i32, i32) {
    %c0_i32 = arith.constant 0 : i32
    %c0_i32_0 = arith.constant 0 : i32
    %c0_i32_1 = arith.constant 0 : i32
    return %c0_i32, %c0_i32_0 : i32, i32
  }
  func.func @transform_3(%arg0: i32) -> (i32, i32) {
    %c0_i32 = arith.constant 0 : i32
    %c0_i32_0 = arith.constant 0 : i32
    %c0_i32_1 = arith.constant 0 : i32
    return %c0_i32, %c0_i32_0 : i32, i32
  }
  func.func @transform_4(%arg0: i32) -> (i32, i32) {
    %c0_i32 = arith.constant 0 : i32
    %c0_i32_0 = arith.constant 0 : i32
    %c0_i32_1 = arith.constant 0 : i32
    return %c0_i32, %c0_i32_0 : i32, i32
  }
  func.func @transform_5(%arg0: i32) -> (i32, i32) {
    %c0_i32 = arith.constant 0 : i32
    %c0_i32_0 = arith.constant 0 : i32
    %c0_i32_1 = arith.constant 0 : i32
    return %c0_i32, %c0_i32_0 : i32, i32
  }
  func.func @transform_6(%arg0: i32) -> (i32, i32) {
    %c0_i32 = arith.constant 0 : i32
    %c0_i32_0 = arith.constant 0 : i32
    %c0_i32_1 = arith.constant 0 : i32
    return %c0_i32, %c0_i32_0 : i32, i32
  }
  func.func @transform_7(%arg0: i32) -> (i32, i32) {
    %c0_i32 = arith.constant 0 : i32
    %c0_i32_0 = arith.constant 0 : i32
    %c0_i32_1 = arith.constant 0 : i32
    return %c0_i32, %c0_i32_0 : i32, i32
  }
  func.func @transform_8(%arg0: i32) -> (i32, i32) {
    %c0_i32 = arith.constant 0 : i32
    %c0_i32_0 = arith.constant 0 : i32
    %c0_i32_1 = arith.constant 0 : i32
    return %c0_i32, %c0_i32_0 : i32, i32
  }
  func.func @transform_9(%arg0: i32) -> (i32, i32) {
    %c0_i32 = arith.constant 0 : i32
    %c0_i32_0 = arith.constant 0 : i32
    %c0_i32_1 = arith.constant 0 : i32
    return %c0_i32, %c0_i32_0 : i32, i32
  }
  func.func @transform_10(%arg0: i32) -> (i32, i32) {
    %c0_i32 = arith.constant 0 : i32
    %c0_i32_0 = arith.constant 0 : i32
    %c0_i32_1 = arith.constant 0 : i32
    return %c0_i32, %c0_i32_0 : i32, i32
  }
  func.func @transform_11(%arg0: i32) -> (i32, i32) {
    %c0_i32 = arith.constant 0 : i32
    %c0_i32_0 = arith.constant 0 : i32
    return %arg0, %c0_i32 : i32, i32
  }
  func.func @transform_12(%arg0: i32) -> (i32, i32) {
    %c0_i32 = arith.constant 0 : i32
    %c0_i32_0 = arith.constant 0 : i32
    return %arg0, %c0_i32 : i32, i32
  }
}

</mosaic_0001>

<llo_original>
// kernel: tpu_custom_call.1
$region0: #{tpu_custom_call.1}
  #allocation0 [shape = 'u32[]', space=smem, size = 0x4, offset = 0x4, fixed_abs, tag = 'smem constant byte address 0x4 - core index']
  #allocation1 [shape = 'u32[144,128]{1,0:T(1,128)}', space=vmem, size = 0x12000, scoped, tag = 'internal scratch']
  #allocation2 [shape = 'f32[189,64]{1,0:T(8,128)}', space=vmem, size = 0x18000, scoped, tag = 'scratch operand']
  #allocation3 [shape = 'f32[37,128]{1,0:T(8,128)}', space=vmem, size = 0x5000, scoped, tag = 'scratch operand']
  %s0 = inlined_call_operand.vmem [shape: f32[2,200,3], index: 0, kind: input, shape index: {}]
  %s1 = inlined_call_operand.hbm [shape: bf16[27,64], index: 1, kind: input, shape index: {}]
  %s2 = inlined_call_operand.vmem [shape: f32[1,64], index: 2, kind: input, shape index: {}]
  %s3 = inlined_call_operand.vmem [shape: bf16[576,128], index: 3, kind: input, shape index: {}]
  %s4 = inlined_call_operand.vmem [shape: f32[1,128], index: 4, kind: input, shape index: {}]
  %s5 = inlined_call_operand.hbm [shape: bf16[1152,128], index: 5, kind: input, shape index: {}]
  %s6 = inlined_call_operand.vmem [shape: f32[1,128], index: 6, kind: input, shape index: {}]
  %s7 = inlined_call_operand.vmem [shape: f32[128,128], index: 7, kind: input, shape index: {}]
  %s8 = inlined_call_operand.vmem [shape: f32[1,128], index: 8, kind: input, shape index: {}]
  %s9 = inlined_call_operand.hbm [shape: f32[128,128], index: 9, kind: input, shape index: {}]
  %s10 = inlined_call_operand.vmem [shape: f32[1,128], index: 10, kind: input, shape index: {}]
  %s11 = inlined_call_operand.hbm [shape: f32[2,128], index: 11, kind: output, shape index: {0}]
  %s12 = inlined_call_operand.hbm [shape: f32[2,128], index: 12, kind: output, shape index: {1}]
  %13 = xla_tuple %s11, %s12
  %s14 = sld [smem:[#allocation0]]
  $region74: #{tpu_custom_call.1} parent=0
    _
  %s16 = ssub.s32 1, %s14
  %s17 = scalar_select 0, %s16, %s14
  $region1: #{tpu_custom_call.1} parent=0
    #allocation4 [shape = 'u8[8192]{0}', space=vmem, size = 0x2000, scoped, tag = 'input window, operand 1, single buffered']
    #allocation5 [shape = 's32[1]{0}', space=sflag, size = 0x4, scoped, tag = 'scoped memory for tpu_custom_call.1']
    #allocation6 [shape = 's32[1]{0}', space=sflag, size = 0x4, scoped, tag = 'scoped memory for tpu_custom_call.1']
    #allocation7 [shape = 'u8[294912]{0}', space=vmem, size = 0x48000, scoped, tag = 'input window, operand 5, single buffered']
    #allocation8 [shape = 's32[1]{0}', space=sflag, size = 0x4, scoped, tag = 'scoped memory for tpu_custom_call.1']
    #allocation9 [shape = 'u8[65536]{0}', space=vmem, size = 0x10000, scoped, tag = 'input window, operand 9, single buffered']
    #allocation10 [shape = 'u8[1024]{0}', space=vmem, size = 0x400, scoped, tag = 'output window, operand 0, single buffered']
    #allocation11 [shape = 'u8[1024]{0}', space=vmem, size = 0x400, scoped, tag = 'output window, operand 1, single buffered']
    #allocation12 [shape = 's32[1]{0}', space=sflag, size = 0x4, scoped, tag = 'scoped memory for tpu_custom_call.1']
    %18 = vsyncpa [#allocation5], 0
    %19 = vsyncpa [#allocation8], 0
    %20 = vsyncpa [#allocation6], 0
    %21 = vsyncpa [#allocation12], 0
    // Predicated region
    $region2: #{tpu_custom_call.1} parent=1 // pred_check
      _
    $region3: #{tpu_custom_call.1} parent=1 // pred_check_branch
      %23 = sbr.rel (0) target = $region5
    $region4: #{tpu_custom_call.1} parent=1 // pred_region
      _
    $region5: #{tpu_custom_call.1} parent=1 // pred_fallthru
      _
    // Predicated region
    $region6: #{tpu_custom_call.1} parent=1 // pred_check
      _
    $region7: #{tpu_custom_call.1} parent=1 // pred_check_branch
      %25 = sbr.rel (0) target = $region9
    $region8: #{tpu_custom_call.1} parent=1 // pred_region
      %s27 = ssub.s32 256, 256
      %28 = vsyncadd [#allocation5], %s27
      %s29 = sshll.u32 [#allocation4], 4
      %s30 = int_to_ptr.vmem [resolvable:$true] %s29
      %35 = dma.hbm_to_vmem [thread:$0]  %s1, 256, %s30, [#allocation5], 64, 64, 4
    $region9: #{tpu_custom_call.1} parent=1 // pred_fallthru
      _
    // Predicated region
    $region10: #{tpu_custom_call.1} parent=1 // pred_check
      _
    $region11: #{tpu_custom_call.1} parent=1 // pred_check_branch
      %37 = sbr.rel (0) target = $region13
    $region12: #{tpu_custom_call.1} parent=1 // pred_region
      _
    $region13: #{tpu_custom_call.1} parent=1 // pred_fallthru
      _
    // Predicated region
    $region14: #{tpu_custom_call.1} parent=1 // pred_check
      _
    $region15: #{tpu_custom_call.1} parent=1 // pred_check_branch
      %39 = sbr.rel (0) target = $region17
    $region16: #{tpu_custom_call.1} parent=1 // pred_region
      _
    $region17: #{tpu_custom_call.1} parent=1 // pred_fallthru
      _
    // Predicated region
    $region18: #{tpu_custom_call.1} parent=1 // pred_check
      _
    $region19: #{tpu_custom_call.1} parent=1 // pred_check_branch
      %41 = sbr.rel (0) target = $region21
    $region20: #{tpu_custom_call.1} parent=1 // pred_region
      _
    $region21: #{tpu_custom_call.1} parent=1 // pred_fallthru
      _
    // Predicated region
    $region22: #{tpu_custom_call.1} parent=1 // pred_check
      _
    $region23: #{tpu_custom_call.1} parent=1 // pred_check_branch
      %43 = sbr.rel (0) target = $region25
    $region24: #{tpu_custom_call.1} parent=1 // pred_region
      %s45 = ssub.s32 9216, 9216
      %46 = vsyncadd [#allocation8], %s45
      %s47 = sshll.u32 [#allocation7], 4
      %s48 = int_to_ptr.vmem [resolvable:$true] %s47
      %53 = dma.hbm_to_vmem [thread:$0]  %s5, 9216, %s48, [#allocation8], 64, 64, 4
    $region25: #{tpu_custom_call.1} parent=1 // pred_fallthru
      _
    // Predicated region
    $region26: #{tpu_custom_call.1} parent=1 // pred_check
      _
    $region27: #{tpu_custom_call.1} parent=1 // pred_check_branch
      %55 = sbr.rel (0) target = $region29
    $region28: #{tpu_custom_call.1} parent=1 // pred_region
      _
    $region29: #{tpu_custom_call.1} parent=1 // pred_fallthru
      _
    // Predicated region
    $region30: #{tpu_custom_call.1} parent=1 // pred_check
      _
    $region31: #{tpu_custom_call.1} parent=1 // pred_check_branch
      %57 = sbr.rel (0) target = $region33
    $region32: #{tpu_custom_call.1} parent=1 // pred_region
      _
    $region33: #{tpu_custom_call.1} parent=1 // pred_fallthru
      _
    // Predicated region
    $region34: #{tpu_custom_call.1} parent=1 // pred_check
      _
    $region35: #{tpu_custom_call.1} parent=1 // pred_check_branch
      %59 = sbr.rel (0) target = $region37
    $region36: #{tpu_custom_call.1} parent=1 // pred_region
      _
    $region37: #{tpu_custom_call.1} parent=1 // pred_fallthru
      _
    // Predicated region
    $region38: #{tpu_custom_call.1} parent=1 // pred_check
      _
    $region39: #{tpu_custom_call.1} parent=1 // pred_check_branch
      %61 = sbr.rel (0) target = $region41
    $region40: #{tpu_custom_call.1} parent=1 // pred_region
      %s63 = ssub.s32 2048, 2048
      %64 = vsyncadd [#allocation8], %s63
      %s65 = sshll.u32 [#allocation9], 4
      %s66 = int_to_ptr.vmem [resolvable:$true] %s65
      %71 = dma.hbm_to_vmem [thread:$0]  %s9, 2048, %s66, [#allocation8], 128, 128, 8
    $region41: #{tpu_custom_call.1} parent=1 // pred_fallthru
      _
    // Predicated region
    $region42: #{tpu_custom_call.1} parent=1 // pred_check
      _
    $region43: #{tpu_custom_call.1} parent=1 // pred_check_branch
      %73 = sbr.rel (0) target = $region45
    $region44: #{tpu_custom_call.1} parent=1 // pred_region
      _
    $region45: #{tpu_custom_call.1} parent=1 // pred_fallthru
      _
    // Predicated region
    $region46: #{tpu_custom_call.1} parent=1 // pred_check
      _
    $region47: #{tpu_custom_call.1} parent=1 // pred_check_branch
      %75 = sbr.rel (0) target = $region49
    $region48: #{tpu_custom_call.1} parent=1 // pred_region
      %76 = dma.done [#allocation5], 256
    $region49: #{tpu_custom_call.1} parent=1 // pred_fallthru
      _
    // Predicated region
    $region50: #{tpu_custom_call.1} parent=1 // pred_check
      _
    $region51: #{tpu_custom_call.1} parent=1 // pred_check_branch
      %78 = sbr.rel (0) target = $region53
    $region52: #{tpu_custom_call.1} parent=1 // pred_region
      %79 = dma.done [#allocation8], 9216
    $region53: #{tpu_custom_call.1} parent=1 // pred_fallthru
      _
    // Predicated region
    $region54: #{tpu_custom_call.1} parent=1 // pred_check
      _
    $region55: #{tpu_custom_call.1} parent=1 // pred_check_branch
      %81 = sbr.rel (0) target = $region57
    $region56: #{tpu_custom_call.1} parent=1 // pred_region
      %82 = dma.done [#allocation8], 2048
    $region57: #{tpu_custom_call.1} parent=1 // pred_fallthru
      _
    %v84 = vld [vmem:[#allocation4] sm:$0xf]
    %v85 = vld [vmem:[#allocation4 + $0x4] sm:$0xf]
    %v86 = vld [vmem:[#allocation4 + $0x8] sm:$0xf]
    %v87 = vld [vmem:[#allocation4 + $0xc] sm:$0x3]
    %v88 = vld [vmem:[%s3] sm:$0xf]
    %v89 = vld [vmem:[%s3 + $0x4] sm:$0xf]
    %v90 = vld [vmem:[%s3 + $0x8] sm:$0xf]
    %v91 = vld [vmem:[%s3 + $0xc] sm:$0xf]
    %v92 = vld [vmem:[%s3 + $0x10] sm:$0xf]
    %v93 = vld [vmem:[%s3 + $0x14] sm:$0xf]
    %v94 = vld [vmem:[%s3 + $0x18] sm:$0xf]
    %v95 = vld [vmem:[%s3 + $0x1c] sm:$0xf]
    %v96 = vld [vmem:[%s3 + $0x20] sm:$0xf]
    %v97 = vld [vmem:[%s3 + $0x24] sm:$0xf]
    %v98 = vld [vmem:[%s3 + $0x28] sm:$0xf]
    %v99 = vld [vmem:[%s3 + $0x2c] sm:$0xf]
    %v100 = vld [vmem:[%s3 + $0x30] sm:$0xf]
    %v101 = vld [vmem:[%s3 + $0x34] sm:$0xf]
    %v102 = vld [vmem:[%s3 + $0x38] sm:$0xf]
    %v103 = vld [vmem:[%s3 + $0x3c] sm:$0xf]
    %v104 = vld [vmem:[%s3 + $0x40] sm:$0xf]
    %v105 = vld [vmem:[%s3 + $0x44] sm:$0xf]
    %v106 = vld [vmem:[%s3 + $0x48] sm:$0xf]
    %v107 = vld [vmem:[%s3 + $0x4c] sm:$0xf]
    %v108 = vld [vmem:[%s3 + $0x50] sm:$0xf]
    %v109 = vld [vmem:[%s3 + $0x54] sm:$0xf]
    %v110 = vld [vmem:[%s3 + $0x58] sm:$0xf]
    %v111 = vld [vmem:[%s3 + $0x5c] sm:$0xf]
    %v112 = vld [vmem:[%s3 + $0x60] sm:$0xf]
    %v113 = vld [vmem:[%s3 + $0x64] sm:$0xf]
    %v114 = vld [vmem:[%s3 + $0x68] sm:$0xf]
    %v115 = vld [vmem:[%s3 + $0x6c] sm:$0xf]
    %v116 = vld [vmem:[%s3 + $0x70] sm:$0xf]
    %v117 = vld [vmem:[%s3 + $0x74] sm:$0xf]
    %v118 = vld [vmem:[%s3 + $0x78] sm:$0xf]
    %v119 = vld [vmem:[%s3 + $0x7c] sm:$0xf]
    %v120 = vld [vmem:[%s3 + $0x80] sm:$0xf]
    %v121 = vld [vmem:[%s3 + $0x84] sm:$0xf]
    %v122 = vld [vmem:[%s3 + $0x88] sm:$0xf]
    %v123 = vld [vmem:[%s3 + $0x8c] sm:$0xf]
    %v124 = vld [vmem:[%s3 + $0x90] sm:$0xf]
    %v125 = vld [vmem:[%s3 + $0x94] sm:$0xf]
    %v126 = vld [vmem:[%s3 + $0x98] sm:$0xf]
    %v127 = vld [vmem:[%s3 + $0x9c] sm:$0xf]
    %v128 = vld [vmem:[%s3 + $0xa0] sm:$0xf]
    %v129 = vld [vmem:[%s3 + $0xa4] sm:$0xf]
    %v130 = vld [vmem:[%s3 + $0xa8] sm:$0xf]
    %v131 = vld [vmem:[%s3 + $0xac] sm:$0xf]
    %v132 = vld [vmem:[%s3 + $0xb0] sm:$0xf]
    %v133 = vld [vmem:[%s3 + $0xb4] sm:$0xf]
    %v134 = vld [vmem:[%s3 + $0xb8] sm:$0xf]
    %v135 = vld [vmem:[%s3 + $0xbc] sm:$0xf]
    %v136 = vld [vmem:[%s3 + $0xc0] sm:$0xf]
    %v137 = vld [vmem:[%s3 + $0xc4] sm:$0xf]
    %v138 = vld [vmem:[%s3 + $0xc8] sm:$0xf]
    %v139 = vld [vmem:[%s3 + $0xcc] sm:$0xf]
    %v140 = vld [vmem:[%s3 + $0xd0] sm:$0xf]
    %v141 = vld [vmem:[%s3 + $0xd4] sm:$0xf]
    %v142 = vld [vmem:[%s3 + $0xd8] sm:$0xf]
    %v143 = vld [vmem:[%s3 + $0xdc] sm:$0xf]
    %v144 = vld [vmem:[%s3 + $0xe0] sm:$0xf]
    %v145 = vld [vmem:[%s3 + $0xe4] sm:$0xf]
    %v146 = vld [vmem:[%s3 + $0xe8] sm:$0xf]
    %v147 = vld [vmem:[%s3 + $0xec] sm:$0xf]
    %v148 = vld [vmem:[%s3 + $0xf0] sm:$0xf]
    %v149 = vld [vmem:[%s3 + $0xf4] sm:$0xf]
    %v150 = vld [vmem:[%s3 + $0xf8] sm:$0xf]
    %v151 = vld [vmem:[%s3 + $0xfc] sm:$0xf]
    %v152 = vld [vmem:[%s3 + $0x100] sm:$0xf]
    %v153 = vld [vmem:[%s3 + $0x104] sm:$0xf]
    %v154 = vld [vmem:[%s3 + $0x108] sm:$0xf]
    %v155 = vld [vmem:[%s3 + $0x10c] sm:$0xf]
    %v156 = vld [vmem:[%s3 + $0x110] sm:$0xf]
    %v157 = vld [vmem:[%s3 + $0x114] sm:$0xf]
    %v158 = vld [vmem:[%s3 + $0x118] sm:$0xf]
    %v159 = vld [vmem:[%s3 + $0x11c] sm:$0xf]
    %v160 = vld [vmem:[#allocation7] sm:$0xf]
    %v161 = vld [vmem:[#allocation7 + $0x4] sm:$0xf]
    %v162 = vld [vmem:[#allocation7 + $0x8] sm:$0xf]
    %v163 = vld [vmem:[#allocation7 + $0xc] sm:$0xf]
    %v164 = vld [vmem:[#allocation7 + $0x10] sm:$0xf]
    %v165 = vld [vmem:[#allocation7 + $0x14] sm:$0xf]
    %v166 = vld [vmem:[#allocation7 + $0x18] sm:$0xf]
    %v167 = vld [vmem:[#allocation7 + $0x1c] sm:$0xf]
    %v168 = vld [vmem:[#allocation7 + $0x20] sm:$0xf]
    %v169 = vld [vmem:[#allocation7 + $0x24] sm:$0xf]
    %v170 = vld [vmem:[#allocation7 + $0x28] sm:$0xf]
    %v171 = vld [vmem:[#allocation7 + $0x2c] sm:$0xf]
    %v172 = vld [vmem:[#allocation7 + $0x30] sm:$0xf]
    %v173 = vld [vmem:[#allocation7 + $0x34] sm:$0xf]
    %v174 = vld [vmem:[#allocation7 + $0x38] sm:$0xf]
    %v175 = vld [vmem:[#allocation7 + $0x3c] sm:$0xf]
    %v176 = vld [vmem:[#allocation7 + $0x40] sm:$0xf]
    %v177 = vld [vmem:[#allocation7 + $0x44] sm:$0xf]
    %v178 = vld [vmem:[#allocation7 + $0x48] sm:$0xf]
    %v179 = vld [vmem:[#allocation7 + $0x4c] sm:$0xf]
    %v180 = vld [vmem:[#allocation7 + $0x50] sm:$0xf]
    %v181 = vld [vmem:[#allocation7 + $0x54] sm:$0xf]
    %v182 = vld [vmem:[#allocation7 + $0x58] sm:$0xf]
    %v183 = vld [vmem:[#allocation7 + $0x5c] sm:$0xf]
    %v184 = vld [vmem:[#allocation7 + $0x60] sm:$0xf]
    %v185 = vld [vmem:[#allocation7 + $0x64] sm:$0xf]
    %v186 = vld [vmem:[#allocation7 + $0x68] sm:$0xf]
    %v187 = vld [vmem:[#allocation7 + $0x6c] sm:$0xf]
    %v188 = vld [vmem:[#allocation7 + $0x70] sm:$0xf]
    %v189 = vld [vmem:[#allocation7 + $0x74] sm:$0xf]
    %v190 = vld [vmem:[#allocation7 + $0x78] sm:$0xf]
    %v191 = vld [vmem:[#allocation7 + $0x7c] sm:$0xf]
    %v192 = vld [vmem:[#allocation7 + $0x80] sm:$0xf]
    %v193 = vld [vmem:[#allocation7 + $0x84] sm:$0xf]
    %v194 = vld [vmem:[#allocation7 + $0x88] sm:$0xf]
    %v195 = vld [vmem:[#allocation7 + $0x8c] sm:$0xf]
    %v196 = vld [vmem:[#allocation7 + $0x90] sm:$0xf]
    %v197 = vld [vmem:[#allocation7 + $0x94] sm:$0xf]
    %v198 = vld [vmem:[#allocation7 + $0x98] sm:$0xf]
    %v199 = vld [vmem:[#allocation7 + $0x9c] sm:$0xf]
    %v200 = vld [vmem:[#allocation7 + $0xa0] sm:$0xf]
    %v201 = vld [vmem:[#allocation7 + $0xa4] sm:$0xf]
    %v202 = vld [vmem:[#allocation7 + $0xa8] sm:$0xf]
    %v203 = vld [vmem:[#allocation7 + $0xac] sm:$0xf]
    %v204 = vld [vmem:[#allocation7 + $0xb0] sm:$0xf]
    %v205 = vld [vmem:[#allocation7 + $0xb4] sm:$0xf]
    %v206 = vld [vmem:[#allocation7 + $0xb8] sm:$0xf]
    %v207 = vld [vmem:[#allocation7 + $0xbc] sm:$0xf]
    %v208 = vld [vmem:[#allocation7 + $0xc0] sm:$0xf]
    %v209 = vld [vmem:[#allocation7 + $0xc4] sm:$0xf]
    %v210 = vld [vmem:[#allocation7 + $0xc8] sm:$0xf]
    %v211 = vld [vmem:[#allocation7 + $0xcc] sm:$0xf]
    %v212 = vld [vmem:[#allocation7 + $0xd0] sm:$0xf]
    %v213 = vld [vmem:[#allocation7 + $0xd4] sm:$0xf]
    %v214 = vld [vmem:[#allocation7 + $0xd8] sm:$0xf]
    %v215 = vld [vmem:[#allocation7 + $0xdc] sm:$0xf]
    %v216 = vld [vmem:[#allocation7 + $0xe0] sm:$0xf]
    %v217 = vld [vmem:[#allocation7 + $0xe4] sm:$0xf]
    %v218 = vld [vmem:[#allocation7 + $0xe8] sm:$0xf]
    %v219 = vld [vmem:[#allocation7 + $0xec] sm:$0xf]
    %v220 = vld [vmem:[#allocation7 + $0xf0] sm:$0xf]
    %v221 = vld [vmem:[#allocation7 + $0xf4] sm:$0xf]
    %v222 = vld [vmem:[#allocation7 + $0xf8] sm:$0xf]
    %v223 = vld [vmem:[#allocation7 + $0xfc] sm:$0xf]
    %v224 = vld [vmem:[#allocation7 + $0x100] sm:$0xf]
    %v225 = vld [vmem:[#allocation7 + $0x104] sm:$0xf]
    %v226 = vld [vmem:[#allocation7 + $0x108] sm:$0xf]
    %v227 = vld [vmem:[#allocation7 + $0x10c] sm:$0xf]
    %v228 = vld [vmem:[#allocation7 + $0x110] sm:$0xf]
    %v229 = vld [vmem:[#allocation7 + $0x114] sm:$0xf]
    %v230 = vld [vmem:[#allocation7 + $0x118] sm:$0xf]
    %v231 = vld [vmem:[#allocation7 + $0x11c] sm:$0xf]
    %v232 = vld [vmem:[#allocation7 + $0x120] sm:$0xf]
    %v233 = vld [vmem:[#allocation7 + $0x124] sm:$0xf]
    %v234 = vld [vmem:[#allocation7 + $0x128] sm:$0xf]
    %v235 = vld [vmem:[#allocation7 + $0x12c] sm:$0xf]
    %v236 = vld [vmem:[#allocation7 + $0x130] sm:$0xf]
    %v237 = vld [vmem:[#allocation7 + $0x134] sm:$0xf]
    %v238 = vld [vmem:[#allocation7 + $0x138] sm:$0xf]
    %v239 = vld [vmem:[#allocation7 + $0x13c] sm:$0xf]
    %v240 = vld [vmem:[#allocation7 + $0x140] sm:$0xf]
    %v241 = vld [vmem:[#allocation7 + $0x144] sm:$0xf]
    %v242 = vld [vmem:[#allocation7 + $0x148] sm:$0xf]
    %v243 = vld [vmem:[#allocation7 + $0x14c] sm:$0xf]
    %v244 = vld [vmem:[#allocation7 + $0x150] sm:$0xf]
    %v245 = vld [vmem:[#allocation7 + $0x154] sm:$0xf]
    %v246 = vld [vmem:[#allocation7 + $0x158] sm:$0xf]
    %v247 = vld [vmem:[#allocation7 + $0x15c] sm:$0xf]
    %v248 = vld [vmem:[#allocation7 + $0x160] sm:$0xf]
    %v249 = vld [vmem:[#allocation7 + $0x164] sm:$0xf]
    %v250 = vld [vmem:[#allocation7 + $0x168] sm:$0xf]
    %v251 = vld [vmem:[#allocation7 + $0x16c] sm:$0xf]
    %v252 = vld [vmem:[#allocation7 + $0x170] sm:$0xf]
    %v253 = vld [vmem:[#allocation7 + $0x174] sm:$0xf]
    %v254 = vld [vmem:[#allocation7 + $0x178] sm:$0xf]
    %v255 = vld [vmem:[#allocation7 + $0x17c] sm:$0xf]
    %v256 = vld [vmem:[#allocation7 + $0x180] sm:$0xf]
    %v257 = vld [vmem:[#allocation7 + $0x184] sm:$0xf]
    %v258 = vld [vmem:[#allocation7 + $0x188] sm:$0xf]
    %v259 = vld [vmem:[#allocation7 + $0x18c] sm:$0xf]
    %v260 = vld [vmem:[#allocation7 + $0x190] sm:$0xf]
    %v261 = vld [vmem:[#allocation7 + $0x194] sm:$0xf]
    %v262 = vld [vmem:[#allocation7 + $0x198] sm:$0xf]
    %v263 = vld [vmem:[#allocation7 + $0x19c] sm:$0xf]
    %v264 = vld [vmem:[#allocation7 + $0x1a0] sm:$0xf]
    %v265 = vld [vmem:[#allocation7 + $0x1a4] sm:$0xf]
    %v266 = vld [vmem:[#allocation7 + $0x1a8] sm:$0xf]
    %v267 = vld [vmem:[#allocation7 + $0x1ac] sm:$0xf]
    %v268 = vld [vmem:[#allocation7 + $0x1b0] sm:$0xf]
    %v269 = vld [vmem:[#allocation7 + $0x1b4] sm:$0xf]
    %v270 = vld [vmem:[#allocation7 + $0x1b8] sm:$0xf]
    %v271 = vld [vmem:[#allocation7 + $0x1bc] sm:$0xf]
    %v272 = vld [vmem:[#allocation7 + $0x1c0] sm:$0xf]
    %v273 = vld [vmem:[#allocation7 + $0x1c4] sm:$0xf]
    %v274 = vld [vmem:[#allocation7 + $0x1c8] sm:$0xf]
    %v275 = vld [vmem:[#allocation7 + $0x1cc] sm:$0xf]
    %v276 = vld [vmem:[#allocation7 + $0x1d0] sm:$0xf]
    %v277 = vld [vmem:[#allocation7 + $0x1d4] sm:$0xf]
    %v278 = vld [vmem:[#allocation7 + $0x1d8] sm:$0xf]
    %v279 = vld [vmem:[#allocation7 + $0x1dc] sm:$0xf]
    %v280 = vld [vmem:[#allocation7 + $0x1e0] sm:$0xf]
    %v281 = vld [vmem:[#allocation7 + $0x1e4] sm:$0xf]
    %v282 = vld [vmem:[#allocation7 + $0x1e8] sm:$0xf]
    %v283 = vld [vmem:[#allocation7 + $0x1ec] sm:$0xf]
    %v284 = vld [vmem:[#allocation7 + $0x1f0] sm:$0xf]
    %v285 = vld [vmem:[#allocation7 + $0x1f4] sm:$0xf]
    %v286 = vld [vmem:[#allocation7 + $0x1f8] sm:$0xf]
    %v287 = vld [vmem:[#allocation7 + $0x1fc] sm:$0xf]
    %v288 = vld [vmem:[#allocation7 + $0x200] sm:$0xf]
    %v289 = vld [vmem:[#allocation7 + $0x204] sm:$0xf]
    %v290 = vld [vmem:[#allocation7 + $0x208] sm:$0xf]
    %v291 = vld [vmem:[#allocation7 + $0x20c] sm:$0xf]
    %v292 = vld [vmem:[#allocation7 + $0x210] sm:$0xf]
    %v293 = vld [vmem:[#allocation7 + $0x214] sm:$0xf]
    %v294 = vld [vmem:[#allocation7 + $0x218] sm:$0xf]
    %v295 = vld [vmem:[#allocation7 + $0x21c] sm:$0xf]
    %v296 = vld [vmem:[#allocation7 + $0x220] sm:$0xf]
    %v297 = vld [vmem:[#allocation7 + $0x224] sm:$0xf]
    %v298 = vld [vmem:[#allocation7 + $0x228] sm:$0xf]
    %v299 = vld [vmem:[#allocation7 + $0x22c] sm:$0xf]
    %v300 = vld [vmem:[#allocation7 + $0x230] sm:$0xf]
    %v301 = vld [vmem:[#allocation7 + $0x234] sm:$0xf]
    %v302 = vld [vmem:[#allocation7 + $0x238] sm:$0xf]
    %v303 = vld [vmem:[#allocation7 + $0x23c] sm:$0xf]
    %v304 = vld [vmem:[%s2] sm:$0x1]
    %v305 = vld [vmem:[%s4] sm:$0x1]
    %v306 = vld [vmem:[%s6] sm:$0x1]
    %v307 = vld [vmem:[%s0] sm:$0xff]
    %v308 = vld [vmem:[%s0 + $0x8] sm:$0xff]
    %v309 = vld [vmem:[%s0 + $0x10] sm:$0xff]
    %v310 = vld [vmem:[%s0 + $0x18] sm:$0xff]
    %v311 = vld [vmem:[%s0 + $0x20] sm:$0xff]
    %v312 = vld [vmem:[%s0 + $0x28] sm:$0xff]
    %v313 = vld [vmem:[%s0 + $0x30] sm:$0xff]
    %v314 = vld [vmem:[%s0 + $0x38] sm:$0xff]
    %v315 = vld [vmem:[%s0 + $0x40] sm:$0xff]
    %v316 = vld [vmem:[%s0 + $0x48] sm:$0xff]
    %v317 = vld [vmem:[%s0 + $0x50] sm:$0xff]
    %v318 = vld [vmem:[%s0 + $0x58] sm:$0xff]
    %v319 = vld [vmem:[%s0 + $0x60] sm:$0xff]
    %v320 = vld [vmem:[%s0 + $0x68] sm:$0xff]
    %v321 = vld [vmem:[%s0 + $0x70] sm:$0xff]
    %v322 = vld [vmem:[%s0 + $0x78] sm:$0xff]
    %v323 = vld [vmem:[%s0 + $0x80] sm:$0xff]
    %v324 = vld [vmem:[%s0 + $0x88] sm:$0xff]
    %v325 = vld [vmem:[%s0 + $0x90] sm:$0xff]
    %v326 = vld [vmem:[%s0 + $0x98] sm:$0xff]
    %v327 = vld [vmem:[%s0 + $0xa0] sm:$0xff]
    %v328 = vld [vmem:[%s0 + $0xa8] sm:$0xff]
    %v329 = vld [vmem:[%s0 + $0xb0] sm:$0xff]
    %v330 = vld [vmem:[%s0 + $0xb8] sm:$0xff]
    %v331 = vld [vmem:[%s0 + $0xc0] sm:$0xff]
    %vm357 = vcmask 1046528
    %v358 = vrot.slane %v307, 1
    %v359 = vrot.slane %v308, 1
    %v360 = vsel %vm357, %v358, %v359
    %v361 = vrot.slane %v309, 1
    %v362 = vsel %vm357, %v359, %v361
    %v363 = vrot.slane %v310, 1
    %v364 = vsel %vm357, %v361, %v363
    %v365 = vrot.slane %v311, 1
    %v366 = vsel %vm357, %v363, %v365
    %v367 = vrot.slane %v312, 1
    %v368 = vsel %vm357, %v365, %v367
    %v369 = vrot.slane %v313, 1
    %v370 = vsel %vm357, %v367, %v369
    %v371 = vrot.slane %v314, 1
    %v372 = vsel %vm357, %v369, %v371
    %v373 = vrot.slane %v315, 1
    %v374 = vsel %vm357, %v371, %v373
    %v375 = vrot.slane %v316, 1
    %v376 = vsel %vm357, %v373, %v375
    %v377 = vrot.slane %v317, 1
    %v378 = vsel %vm357, %v375, %v377
    %v379 = vrot.slane %v318, 1
    %v380 = vsel %vm357, %v377, %v379
    %v381 = vrot.slane %v319, 1
    %v382 = vsel %vm357, %v379, %v381
    %v383 = vrot.slane %v320, 1
    %v384 = vsel %vm357, %v381, %v383
    %v385 = vrot.slane %v321, 1
    %v386 = vsel %vm357, %v383, %v385
    %v387 = vrot.slane %v322, 1
    %v388 = vsel %vm357, %v385, %v387
    %v389 = vrot.slane %v323, 1
    %v390 = vsel %vm357, %v387, %v389
    %v391 = vrot.slane %v324, 1
    %v392 = vsel %vm357, %v389, %v391
    %v393 = vrot.slane %v325, 1
    %v394 = vsel %vm357, %v391, %v393
    %v395 = vrot.slane %v326, 1
    %v396 = vsel %vm357, %v393, %v395
    %v397 = vrot.slane %v327, 1
    %v398 = vsel %vm357, %v395, %v397
    %v399 = vrot.slane %v328, 1
    %v400 = vsel %vm357, %v397, %v399
    %v401 = vrot.slane %v329, 1
    %v402 = vsel %vm357, %v399, %v401
    %v403 = vrot.slane %v330, 1
    %v404 = vsel %vm357, %v401, %v403
    %v405 = vrot.slane %v331, 1
    %v406 = vsel %vm357, %v403, %v405
    %407 = vrot.lane.b32.xlu0 %v360, 3
    %v408 = vpop.permute.xlu0 %407
    %409 = vrot.lane.b32.xlu0 %v362, 3
    %v410 = vpop.permute.xlu0 %409
    %411 = vrot.lane.b32.xlu0 %v364, 3
    %v412 = vpop.permute.xlu0 %411
    %413 = vrot.lane.b32.xlu0 %v366, 3
    %v414 = vpop.permute.xlu0 %413
    %415 = vrot.lane.b32.xlu0 %v368, 3
    %v416 = vpop.permute.xlu0 %415
    %417 = vrot.lane.b32.xlu0 %v370, 3
    %v418 = vpop.permute.xlu0 %417
    %419 = vrot.lane.b32.xlu0 %v372, 3
    %v420 = vpop.permute.xlu0 %419
    %421 = vrot.lane.b32.xlu0 %v374, 3
    %v422 = vpop.permute.xlu0 %421
    %423 = vrot.lane.b32.xlu0 %v376, 3
    %v424 = vpop.permute.xlu0 %423
    %425 = vrot.lane.b32.xlu0 %v378, 3
    %v426 = vpop.permute.xlu0 %425
    %427 = vrot.lane.b32.xlu0 %v380, 3
    %v428 = vpop.permute.xlu0 %427
    %429 = vrot.lane.b32.xlu0 %v382, 3
    %v430 = vpop.permute.xlu0 %429
    %431 = vrot.lane.b32.xlu0 %v384, 3
    %v432 = vpop.permute.xlu0 %431
    %433 = vrot.lane.b32.xlu0 %v386, 3
    %v434 = vpop.permute.xlu0 %433
    %435 = vrot.lane.b32.xlu0 %v388, 3
    %v436 = vpop.permute.xlu0 %435
    %437 = vrot.lane.b32.xlu0 %v390, 3
    %v438 = vpop.permute.xlu0 %437
    %439 = vrot.lane.b32.xlu0 %v392, 3
    %v440 = vpop.permute.xlu0 %439
    %441 = vrot.lane.b32.xlu0 %v394, 3
    %v442 = vpop.permute.xlu0 %441
    %443 = vrot.lane.b32.xlu0 %v396, 3
    %v444 = vpop.permute.xlu0 %443
    %445 = vrot.lane.b32.xlu0 %v398, 3
    %v446 = vpop.permute.xlu0 %445
    %447 = vrot.lane.b32.xlu0 %v400, 3
    %v448 = vpop.permute.xlu0 %447
    %449 = vrot.lane.b32.xlu0 %v402, 3
    %v450 = vpop.permute.xlu0 %449
    %451 = vrot.lane.b32.xlu0 %v404, 3
    %v452 = vpop.permute.xlu0 %451
    %453 = vrot.lane.b32.xlu0 %v406, 3
    %v454 = vpop.permute.xlu0 %453
    %vm479 = vcmask 1045504
    %v480 = vrot.slane %v307, 2
    %v481 = vrot.slane %v308, 2
    %v482 = vsel %vm479, %v480, %v481
    %v483 = vrot.slane %v309, 2
    %v484 = vsel %vm479, %v481, %v483
    %v485 = vrot.slane %v310, 2
    %v486 = vsel %vm479, %v483, %v485
    %v487 = vrot.slane %v311, 2
    %v488 = vsel %vm479, %v485, %v487
    %v489 = vrot.slane %v312, 2
    %v490 = vsel %vm479, %v487, %v489
    %v491 = vrot.slane %v313, 2
    %v492 = vsel %vm479, %v489, %v491
    %v493 = vrot.slane %v314, 2
    %v494 = vsel %vm479, %v491, %v493
    %v495 = vrot.slane %v315, 2
    %v496 = vsel %vm479, %v493, %v495
    %v497 = vrot.slane %v316, 2
    %v498 = vsel %vm479, %v495, %v497
    %v499 = vrot.slane %v317, 2
    %v500 = vsel %vm479, %v497, %v499
    %v501 = vrot.slane %v318, 2
    %v502 = vsel %vm479, %v499, %v501
    %v503 = vrot.slane %v319, 2
    %v504 = vsel %vm479, %v501, %v503
    %v505 = vrot.slane %v320, 2
    %v506 = vsel %vm479, %v503, %v505
    %v507 = vrot.slane %v321, 2
    %v508 = vsel %vm479, %v505, %v507
    %v509 = vrot.slane %v322, 2
    %v510 = vsel %vm479, %v507, %v509
    %v511 = vrot.slane %v323, 2
    %v512 = vsel %vm479, %v509, %v511
    %v513 = vrot.slane %v324, 2
    %v514 = vsel %vm479, %v511, %v513
    %v515 = vrot.slane %v325, 2
    %v516 = vsel %vm479, %v513, %v515
    %v517 = vrot.slane %v326, 2
    %v518 = vsel %vm479, %v515, %v517
    %v519 = vrot.slane %v327, 2
    %v520 = vsel %vm479, %v517, %v519
    %v521 = vrot.slane %v328, 2
    %v522 = vsel %vm479, %v519, %v521
    %v523 = vrot.slane %v329, 2
    %v524 = vsel %vm479, %v521, %v523
    %v525 = vrot.slane %v330, 2
    %v526 = vsel %vm479, %v523, %v525
    %v527 = vrot.slane %v331, 2
    %v528 = vsel %vm479, %v525, %v527
    %529 = vrot.lane.b32.xlu0 %v482, 6
    %v530 = vpop.permute.xlu0 %529
    %531 = vrot.lane.b32.xlu0 %v484, 6
    %v532 = vpop.permute.xlu0 %531
    %533 = vrot.lane.b32.xlu0 %v486, 6
    %v534 = vpop.permute.xlu0 %533
    %535 = vrot.lane.b32.xlu0 %v488, 6
    %v536 = vpop.permute.xlu0 %535
    %537 = vrot.lane.b32.xlu0 %v490, 6
    %v538 = vpop.permute.xlu0 %537
    %539 = vrot.lane.b32.xlu0 %v492, 6
    %v540 = vpop.permute.xlu0 %539
    %541 = vrot.lane.b32.xlu0 %v494, 6
    %v542 = vpop.permute.xlu0 %541
    %543 = vrot.lane.b32.xlu0 %v496, 6
    %v544 = vpop.permute.xlu0 %543
    %545 = vrot.lane.b32.xlu0 %v498, 6
    %v546 = vpop.permute.xlu0 %545
    %547 = vrot.lane.b32.xlu0 %v500, 6
    %v548 = vpop.permute.xlu0 %547
    %549 = vrot.lane.b32.xlu0 %v502, 6
    %v550 = vpop.permute.xlu0 %549
    %551 = vrot.lane.b32.xlu0 %v504, 6
    %v552 = vpop.permute.xlu0 %551
    %553 = vrot.lane.b32.xlu0 %v506, 6
    %v554 = vpop.permute.xlu0 %553
    %555 = vrot.lane.b32.xlu0 %v508, 6
    %v556 = vpop.permute.xlu0 %555
    %557 = vrot.lane.b32.xlu0 %v510, 6
    %v558 = vpop.permute.xlu0 %557
    %559 = vrot.lane.b32.xlu0 %v512, 6
    %v560 = vpop.permute.xlu0 %559
    %561 = vrot.lane.b32.xlu0 %v514, 6
    %v562 = vpop.permute.xlu0 %561
    %563 = vrot.lane.b32.xlu0 %v516, 6
    %v564 = vpop.permute.xlu0 %563
    %565 = vrot.lane.b32.xlu0 %v518, 6
    %v566 = vpop.permute.xlu0 %565
    %567 = vrot.lane.b32.xlu0 %v520, 6
    %v568 = vpop.permute.xlu0 %567
    %569 = vrot.lane.b32.xlu0 %v522, 6
    %v570 = vpop.permute.xlu0 %569
    %571 = vrot.lane.b32.xlu0 %v524, 6
    %v572 = vpop.permute.xlu0 %571
    %573 = vrot.lane.b32.xlu0 %v526, 6
    %v574 = vpop.permute.xlu0 %573
    %575 = vrot.lane.b32.xlu0 %v528, 6
    %v576 = vpop.permute.xlu0 %575
    %vm601 = vcmask 1044480
    %v602 = vrot.slane %v307, 3
    %v603 = vrot.slane %v308, 3
    %v604 = vsel %vm601, %v602, %v603
    %v605 = vrot.slane %v309, 3
    %v606 = vsel %vm601, %v603, %v605
    %v607 = vrot.slane %v310, 3
    %v608 = vsel %vm601, %v605, %v607
    %v609 = vrot.slane %v311, 3
    %v610 = vsel %vm601, %v607, %v609
    %v611 = vrot.slane %v312, 3
    %v612 = vsel %vm601, %v609, %v611
    %v613 = vrot.slane %v313, 3
    %v614 = vsel %vm601, %v611, %v613
    %v615 = vrot.slane %v314, 3
    %v616 = vsel %vm601, %v613, %v615
    %v617 = vrot.slane %v315, 3
    %v618 = vsel %vm601, %v615, %v617
    %v619 = vrot.slane %v316, 3
    %v620 = vsel %vm601, %v617, %v619
    %v621 = vrot.slane %v317, 3
    %v622 = vsel %vm601, %v619, %v621
    %v623 = vrot.slane %v318, 3
    %v624 = vsel %vm601, %v621, %v623
    %v625 = vrot.slane %v319, 3
    %v626 = vsel %vm601, %v623, %v625
    %v627 = vrot.slane %v320, 3
    %v628 = vsel %vm601, %v625, %v627
    %v629 = vrot.slane %v321, 3
    %v630 = vsel %vm601, %v627, %v629
    %v631 = vrot.slane %v322, 3
    %v632 = vsel %vm601, %v629, %v631
    %v633 = vrot.slane %v323, 3
    %v634 = vsel %vm601, %v631, %v633
    %v635 = vrot.slane %v324, 3
    %v636 = vsel %vm601, %v633, %v635
    %v637 = vrot.slane %v325, 3
    %v638 = vsel %vm601, %v635, %v637
    %v639 = vrot.slane %v326, 3
    %v640 = vsel %vm601, %v637, %v639
    %v641 = vrot.slane %v327, 3
    %v642 = vsel %vm601, %v639, %v641
    %v643 = vrot.slane %v328, 3
    %v644 = vsel %vm601, %v641, %v643
    %v645 = vrot.slane %v329, 3
    %v646 = vsel %vm601, %v643, %v645
    %v647 = vrot.slane %v330, 3
    %v648 = vsel %vm601, %v645, %v647
    %v649 = vrot.slane %v331, 3
    %v650 = vsel %vm601, %v647, %v649
    %651 = vrot.lane.b32.xlu0 %v604, 9
    %v652 = vpop.permute.xlu0 %651
    %653 = vrot.lane.b32.xlu0 %v606, 9
    %v654 = vpop.permute.xlu0 %653
    %655 = vrot.lane.b32.xlu0 %v608, 9
    %v656 = vpop.permute.xlu0 %655
    %657 = vrot.lane.b32.xlu0 %v610, 9
    %v658 = vpop.permute.xlu0 %657
    %659 = vrot.lane.b32.xlu0 %v612, 9
    %v660 = vpop.permute.xlu0 %659
    %661 = vrot.lane.b32.xlu0 %v614, 9
    %v662 = vpop.permute.xlu0 %661
    %663 = vrot.lane.b32.xlu0 %v616, 9
    %v664 = vpop.permute.xlu0 %663
    %665 = vrot.lane.b32.xlu0 %v618, 9
    %v666 = vpop.permute.xlu0 %665
    %667 = vrot.lane.b32.xlu0 %v620, 9
    %v668 = vpop.permute.xlu0 %667
    %669 = vrot.lane.b32.xlu0 %v622, 9
    %v670 = vpop.permute.xlu0 %669
    %671 = vrot.lane.b32.xlu0 %v624, 9
    %v672 = vpop.permute.xlu0 %671
    %673 = vrot.lane.b32.xlu0 %v626, 9
    %v674 = vpop.permute.xlu0 %673
    %675 = vrot.lane.b32.xlu0 %v628, 9
    %v676 = vpop.permute.xlu0 %675
    %677 = vrot.lane.b32.xlu0 %v630, 9
    %v678 = vpop.permute.xlu0 %677
    %679 = vrot.lane.b32.xlu0 %v632, 9
    %v680 = vpop.permute.xlu0 %679
    %681 = vrot.lane.b32.xlu0 %v634, 9
    %v682 = vpop.permute.xlu0 %681
    %683 = vrot.lane.b32.xlu0 %v636, 9
    %v684 = vpop.permute.xlu0 %683
    %685 = vrot.lane.b32.xlu0 %v638, 9
    %v686 = vpop.permute.xlu0 %685
    %687 = vrot.lane.b32.xlu0 %v640, 9
    %v688 = vpop.permute.xlu0 %687
    %689 = vrot.lane.b32.xlu0 %v642, 9
    %v690 = vpop.permute.xlu0 %689
    %691 = vrot.lane.b32.xlu0 %v644, 9
    %v692 = vpop.permute.xlu0 %691
    %693 = vrot.lane.b32.xlu0 %v646, 9
    %v694 = vpop.permute.xlu0 %693
    %695 = vrot.lane.b32.xlu0 %v648, 9
    %v696 = vpop.permute.xlu0 %695
    %697 = vrot.lane.b32.xlu0 %v650, 9
    %v698 = vpop.permute.xlu0 %697
    %vm723 = vcmask 1043456
    %v724 = vrot.slane %v307, 4
    %v725 = vrot.slane %v308, 4
    %v726 = vsel %vm723, %v724, %v725
    %v727 = vrot.slane %v309, 4
    %v728 = vsel %vm723, %v725, %v727
    %v729 = vrot.slane %v310, 4
    %v730 = vsel %vm723, %v727, %v729
    %v731 = vrot.slane %v311, 4
    %v732 = vsel %vm723, %v729, %v731
    %v733 = vrot.slane %v312, 4
    %v734 = vsel %vm723, %v731, %v733
    %v735 = vrot.slane %v313, 4
    %v736 = vsel %vm723, %v733, %v735
    %v737 = vrot.slane %v314, 4
    %v738 = vsel %vm723, %v735, %v737
    %v739 = vrot.slane %v315, 4
    %v740 = vsel %vm723, %v737, %v739
    %v741 = vrot.slane %v316, 4
    %v742 = vsel %vm723, %v739, %v741
    %v743 = vrot.slane %v317, 4
    %v744 = vsel %vm723, %v741, %v743
    %v745 = vrot.slane %v318, 4
    %v746 = vsel %vm723, %v743, %v745
    %v747 = vrot.slane %v319, 4
    %v748 = vsel %vm723, %v745, %v747
    %v749 = vrot.slane %v320, 4
    %v750 = vsel %vm723, %v747, %v749
    %v751 = vrot.slane %v321, 4
    %v752 = vsel %vm723, %v749, %v751
    %v753 = vrot.slane %v322, 4
    %v754 = vsel %vm723, %v751, %v753
    %v755 = vrot.slane %v323, 4
    %v756 = vsel %vm723, %v753, %v755
    %v757 = vrot.slane %v324, 4
    %v758 = vsel %vm723, %v755, %v757
    %v759 = vrot.slane %v325, 4
    %v760 = vsel %vm723, %v757, %v759
    %v761 = vrot.slane %v326, 4
    %v762 = vsel %vm723, %v759, %v761
    %v763 = vrot.slane %v327, 4
    %v764 = vsel %vm723, %v761, %v763
    %v765 = vrot.slane %v328, 4
    %v766 = vsel %vm723, %v763, %v765
    %v767 = vrot.slane %v329, 4
    %v768 = vsel %vm723, %v765, %v767
    %v769 = vrot.slane %v330, 4
    %v770 = vsel %vm723, %v767, %v769
    %v771 = vrot.slane %v331, 4
    %v772 = vsel %vm723, %v769, %v771
    %773 = vrot.lane.b32.xlu0 %v726, 12
    %v774 = vpop.permute.xlu0 %773
    %775 = vrot.lane.b32.xlu0 %v728, 12
    %v776 = vpop.permute.xlu0 %775
    %777 = vrot.lane.b32.xlu0 %v730, 12
    %v778 = vpop.permute.xlu0 %777
    %779 = vrot.lane.b32.xlu0 %v732, 12
    %v780 = vpop.permute.xlu0 %779
    %781 = vrot.lane.b32.xlu0 %v734, 12
    %v782 = vpop.permute.xlu0 %781
    %783 = vrot.lane.b32.xlu0 %v736, 12
    %v784 = vpop.permute.xlu0 %783
    %785 = vrot.lane.b32.xlu0 %v738, 12
    %v786 = vpop.permute.xlu0 %785
    %787 = vrot.lane.b32.xlu0 %v740, 12
    %v788 = vpop.permute.xlu0 %787
    %789 = vrot.lane.b32.xlu0 %v742, 12
    %v790 = vpop.permute.xlu0 %789
    %791 = vrot.lane.b32.xlu0 %v744, 12
    %v792 = vpop.permute.xlu0 %791
    %793 = vrot.lane.b32.xlu0 %v746, 12
    %v794 = vpop.permute.xlu0 %793
    %795 = vrot.lane.b32.xlu0 %v748, 12
    %v796 = vpop.permute.xlu0 %795
    %797 = vrot.lane.b32.xlu0 %v750, 12
    %v798 = vpop.permute.xlu0 %797
    %799 = vrot.lane.b32.xlu0 %v752, 12
    %v800 = vpop.permute.xlu0 %799
    %801 = vrot.lane.b32.xlu0 %v754, 12
    %v802 = vpop.permute.xlu0 %801
    %803 = vrot.lane.b32.xlu0 %v756, 12
    %v804 = vpop.permute.xlu0 %803
    %805 = vrot.lane.b32.xlu0 %v758, 12
    %v806 = vpop.permute.xlu0 %805
    %807 = vrot.lane.b32.xlu0 %v760, 12
    %v808 = vpop.permute.xlu0 %807
    %809 = vrot.lane.b32.xlu0 %v762, 12
    %v810 = vpop.permute.xlu0 %809
    %811 = vrot.lane.b32.xlu0 %v764, 12
    %v812 = vpop.permute.xlu0 %811
    %813 = vrot.lane.b32.xlu0 %v766, 12
    %v814 = vpop.permute.xlu0 %813
    %815 = vrot.lane.b32.xlu0 %v768, 12
    %v816 = vpop.permute.xlu0 %815
    %817 = vrot.lane.b32.xlu0 %v770, 12
    %v818 = vpop.permute.xlu0 %817
    %819 = vrot.lane.b32.xlu0 %v772, 12
    %v820 = vpop.permute.xlu0 %819
    %vm845 = vcmask 1042432
    %v846 = vrot.slane %v307, 5
    %v847 = vrot.slane %v308, 5
    %v848 = vsel %vm845, %v846, %v847
    %v849 = vrot.slane %v309, 5
    %v850 = vsel %vm845, %v847, %v849
    %v851 = vrot.slane %v310, 5
    %v852 = vsel %vm845, %v849, %v851
    %v853 = vrot.slane %v311, 5
    %v854 = vsel %vm845, %v851, %v853
    %v855 = vrot.slane %v312, 5
    %v856 = vsel %vm845, %v853, %v855
    %v857 = vrot.slane %v313, 5
    %v858 = vsel %vm845, %v855, %v857
    %v859 = vrot.slane %v314, 5
    %v860 = vsel %vm845, %v857, %v859
    %v861 = vrot.slane %v315, 5
    %v862 = vsel %vm845, %v859, %v861
    %v863 = vrot.slane %v316, 5
    %v864 = vsel %vm845, %v861, %v863
    %v865 = vrot.slane %v317, 5
    %v866 = vsel %vm845, %v863, %v865
    %v867 = vrot.slane %v318, 5
    %v868 = vsel %vm845, %v865, %v867
    %v869 = vrot.slane %v319, 5
    %v870 = vsel %vm845, %v867, %v869
    %v871 = vrot.slane %v320, 5
    %v872 = vsel %vm845, %v869, %v871
    %v873 = vrot.slane %v321, 5
    %v874 = vsel %vm845, %v871, %v873
    %v875 = vrot.slane %v322, 5
    %v876 = vsel %vm845, %v873, %v875
    %v877 = vrot.slane %v323, 5
    %v878 = vsel %vm845, %v875, %v877
    %v879 = vrot.slane %v324, 5
    %v880 = vsel %vm845, %v877, %v879
    %v881 = vrot.slane %v325, 5
    %v882 = vsel %vm845, %v879, %v881
    %v883 = vrot.slane %v326, 5
    %v884 = vsel %vm845, %v881, %v883
    %v885 = vrot.slane %v327, 5
    %v886 = vsel %vm845, %v883, %v885
    %v887 = vrot.slane %v328, 5
    %v888 = vsel %vm845, %v885, %v887
    %v889 = vrot.slane %v329, 5
    %v890 = vsel %vm845, %v887, %v889
    %v891 = vrot.slane %v330, 5
    %v892 = vsel %vm845, %v889, %v891
    %v893 = vrot.slane %v331, 5
    %v894 = vsel %vm845, %v891, %v893
    %895 = vrot.lane.b32.xlu0 %v848, 15
    %v896 = vpop.permute.xlu0 %895
    %897 = vrot.lane.b32.xlu0 %v850, 15
    %v898 = vpop.permute.xlu0 %897
    %899 = vrot.lane.b32.xlu0 %v852, 15
    %v900 = vpop.permute.xlu0 %899
    %901 = vrot.lane.b32.xlu0 %v854, 15
    %v902 = vpop.permute.xlu0 %901
    %903 = vrot.lane.b32.xlu0 %v856, 15
    %v904 = vpop.permute.xlu0 %903
    %905 = vrot.lane.b32.xlu0 %v858, 15
    %v906 = vpop.permute.xlu0 %905
    %907 = vrot.lane.b32.xlu0 %v860, 15
    %v908 = vpop.permute.xlu0 %907
    %909 = vrot.lane.b32.xlu0 %v862, 15
    %v910 = vpop.permute.xlu0 %909
    %911 = vrot.lane.b32.xlu0 %v864, 15
    %v912 = vpop.permute.xlu0 %911
    %913 = vrot.lane.b32.xlu0 %v866, 15
    %v914 = vpop.permute.xlu0 %913
    %915 = vrot.lane.b32.xlu0 %v868, 15
    %v916 = vpop.permute.xlu0 %915
    %917 = vrot.lane.b32.xlu0 %v870, 15
    %v918 = vpop.permute.xlu0 %917
    %919 = vrot.lane.b32.xlu0 %v872, 15
    %v920 = vpop.permute.xlu0 %919
    %921 = vrot.lane.b32.xlu0 %v874, 15
    %v922 = vpop.permute.xlu0 %921
    %923 = vrot.lane.b32.xlu0 %v876, 15
    %v924 = vpop.permute.xlu0 %923
    %925 = vrot.lane.b32.xlu0 %v878, 15
    %v926 = vpop.permute.xlu0 %925
    %927 = vrot.lane.b32.xlu0 %v880, 15
    %v928 = vpop.permute.xlu0 %927
    %929 = vrot.lane.b32.xlu0 %v882, 15
    %v930 = vpop.permute.xlu0 %929
    %931 = vrot.lane.b32.xlu0 %v884, 15
    %v932 = vpop.permute.xlu0 %931
    %933 = vrot.lane.b32.xlu0 %v886, 15
    %v934 = vpop.permute.xlu0 %933
    %935 = vrot.lane.b32.xlu0 %v888, 15
    %v936 = vpop.permute.xlu0 %935
    %937 = vrot.lane.b32.xlu0 %v890, 15
    %v938 = vpop.permute.xlu0 %937
    %939 = vrot.lane.b32.xlu0 %v892, 15
    %v940 = vpop.permute.xlu0 %939
    %941 = vrot.lane.b32.xlu0 %v894, 15
    %v942 = vpop.permute.xlu0 %941
    %vm967 = vcmask 1041408
    %v968 = vrot.slane %v307, 6
    %v969 = vrot.slane %v308, 6
    %v970 = vsel %vm967, %v968, %v969
    %v971 = vrot.slane %v309, 6
    %v972 = vsel %vm967, %v969, %v971
    %v973 = vrot.slane %v310, 6
    %v974 = vsel %vm967, %v971, %v973
    %v975 = vrot.slane %v311, 6
    %v976 = vsel %vm967, %v973, %v975
    %v977 = vrot.slane %v312, 6
    %v978 = vsel %vm967, %v975, %v977
    %v979 = vrot.slane %v313, 6
    %v980 = vsel %vm967, %v977, %v979
    %v981 = vrot.slane %v314, 6
    %v982 = vsel %vm967, %v979, %v981
    %v983 = vrot.slane %v315, 6
    %v984 = vsel %vm967, %v981, %v983
    %v985 = vrot.slane %v316, 6
    %v986 = vsel %vm967, %v983, %v985
    %v987 = vrot.slane %v317, 6
    %v988 = vsel %vm967, %v985, %v987
    %v989 = vrot.slane %v318, 6
    %v990 = vsel %vm967, %v987, %v989
    %v991 = vrot.slane %v319, 6
    %v992 = vsel %vm967, %v989, %v991
    %v993 = vrot.slane %v320, 6
    %v994 = vsel %vm967, %v991, %v993
    %v995 = vrot.slane %v321, 6
    %v996 = vsel %vm967, %v993, %v995
    %v997 = vrot.slane %v322, 6
    %v998 = vsel %vm967, %v995, %v997
    %v999 = vrot.slane %v323, 6
    %v1000 = vsel %vm967, %v997, %v999
    %v1001 = vrot.slane %v324, 6
    %v1002 = vsel %vm967, %v999, %v1001
    %v1003 = vrot.slane %v325, 6
    %v1004 = vsel %vm967, %v1001, %v1003
    %v1005 = vrot.slane %v326, 6
    %v1006 = vsel %vm967, %v1003, %v1005
    %v1007 = vrot.slane %v327, 6
    %v1008 = vsel %vm967, %v1005, %v1007
    %v1009 = vrot.slane %v328, 6
    %v1010 = vsel %vm967, %v1007, %v1009
    %v1011 = vrot.slane %v329, 6
    %v1012 = vsel %vm967, %v1009, %v1011
    %v1013 = vrot.slane %v330, 6
    %v1014 = vsel %vm967, %v1011, %v1013
    %v1015 = vrot.slane %v331, 6
    %v1016 = vsel %vm967, %v1013, %v1015
    %1017 = vrot.lane.b32.xlu0 %v970, 18
    %v1018 = vpop.permute.xlu0 %1017
    %1019 = vrot.lane.b32.xlu0 %v972, 18
    %v1020 = vpop.permute.xlu0 %1019
    %1021 = vrot.lane.b32.xlu0 %v974, 18
    %v1022 = vpop.permute.xlu0 %1021
    %1023 = vrot.lane.b32.xlu0 %v976, 18
    %v1024 = vpop.permute.xlu0 %1023
    %1025 = vrot.lane.b32.xlu0 %v978, 18
    %v1026 = vpop.permute.xlu0 %1025
    %1027 = vrot.lane.b32.xlu0 %v980, 18
    %v1028 = vpop.permute.xlu0 %1027
    %1029 = vrot.lane.b32.xlu0 %v982, 18
    %v1030 = vpop.permute.xlu0 %1029
    %1031 = vrot.lane.b32.xlu0 %v984, 18
    %v1032 = vpop.permute.xlu0 %1031
    %1033 = vrot.lane.b32.xlu0 %v986, 18
    %v1034 = vpop.permute.xlu0 %1033
    %1035 = vrot.lane.b32.xlu0 %v988, 18
    %v1036 = vpop.permute.xlu0 %1035
    %1037 = vrot.lane.b32.xlu0 %v990, 18
    %v1038 = vpop.permute.xlu0 %1037
    %1039 = vrot.lane.b32.xlu0 %v992, 18
    %v1040 = vpop.permute.xlu0 %1039
    %1041 = vrot.lane.b32.xlu0 %v994, 18
    %v1042 = vpop.permute.xlu0 %1041
    %1043 = vrot.lane.b32.xlu0 %v996, 18
    %v1044 = vpop.permute.xlu0 %1043
    %1045 = vrot.lane.b32.xlu0 %v998, 18
    %v1046 = vpop.permute.xlu0 %1045
    %1047 = vrot.lane.b32.xlu0 %v1000, 18
    %v1048 = vpop.permute.xlu0 %1047
    %1049 = vrot.lane.b32.xlu0 %v1002, 18
    %v1050 = vpop.permute.xlu0 %1049
    %1051 = vrot.lane.b32.xlu0 %v1004, 18
    %v1052 = vpop.permute.xlu0 %1051
    %1053 = vrot.lane.b32.xlu0 %v1006, 18
    %v1054 = vpop.permute.xlu0 %1053
    %1055 = vrot.lane.b32.xlu0 %v1008, 18
    %v1056 = vpop.permute.xlu0 %1055
    %1057 = vrot.lane.b32.xlu0 %v1010, 18
    %v1058 = vpop.permute.xlu0 %1057
    %1059 = vrot.lane.b32.xlu0 %v1012, 18
    %v1060 = vpop.permute.xlu0 %1059
    %1061 = vrot.lane.b32.xlu0 %v1014, 18
    %v1062 = vpop.permute.xlu0 %1061
    %1063 = vrot.lane.b32.xlu0 %v1016, 18
    %v1064 = vpop.permute.xlu0 %1063
    %vm1089 = vcmask 1040384
    %v1090 = vrot.slane %v307, 7
    %v1091 = vrot.slane %v308, 7
    %v1092 = vsel %vm1089, %v1090, %v1091
    %v1093 = vrot.slane %v309, 7
    %v1094 = vsel %vm1089, %v1091, %v1093
    %v1095 = vrot.slane %v310, 7
    %v1096 = vsel %vm1089, %v1093, %v1095
    %v1097 = vrot.slane %v311, 7
    %v1098 = vsel %vm1089, %v1095, %v1097
    %v1099 = vrot.slane %v312, 7
    %v1100 = vsel %vm1089, %v1097, %v1099
    %v1101 = vrot.slane %v313, 7
    %v1102 = vsel %vm1089, %v1099, %v1101
    %v1103 = vrot.slane %v314, 7
    %v1104 = vsel %vm1089, %v1101, %v1103
    %v1105 = vrot.slane %v315, 7
    %v1106 = vsel %vm1089, %v1103, %v1105
    %v1107 = vrot.slane %v316, 7
    %v1108 = vsel %vm1089, %v1105, %v1107
    %v1109 = vrot.slane %v317, 7
    %v1110 = vsel %vm1089, %v1107, %v1109
    %v1111 = vrot.slane %v318, 7
    %v1112 = vsel %vm1089, %v1109, %v1111
    %v1113 = vrot.slane %v319, 7
    %v1114 = vsel %vm1089, %v1111, %v1113
    %v1115 = vrot.slane %v320, 7
    %v1116 = vsel %vm1089, %v1113, %v1115
    %v1117 = vrot.slane %v321, 7
    %v1118 = vsel %vm1089, %v1115, %v1117
    %v1119 = vrot.slane %v322, 7
    %v1120 = vsel %vm1089, %v1117, %v1119
    %v1121 = vrot.slane %v323, 7
    %v1122 = vsel %vm1089, %v1119, %v1121
    %v1123 = vrot.slane %v324, 7
    %v1124 = vsel %vm1089, %v1121, %v1123
    %v1125 = vrot.slane %v325, 7
    %v1126 = vsel %vm1089, %v1123, %v1125
    %v1127 = vrot.slane %v326, 7
    %v1128 = vsel %vm1089, %v1125, %v1127
    %v1129 = vrot.slane %v327, 7
    %v1130 = vsel %vm1089, %v1127, %v1129
    %v1131 = vrot.slane %v328, 7
    %v1132 = vsel %vm1089, %v1129, %v1131
    %v1133 = vrot.slane %v329, 7
    %v1134 = vsel %vm1089, %v1131, %v1133
    %v1135 = vrot.slane %v330, 7
    %v1136 = vsel %vm1089, %v1133, %v1135
    %v1137 = vrot.slane %v331, 7
    %v1138 = vsel %vm1089, %v1135, %v1137
    %1139 = vrot.lane.b32.xlu0 %v1092, 21
    %v1140 = vpop.permute.xlu0 %1139
    %1141 = vrot.lane.b32.xlu0 %v1094, 21
    %v1142 = vpop.permute.xlu0 %1141
    %1143 = vrot.lane.b32.xlu0 %v1096, 21
    %v1144 = vpop.permute.xlu0 %1143
    %1145 = vrot.lane.b32.xlu0 %v1098, 21
    %v1146 = vpop.permute.xlu0 %1145
    %1147 = vrot.lane.b32.xlu0 %v1100, 21
    %v1148 = vpop.permute.xlu0 %1147
    %1149 = vrot.lane.b32.xlu0 %v1102, 21
    %v1150 = vpop.permute.xlu0 %1149
    %1151 = vrot.lane.b32.xlu0 %v1104, 21
    %v1152 = vpop.permute.xlu0 %1151
    %1153 = vrot.lane.b32.xlu0 %v1106, 21
    %v1154 = vpop.permute.xlu0 %1153
    %1155 = vrot.lane.b32.xlu0 %v1108, 21
    %v1156 = vpop.permute.xlu0 %1155
    %1157 = vrot.lane.b32.xlu0 %v1110, 21
    %v1158 = vpop.permute.xlu0 %1157
    %1159 = vrot.lane.b32.xlu0 %v1112, 21
    %v1160 = vpop.permute.xlu0 %1159
    %1161 = vrot.lane.b32.xlu0 %v1114, 21
    %v1162 = vpop.permute.xlu0 %1161
    %1163 = vrot.lane.b32.xlu0 %v1116, 21
    %v1164 = vpop.permute.xlu0 %1163
    %1165 = vrot.lane.b32.xlu0 %v1118, 21
    %v1166 = vpop.permute.xlu0 %1165
    %1167 = vrot.lane.b32.xlu0 %v1120, 21
    %v1168 = vpop.permute.xlu0 %1167
    %1169 = vrot.lane.b32.xlu0 %v1122, 21
    %v1170 = vpop.permute.xlu0 %1169
    %1171 = vrot.lane.b32.xlu0 %v1124, 21
    %v1172 = vpop.permute.xlu0 %1171
    %1173 = vrot.lane.b32.xlu0 %v1126, 21
    %v1174 = vpop.permute.xlu0 %1173
    %1175 = vrot.lane.b32.xlu0 %v1128, 21
    %v1176 = vpop.permute.xlu0 %1175
    %1177 = vrot.lane.b32.xlu0 %v1130, 21
    %v1178 = vpop.permute.xlu0 %1177
    %1179 = vrot.lane.b32.xlu0 %v1132, 21
    %v1180 = vpop.permute.xlu0 %1179
    %1181 = vrot.lane.b32.xlu0 %v1134, 21
    %v1182 = vpop.permute.xlu0 %1181
    %1183 = vrot.lane.b32.xlu0 %v1136, 21
    %v1184 = vpop.permute.xlu0 %1183
    %1185 = vrot.lane.b32.xlu0 %v1138, 21
    %v1186 = vpop.permute.xlu0 %1185
    %1211 = vrot.lane.b32.xlu0 %v308, 24
    %v1212 = vpop.permute.xlu0 %1211
    %1213 = vrot.lane.b32.xlu0 %v309, 24
    %v1214 = vpop.permute.xlu0 %1213
    %1215 = vrot.lane.b32.xlu0 %v310, 24
    %v1216 = vpop.permute.xlu0 %1215
    %1217 = vrot.lane.b32.xlu0 %v311, 24
    %v1218 = vpop.permute.xlu0 %1217
    %1219 = vrot.lane.b32.xlu0 %v312, 24
    %v1220 = vpop.permute.xlu0 %1219
    %1221 = vrot.lane.b32.xlu0 %v313, 24
    %v1222 = vpop.permute.xlu0 %1221
    %1223 = vrot.lane.b32.xlu0 %v314, 24
    %v1224 = vpop.permute.xlu0 %1223
    %1225 = vrot.lane.b32.xlu0 %v315, 24
    %v1226 = vpop.permute.xlu0 %1225
    %1227 = vrot.lane.b32.xlu0 %v316, 24
    %v1228 = vpop.permute.xlu0 %1227
    %1229 = vrot.lane.b32.xlu0 %v317, 24
    %v1230 = vpop.permute.xlu0 %1229
    %1231 = vrot.lane.b32.xlu0 %v318, 24
    %v1232 = vpop.permute.xlu0 %1231
    %1233 = vrot.lane.b32.xlu0 %v319, 24
    %v1234 = vpop.permute.xlu0 %1233
    %1235 = vrot.lane.b32.xlu0 %v320, 24
    %v1236 = vpop.permute.xlu0 %1235
    %1237 = vrot.lane.b32.xlu0 %v321, 24
    %v1238 = vpop.permute.xlu0 %1237
    %1239 = vrot.lane.b32.xlu0 %v322, 24
    %v1240 = vpop.permute.xlu0 %1239
    %1241 = vrot.lane.b32.xlu0 %v323, 24
    %v1242 = vpop.permute.xlu0 %1241
    %1243 = vrot.lane.b32.xlu0 %v324, 24
    %v1244 = vpop.permute.xlu0 %1243
    %1245 = vrot.lane.b32.xlu0 %v325, 24
    %v1246 = vpop.permute.xlu0 %1245
    %1247 = vrot.lane.b32.xlu0 %v326, 24
    %v1248 = vpop.permute.xlu0 %1247
    %1249 = vrot.lane.b32.xlu0 %v327, 24
    %v1250 = vpop.permute.xlu0 %1249
    %1251 = vrot.lane.b32.xlu0 %v328, 24
    %v1252 = vpop.permute.xlu0 %1251
    %1253 = vrot.lane.b32.xlu0 %v329, 24
    %v1254 = vpop.permute.xlu0 %1253
    %1255 = vrot.lane.b32.xlu0 %v330, 24
    %v1256 = vpop.permute.xlu0 %1255
    %1257 = vrot.lane.b32.xlu0 %v331, 24
    %v1258 = vpop.permute.xlu0 %1257
    %vm1283 = vcmask 23552
    %v1284 = vsel %vm1283, %v307, %v408
    %v1285 = vsel %vm1283, %v308, %v410
    %v1286 = vsel %vm1283, %v309, %v412
    %v1287 = vsel %vm1283, %v310, %v414
    %v1288 = vsel %vm1283, %v311, %v416
    %v1289 = vsel %vm1283, %v312, %v418
    %v1290 = vsel %vm1283, %v313, %v420
    %v1291 = vsel %vm1283, %v314, %v422
    %v1292 = vsel %vm1283, %v315, %v424
    %v1293 = vsel %vm1283, %v316, %v426
    %v1294 = vsel %vm1283, %v317, %v428
    %v1295 = vsel %vm1283, %v318, %v430
    %v1296 = vsel %vm1283, %v319, %v432
    %v1297 = vsel %vm1283, %v320, %v434
    %v1298 = vsel %vm1283, %v321, %v436
    %v1299 = vsel %vm1283, %v322, %v438
    %v1300 = vsel %vm1283, %v323, %v440
    %v1301 = vsel %vm1283, %v324, %v442
    %v1302 = vsel %vm1283, %v325, %v444
    %v1303 = vsel %vm1283, %v326, %v446
    %v1304 = vsel %vm1283, %v327, %v448
    %v1305 = vsel %vm1283, %v328, %v450
    %v1306 = vsel %vm1283, %v329, %v452
    %v1307 = vsel %vm1283, %v330, %v454
    %vm1308 = vcmask 48128
    %v1309 = vsel %vm1308, %v1284, %v530
    %v1310 = vsel %vm1308, %v1285, %v532
    %v1311 = vsel %vm1308, %v1286, %v534
    %v1312 = vsel %vm1308, %v1287, %v536
    %v1313 = vsel %vm1308, %v1288, %v538
    %v1314 = vsel %vm1308, %v1289, %v540
    %v1315 = vsel %vm1308, %v1290, %v542
    %v1316 = vsel %vm1308, %v1291, %v544
    %v1317 = vsel %vm1308, %v1292, %v546
    %v1318 = vsel %vm1308, %v1293, %v548
    %v1319 = vsel %vm1308, %v1294, %v550
    %v1320 = vsel %vm1308, %v1295, %v552
    %v1321 = vsel %vm1308, %v1296, %v554
    %v1322 = vsel %vm1308, %v1297, %v556
    %v1323 = vsel %vm1308, %v1298, %v558
    %v1324 = vsel %vm1308, %v1299, %v560
    %v1325 = vsel %vm1308, %v1300, %v562
    %v1326 = vsel %vm1308, %v1301, %v564
    %v1327 = vsel %vm1308, %v1302, %v566
    %v1328 = vsel %vm1308, %v1303, %v568
    %v1329 = vsel %vm1308, %v1304, %v570
    %v1330 = vsel %vm1308, %v1305, %v572
    %v1331 = vsel %vm1308, %v1306, %v574
    %v1332 = vsel %vm1308, %v1307, %v576
    %vm1333 = vcmask 72704
    %v1334 = vsel %vm1333, %v1309, %v652
    %v1335 = vsel %vm1333, %v1310, %v654
    %v1336 = vsel %vm1333, %v1311, %v656
    %v1337 = vsel %vm1333, %v1312, %v658
    %v1338 = vsel %vm1333, %v1313, %v660
    %v1339 = vsel %vm1333, %v1314, %v662
    %v1340 = vsel %vm1333, %v1315, %v664
    %v1341 = vsel %vm1333, %v1316, %v666
    %v1342 = vsel %vm1333, %v1317, %v668
    %v1343 = vsel %vm1333, %v1318, %v670
    %v1344 = vsel %vm1333, %v1319, %v672
    %v1345 = vsel %vm1333, %v1320, %v674
    %v1346 = vsel %vm1333, %v1321, %v676
    %v1347 = vsel %vm1333, %v1322, %v678
    %v1348 = vsel %vm1333, %v1323, %v680
    %v1349 = vsel %vm1333, %v1324, %v682
    %v1350 = vsel %vm1333, %v1325, %v684
    %v1351 = vsel %vm1333, %v1326, %v686
    %v1352 = vsel %vm1333, %v1327, %v688
    %v1353 = vsel %vm1333, %v1328, %v690
    %v1354 = vsel %vm1333, %v1329, %v692
    %v1355 = vsel %vm1333, %v1330, %v694
    %v1356 = vsel %vm1333, %v1331, %v696
    %v1357 = vsel %vm1333, %v1332, %v698
    %vm1358 = vcmask 97280
    %v1359 = vsel %vm1358, %v1334, %v774
    %v1360 = vsel %vm1358, %v1335, %v776
    %v1361 = vsel %vm1358, %v1336, %v778
    %v1362 = vsel %vm1358, %v1337, %v780
    %v1363 = vsel %vm1358, %v1338, %v782
    %v1364 = vsel %vm1358, %v1339, %v784
    %v1365 = vsel %vm1358, %v1340, %v786
    %v1366 = vsel %vm1358, %v1341, %v788
    %v1367 = vsel %vm1358, %v1342, %v790
    %v1368 = vsel %vm1358, %v1343, %v792
    %v1369 = vsel %vm1358, %v1344, %v794
    %v1370 = vsel %vm1358, %v1345, %v796
    %v1371 = vsel %vm1358, %v1346, %v798
    %v1372 = vsel %vm1358, %v1347, %v800
    %v1373 = vsel %vm1358, %v1348, %v802
    %v1374 = vsel %vm1358, %v1349, %v804
    %v1375 = vsel %vm1358, %v1350, %v806
    %v1376 = vsel %vm1358, %v1351, %v808
    %v1377 = vsel %vm1358, %v1352, %v810
    %v1378 = vsel %vm1358, %v1353, %v812
    %v1379 = vsel %vm1358, %v1354, %v814
    %v1380 = vsel %vm1358, %v1355, %v816
    %v1381 = vsel %vm1358, %v1356, %v818
    %v1382 = vsel %vm1358, %v1357, %v820
    %vm1383 = vcmask 121856
    %v1384 = vsel %vm1383, %v1359, %v896
    %v1385 = vsel %vm1383, %v1360, %v898
    %v1386 = vsel %vm1383, %v1361, %v900
    %v1387 = vsel %vm1383, %v1362, %v902
    %v1388 = vsel %vm1383, %v1363, %v904
    %v1389 = vsel %vm1383, %v1364, %v906
    %v1390 = vsel %vm1383, %v1365, %v908
    %v1391 = vsel %vm1383, %v1366, %v910
    %v1392 = vsel %vm1383, %v1367, %v912
    %v1393 = vsel %vm1383, %v1368, %v914
    %v1394 = vsel %vm1383, %v1369, %v916
    %v1395 = vsel %vm1383, %v1370, %v918
    %v1396 = vsel %vm1383, %v1371, %v920
    %v1397 = vsel %vm1383, %v1372, %v922
    %v1398 = vsel %vm1383, %v1373, %v924
    %v1399 = vsel %vm1383, %v1374, %v926
    %v1400 = vsel %vm1383, %v1375, %v928
    %v1401 = vsel %vm1383, %v1376, %v930
    %v1402 = vsel %vm1383, %v1377, %v932
    %v1403 = vsel %vm1383, %v1378, %v934
    %v1404 = vsel %vm1383, %v1379, %v936
    %v1405 = vsel %vm1383, %v1380, %v938
    %v1406 = vsel %vm1383, %v1381, %v940
    %v1407 = vsel %vm1383, %v1382, %v942
    %vm1408 = vcmask 146432
    %v1409 = vsel %vm1408, %v1384, %v1018
    %v1410 = vsel %vm1408, %v1385, %v1020
    %v1411 = vsel %vm1408, %v1386, %v1022
    %v1412 = vsel %vm1408, %v1387, %v1024
    %v1413 = vsel %vm1408, %v1388, %v1026
    %v1414 = vsel %vm1408, %v1389, %v1028
    %v1415 = vsel %vm1408, %v1390, %v1030
    %v1416 = vsel %vm1408, %v1391, %v1032
    %v1417 = vsel %vm1408, %v1392, %v1034
    %v1418 = vsel %vm1408, %v1393, %v1036
    %v1419 = vsel %vm1408, %v1394, %v1038
    %v1420 = vsel %vm1408, %v1395, %v1040
    %v1421 = vsel %vm1408, %v1396, %v1042
    %v1422 = vsel %vm1408, %v1397, %v1044
    %v1423 = vsel %vm1408, %v1398, %v1046
    %v1424 = vsel %vm1408, %v1399, %v1048
    %v1425 = vsel %vm1408, %v1400, %v1050
    %v1426 = vsel %vm1408, %v1401, %v1052
    %v1427 = vsel %vm1408, %v1402, %v1054
    %v1428 = vsel %vm1408, %v1403, %v1056
    %v1429 = vsel %vm1408, %v1404, %v1058
    %v1430 = vsel %vm1408, %v1405, %v1060
    %v1431 = vsel %vm1408, %v1406, %v1062
    %v1432 = vsel %vm1408, %v1407, %v1064
    %vm1433 = vcmask 171008
    %v1434 = vsel %vm1433, %v1409, %v1140
    %v1435 = vsel %vm1433, %v1410, %v1142
    %v1436 = vsel %vm1433, %v1411, %v1144
    %v1437 = vsel %vm1433, %v1412, %v1146
    %v1438 = vsel %vm1433, %v1413, %v1148
    %v1439 = vsel %vm1433, %v1414, %v1150
    %v1440 = vsel %vm1433, %v1415, %v1152
    %v1441 = vsel %vm1433, %v1416, %v1154
    %v1442 = vsel %vm1433, %v1417, %v1156
    %v1443 = vsel %vm1433, %v1418, %v1158
    %v1444 = vsel %vm1433, %v1419, %v1160
    %v1445 = vsel %vm1433, %v1420, %v1162
    %v1446 = vsel %vm1433, %v1421, %v1164
    %v1447 = vsel %vm1433, %v1422, %v1166
    %v1448 = vsel %vm1433, %v1423, %v1168
    %v1449 = vsel %vm1433, %v1424, %v1170
    %v1450 = vsel %vm1433, %v1425, %v1172
    %v1451 = vsel %vm1433, %v1426, %v1174
    %v1452 = vsel %vm1433, %v1427, %v1176
    %v1453 = vsel %vm1433, %v1428, %v1178
    %v1454 = vsel %vm1433, %v1429, %v1180
    %v1455 = vsel %vm1433, %v1430, %v1182
    %v1456 = vsel %vm1433, %v1431, %v1184
    %v1457 = vsel %vm1433, %v1432, %v1186
    %vm1458 = vcmask 195584
    %v1459 = vsel %vm1458, %v1434, %v1212
    %v1460 = vsel %vm1458, %v1435, %v1214
    %v1461 = vsel %vm1458, %v1436, %v1216
    %v1462 = vsel %vm1458, %v1437, %v1218
    %v1463 = vsel %vm1458, %v1438, %v1220
    %v1464 = vsel %vm1458, %v1439, %v1222
    %v1465 = vsel %vm1458, %v1440, %v1224
    %v1466 = vsel %vm1458, %v1441, %v1226
    %v1467 = vsel %vm1458, %v1442, %v1228
    %v1468 = vsel %vm1458, %v1443, %v1230
    %v1469 = vsel %vm1458, %v1444, %v1232
    %v1470 = vsel %vm1458, %v1445, %v1234
    %v1471 = vsel %vm1458, %v1446, %v1236
    %v1472 = vsel %vm1458, %v1447, %v1238
    %v1473 = vsel %vm1458, %v1448, %v1240
    %v1474 = vsel %vm1458, %v1449, %v1242
    %v1475 = vsel %vm1458, %v1450, %v1244
    %v1476 = vsel %vm1458, %v1451, %v1246
    %v1477 = vsel %vm1458, %v1452, %v1248
    %v1478 = vsel %vm1458, %v1453, %v1250
    %v1479 = vsel %vm1458, %v1454, %v1252
    %v1480 = vsel %vm1458, %v1455, %v1254
    %v1481 = vsel %vm1458, %v1456, %v1256
    %v1482 = vsel %vm1458, %v1457, %v1258
    %v1483 = vpack.c.bf16 %v1460, %v1459
    %v1484 = vpack.c.bf16 %v1462, %v1461
    %v1485 = vpack.c.bf16 %v1464, %v1463
    %v1486 = vpack.c.bf16 %v1466, %v1465
    %v1487 = vpack.c.bf16 %v1468, %v1467
    %v1488 = vpack.c.bf16 %v1470, %v1469
    %v1489 = vpack.c.bf16 %v1472, %v1471
    %v1490 = vpack.c.bf16 %v1474, %v1473
    %v1491 = vpack.c.bf16 %v1476, %v1475
    %v1492 = vpack.c.bf16 %v1478, %v1477
    %v1493 = vpack.c.bf16 %v1480, %v1479
    %v1494 = vpack.c.bf16 %v1482, %v1481
    %v1496 = vlaneseq
    %v1497 = vshrl.u32 %v1496, 7
    %v1498 = vsub.s32 0, %v1497
    %v1499 = vrot.slane %v304, %v1498
    %v1505 = vunpack.c.l.b16 %v84
    %v1506 = vunpack.c.l.b16 %v85
    %v1507 = vunpack.c.l.b16 %v86
    %v1508 = vunpack.c.l.b16 %v87
    %v1509 = vpack.c.b16 %v1506, %v1505
    %v1510 = vpack.c.b16 %v1508, %v1507
    %vm1512 = vcmask 220160
    %v1514 = vsel %vm1512, %v1483, 0
    %v1517 = vsel %vm1512, %v1484, 0
    %v1520 = vsel %vm1512, %v1485, 0
    %v1523 = vsel %vm1512, %v1486, 0
    %v1526 = vsel %vm1512, %v1487, 0
    %v1529 = vsel %vm1512, %v1488, 0
    %v1532 = vsel %vm1512, %v1489, 0
    %v1535 = vsel %vm1512, %v1490, 0
    %v1538 = vsel %vm1512, %v1491, 0
    %v1541 = vsel %vm1512, %v1492, 0
    %v1544 = vsel %vm1512, %v1493, 0
    %v1547 = vsel %vm1512, %v1494, 0
    %v1549 = vsel %vm601, 4294967295, 65535
    %v1550 = vsel %vm479, %v1549, 0
    %v1552 = vand.u32 %v1510, %v1550
    %1554 = vmatprep.subr.bf16.mxu0 0
    %1555 = vmatpush1.bf16.msra.mxu0 %v1509
    %1556 = vmatprep.subr.bf16.mxu0 0
    %1557 = vmatpush1.bf16.msra.mxu0 %v1552
    %1558 = vmatprep.subr.bf16.mxu0 0
    %1559 = vmatpush1.bf16.msra.mxu0 0
    %1560 = vmatprep.subr.bf16.mxu0 0
    %1561 = vmatpush1.bf16.msra.mxu0 0
    %1562 = vmatprep.subr.bf16.mxu0 0
    %1563 = vmatpush1.bf16.msra.mxu0 0
    %1564 = vmatprep.subr.bf16.mxu0 0
    %1565 = vmatpush1.bf16.msra.mxu0 0
    %1566 = vmatprep.subr.bf16.mxu0 0
    %1567 = vmatpush1.bf16.msra.mxu0 0
    %1568 = vmatprep.subr.bf16.mxu0 0
    %1569 = vmatpush1.bf16.msra.mxu0 0
    %1570 = vmatprep.subr.bf16.mxu0 0
    %1571 = vmatpush1.bf16.msra.mxu0 0
    %1572 = vmatprep.subr.bf16.mxu0 0
    %1573 = vmatpush1.bf16.msra.mxu0 0
    %1574 = vmatprep.subr.bf16.mxu0 0
    %1575 = vmatpush1.bf16.msra.mxu0 0
    %1576 = vmatprep.subr.bf16.mxu0 0
    %1577 = vmatpush1.bf16.msra.mxu0 0
    %1578 = vmatprep.subr.bf16.mxu0 0
    %1579 = vmatpush1.bf16.msra.mxu0 0
    %1580 = vmatprep.subr.bf16.mxu0 0
    %1581 = vmatpush1.bf16.msra.mxu0 0
    %1582 = vmatprep.subr.bf16.mxu0 0
    %1583 = vmatpush1.bf16.msra.mxu0 0
    %1584 = vmatprep.subr.bf16.mxu0 0
    %1585 = vmatpush1.bf16.msra.mxu0 0
    %1586 = vmatprep.mubr.bf16.mxu0 0
    %1587 = vmatmul.mubr.bf16.gmra.mrb[0].mxu0 %v1514
    %v1588 = vpop.f32.mrb[0].mxu0
    %v1589 = vadd.f32 %v1499, %v1588
    %v1590 = vpop.f32.mrb[0].mxu0
    %v1591 = vpop.f32.mrb[0].mxu0
    %v1592 = vadd.f32 %v1499, %v1591
    %v1593 = vpop.f32.mrb[0].mxu0
    %1594 = vmatprep.mubr.bf16.mxu0 0
    %1595 = vmatmul.mubr.bf16.gmra.mrb[0].mxu0 %v1517
    %v1596 = vpop.f32.mrb[0].mxu0
    %v1597 = vadd.f32 %v1499, %v1596
    %v1598 = vpop.f32.mrb[0].mxu0
    %v1599 = vpop.f32.mrb[0].mxu0
    %v1600 = vadd.f32 %v1499, %v1599
    %v1601 = vpop.f32.mrb[0].mxu0
    %1602 = vmatprep.mubr.bf16.mxu0 0
    %1603 = vmatmul.mubr.bf16.gmra.mrb[0].mxu0 %v1520
    %v1604 = vpop.f32.mrb[0].mxu0
    %v1605 = vadd.f32 %v1499, %v1604
    %v1606 = vpop.f32.mrb[0].mxu0
    %v1607 = vpop.f32.mrb[0].mxu0
    %v1608 = vadd.f32 %v1499, %v1607
    %v1609 = vpop.f32.mrb[0].mxu0
    %1610 = vmatprep.mubr.bf16.mxu0 0
    %1611 = vmatmul.mubr.bf16.gmra.mrb[0].mxu0 %v1523
    %v1612 = vpop.f32.mrb[0].mxu0
    %v1613 = vadd.f32 %v1499, %v1612
    %v1614 = vpop.f32.mrb[0].mxu0
    %v1615 = vpop.f32.mrb[0].mxu0
    %v1616 = vadd.f32 %v1499, %v1615
    %v1617 = vpop.f32.mrb[0].mxu0
    %1618 = vmatprep.mubr.bf16.mxu0 0
    %1619 = vmatmul.mubr.bf16.gmra.mrb[0].mxu0 %v1526
    %v1620 = vpop.f32.mrb[0].mxu0
    %v1621 = vadd.f32 %v1499, %v1620
    %v1622 = vpop.f32.mrb[0].mxu0
    %v1623 = vpop.f32.mrb[0].mxu0
    %v1624 = vadd.f32 %v1499, %v1623
    %v1625 = vpop.f32.mrb[0].mxu0
    %1626 = vmatprep.mubr.bf16.mxu0 0
    %1627 = vmatmul.mubr.bf16.gmra.mrb[0].mxu0 %v1529
    %v1628 = vpop.f32.mrb[0].mxu0
    %v1629 = vadd.f32 %v1499, %v1628
    %v1630 = vpop.f32.mrb[0].mxu0
    %v1631 = vpop.f32.mrb[0].mxu0
    %v1632 = vadd.f32 %v1499, %v1631
    %v1633 = vpop.f32.mrb[0].mxu0
    %1634 = vmatprep.mubr.bf16.mxu0 0
    %1635 = vmatmul.mubr.bf16.gmra.mrb[0].mxu0 %v1532
    %v1636 = vpop.f32.mrb[0].mxu0
    %v1637 = vadd.f32 %v1499, %v1636
    %v1638 = vpop.f32.mrb[0].mxu0
    %v1639 = vpop.f32.mrb[0].mxu0
    %v1640 = vadd.f32 %v1499, %v1639
    %v1641 = vpop.f32.mrb[0].mxu0
    %1642 = vmatprep.mubr.bf16.mxu0 0
    %1643 = vmatmul.mubr.bf16.gmra.mrb[0].mxu0 %v1535
    %v1644 = vpop.f32.mrb[0].mxu0
    %v1645 = vadd.f32 %v1499, %v1644
    %v1646 = vpop.f32.mrb[0].mxu0
    %v1647 = vpop.f32.mrb[0].mxu0
    %v1648 = vadd.f32 %v1499, %v1647
    %v1649 = vpop.f32.mrb[0].mxu0
    %1650 = vmatprep.mubr.bf16.mxu0 0
    %1651 = vmatmul.mubr.bf16.gmra.mrb[0].mxu0 %v1538
    %v1652 = vpop.f32.mrb[0].mxu0
    %v1653 = vadd.f32 %v1499, %v1652
    %v1654 = vpop.f32.mrb[0].mxu0
    %v1655 = vpop.f32.mrb[0].mxu0
    %v1656 = vadd.f32 %v1499, %v1655
    %v1657 = vpop.f32.mrb[0].mxu0
    %1658 = vmatprep.mubr.bf16.mxu0 0
    %1659 = vmatmul.mubr.bf16.gmra.mrb[0].mxu0 %v1541
    %v1660 = vpop.f32.mrb[0].mxu0
    %v1661 = vadd.f32 %v1499, %v1660
    %v1662 = vpop.f32.mrb[0].mxu0
    %v1663 = vpop.f32.mrb[0].mxu0
    %v1664 = vadd.f32 %v1499, %v1663
    %v1665 = vpop.f32.mrb[0].mxu0
    %1666 = vmatprep.mubr.bf16.mxu0 0
    %1667 = vmatmul.mubr.bf16.gmra.mrb[0].mxu0 %v1544
    %v1668 = vpop.f32.mrb[0].mxu0
    %v1669 = vadd.f32 %v1499, %v1668
    %v1670 = vpop.f32.mrb[0].mxu0
    %v1671 = vpop.f32.mrb[0].mxu0
    %v1672 = vadd.f32 %v1499, %v1671
    %v1673 = vpop.f32.mrb[0].mxu0
    %1674 = vmatprep.mubr.bf16.mxu0 0
    %1675 = vmatmul.mubr.bf16.gmra.mrb[0].mxu0 %v1547
    %v1676 = vpop.f32.mrb[0].mxu0
    %v1677 = vadd.f32 %v1499, %v1676
    %v1678 = vpop.f32.mrb[0].mxu0
    %v1679 = vpop.f32.mrb[0].mxu0
    %v1680 = vadd.f32 %v1499, %v1679
    %v1681 = vpop.f32.mrb[0].mxu0
    %1682 = vdwg.mxu0
    %v1683 = vmax.f32 %v1589, 0.0
    %v1684 = vmax.f32 %v1592, 0.0
    %v1685 = vmax.f32 %v1597, 0.0
    %v1686 = vmax.f32 %v1600, 0.0
    %v1687 = vmax.f32 %v1605, 0.0
    %v1688 = vmax.f32 %v1608, 0.0
    %v1689 = vmax.f32 %v1613, 0.0
    %v1690 = vmax.f32 %v1616, 0.0
    %v1691 = vmax.f32 %v1621, 0.0
    %v1692 = vmax.f32 %v1624, 0.0
    %v1693 = vmax.f32 %v1629, 0.0
    %v1694 = vmax.f32 %v1632, 0.0
    %v1695 = vmax.f32 %v1637, 0.0
    %v1696 = vmax.f32 %v1640, 0.0
    %v1697 = vmax.f32 %v1645, 0.0
    %v1698 = vmax.f32 %v1648, 0.0
    %v1699 = vmax.f32 %v1653, 0.0
    %v1700 = vmax.f32 %v1656, 0.0
    %v1701 = vmax.f32 %v1661, 0.0
    %v1702 = vmax.f32 %v1664, 0.0
    %v1703 = vmax.f32 %v1669, 0.0
    %v1704 = vmax.f32 %v1672, 0.0
    %v1705 = vmax.f32 %v1677, 0.0
    %v1706 = vmax.f32 %v1680, 0.0
    %v1731 = vrot.slane %v1683, 1
    %v1732 = vrot.slane %v1684, 1
    %v1733 = vsel %vm357, %v1731, %v1732
    %v1734 = vrot.slane %v1685, 1
    %v1735 = vsel %vm357, %v1732, %v1734
    %v1736 = vrot.slane %v1686, 1
    %v1737 = vsel %vm357, %v1734, %v1736
    %v1738 = vrot.slane %v1687, 1
    %v1739 = vsel %vm357, %v1736, %v1738
    %v1740 = vrot.slane %v1688, 1
    %v1741 = vsel %vm357, %v1738, %v1740
    %v1742 = vrot.slane %v1689, 1
    %v1743 = vsel %vm357, %v1740, %v1742
    %v1744 = vrot.slane %v1690, 1
    %v1745 = vsel %vm357, %v1742, %v1744
    %v1746 = vrot.slane %v1691, 1
    %v1747 = vsel %vm357, %v1744, %v1746
    %v1748 = vrot.slane %v1692, 1
    %v1749 = vsel %vm357, %v1746, %v1748
    %v1750 = vrot.slane %v1693, 1
    %v1751 = vsel %vm357, %v1748, %v1750
    %v1752 = vrot.slane %v1694, 1
    %v1753 = vsel %vm357, %v1750, %v1752
    %v1754 = vrot.slane %v1695, 1
    %v1755 = vsel %vm357, %v1752, %v1754
    %v1756 = vrot.slane %v1696, 1
    %v1757 = vsel %vm357, %v1754, %v1756
    %v1758 = vrot.slane %v1697, 1
    %v1759 = vsel %vm357, %v1756, %v1758
    %v1760 = vrot.slane %v1698, 1
    %v1761 = vsel %vm357, %v1758, %v1760
    %v1762 = vrot.slane %v1699, 1
    %v1763 = vsel %vm357, %v1760, %v1762
    %v1764 = vrot.slane %v1700, 1
    %v1765 = vsel %vm357, %v1762, %v1764
    %v1766 = vrot.slane %v1701, 1
    %v1767 = vsel %vm357, %v1764, %v1766
    %v1768 = vrot.slane %v1702, 1
    %v1769 = vsel %vm357, %v1766, %v1768
    %v1770 = vrot.slane %v1703, 1
    %v1771 = vsel %vm357, %v1768, %v1770
    %v1772 = vrot.slane %v1704, 1
    %v1773 = vsel %vm357, %v1770, %v1772
    %v1774 = vrot.slane %v1705, 1
    %v1775 = vsel %vm357, %v1772, %v1774
    %v1776 = vrot.slane %v1706, 1
    %v1777 = vsel %vm357, %v1774, %v1776
    %v1802 = vmax.f32 %v1683, %v1733
    %v1803 = vmax.f32 %v1684, %v1735
    %v1804 = vmax.f32 %v1685, %v1737
    %v1805 = vmax.f32 %v1686, %v1739
    %v1806 = vmax.f32 %v1687, %v1741
    %v1807 = vmax.f32 %v1688, %v1743
    %v1808 = vmax.f32 %v1689, %v1745
    %v1809 = vmax.f32 %v1690, %v1747
    %v1810 = vmax.f32 %v1691, %v1749
    %v1811 = vmax.f32 %v1692, %v1751
    %v1812 = vmax.f32 %v1693, %v1753
    %v1813 = vmax.f32 %v1694, %v1755
    %v1814 = vmax.f32 %v1695, %v1757
    %v1815 = vmax.f32 %v1696, %v1759
    %v1816 = vmax.f32 %v1697, %v1761
    %v1817 = vmax.f32 %v1698, %v1763
    %v1818 = vmax.f32 %v1699, %v1765
    %v1819 = vmax.f32 %v1700, %v1767
    %v1820 = vmax.f32 %v1701, %v1769
    %v1821 = vmax.f32 %v1702, %v1771
    %v1822 = vmax.f32 %v1703, %v1773
    %v1823 = vmax.f32 %v1704, %v1775
    %v1824 = vmax.f32 %v1705, %v1777
    %v1825 = vmax.f32 %v1706, %v1776
    %v1826 = vrot.slane %v1683, 2
    %v1827 = vrot.slane %v1684, 2
    %v1828 = vsel %vm479, %v1826, %v1827
    %v1829 = vrot.slane %v1685, 2
    %v1830 = vsel %vm479, %v1827, %v1829
    %v1831 = vrot.slane %v1686, 2
    %v1832 = vsel %vm479, %v1829, %v1831
    %v1833 = vrot.slane %v1687, 2
    %v1834 = vsel %vm479, %v1831, %v1833
    %v1835 = vrot.slane %v1688, 2
    %v1836 = vsel %vm479, %v1833, %v1835
    %v1837 = vrot.slane %v1689, 2
    %v1838 = vsel %vm479, %v1835, %v1837
    %v1839 = vrot.slane %v1690, 2
    %v1840 = vsel %vm479, %v1837, %v1839
    %v1841 = vrot.slane %v1691, 2
    %v1842 = vsel %vm479, %v1839, %v1841
    %v1843 = vrot.slane %v1692, 2
    %v1844 = vsel %vm479, %v1841, %v1843
    %v1845 = vrot.slane %v1693, 2
    %v1846 = vsel %vm479, %v1843, %v1845
    %v1847 = vrot.slane %v1694, 2
    %v1848 = vsel %vm479, %v1845, %v1847
    %v1849 = vrot.slane %v1695, 2
    %v1850 = vsel %vm479, %v1847, %v1849
    %v1851 = vrot.slane %v1696, 2
    %v1852 = vsel %vm479, %v1849, %v1851
    %v1853 = vrot.slane %v1697, 2
    %v1854 = vsel %vm479, %v1851, %v1853
    %v1855 = vrot.slane %v1698, 2
    %v1856 = vsel %vm479, %v1853, %v1855
    %v1857 = vrot.slane %v1699, 2
    %v1858 = vsel %vm479, %v1855, %v1857
    %v1859 = vrot.slane %v1700, 2
    %v1860 = vsel %vm479, %v1857, %v1859
    %v1861 = vrot.slane %v1701, 2
    %v1862 = vsel %vm479, %v1859, %v1861
    %v1863 = vrot.slane %v1702, 2
    %v1864 = vsel %vm479, %v1861, %v1863
    %v1865 = vrot.slane %v1703, 2
    %v1866 = vsel %vm479, %v1863, %v1865
    %v1867 = vrot.slane %v1704, 2
    %v1868 = vsel %vm479, %v1865, %v1867
    %v1869 = vrot.slane %v1705, 2
    %v1870 = vsel %vm479, %v1867, %v1869
    %v1871 = vrot.slane %v1706, 2
    %v1872 = vsel %vm479, %v1869, %v1871
    %v1897 = vmax.f32 %v1802, %v1828
    %v1898 = vmax.f32 %v1803, %v1830
    %v1899 = vmax.f32 %v1804, %v1832
    %v1900 = vmax.f32 %v1805, %v1834
    %v1901 = vmax.f32 %v1806, %v1836
    %v1902 = vmax.f32 %v1807, %v1838
    %v1903 = vmax.f32 %v1808, %v1840
    %v1904 = vmax.f32 %v1809, %v1842
    %v1905 = vmax.f32 %v1810, %v1844
    %v1906 = vmax.f32 %v1811, %v1846
    %v1907 = vmax.f32 %v1812, %v1848
    %v1908 = vmax.f32 %v1813, %v1850
    %v1909 = vmax.f32 %v1814, %v1852
    %v1910 = vmax.f32 %v1815, %v1854
    %v1911 = vmax.f32 %v1816, %v1856
    %v1912 = vmax.f32 %v1817, %v1858
    %v1913 = vmax.f32 %v1818, %v1860
    %v1914 = vmax.f32 %v1819, %v1862
    %v1915 = vmax.f32 %v1820, %v1864
    %v1916 = vmax.f32 %v1821, %v1866
    %v1917 = vmax.f32 %v1822, %v1868
    %v1918 = vmax.f32 %v1823, %v1870
    %v1919 = vmax.f32 %v1824, %v1872
    %v1920 = vmax.f32 %v1825, %v1871
    %v1921 = vrot.slane %v1683, 3
    %v1922 = vrot.slane %v1684, 3
    %v1923 = vsel %vm601, %v1921, %v1922
    %v1924 = vrot.slane %v1685, 3
    %v1925 = vsel %vm601, %v1922, %v1924
    %v1926 = vrot.slane %v1686, 3
    %v1927 = vsel %vm601, %v1924, %v1926
    %v1928 = vrot.slane %v1687, 3
    %v1929 = vsel %vm601, %v1926, %v1928
    %v1930 = vrot.slane %v1688, 3
    %v1931 = vsel %vm601, %v1928, %v1930
    %v1932 = vrot.slane %v1689, 3
    %v1933 = vsel %vm601, %v1930, %v1932
    %v1934 = vrot.slane %v1690, 3
    %v1935 = vsel %vm601, %v1932, %v1934
    %v1936 = vrot.slane %v1691, 3
    %v1937 = vsel %vm601, %v1934, %v1936
    %v1938 = vrot.slane %v1692, 3
    %v1939 = vsel %vm601, %v1936, %v1938
    %v1940 = vrot.slane %v1693, 3
    %v1941 = vsel %vm601, %v1938, %v1940
    %v1942 = vrot.slane %v1694, 3
    %v1943 = vsel %vm601, %v1940, %v1942
    %v1944 = vrot.slane %v1695, 3
    %v1945 = vsel %vm601, %v1942, %v1944
    %v1946 = vrot.slane %v1696, 3
    %v1947 = vsel %vm601, %v1944, %v1946
    %v1948 = vrot.slane %v1697, 3
    %v1949 = vsel %vm601, %v1946, %v1948
    %v1950 = vrot.slane %v1698, 3
    %v1951 = vsel %vm601, %v1948, %v1950
    %v1952 = vrot.slane %v1699, 3
    %v1953 = vsel %vm601, %v1950, %v1952
    %v1954 = vrot.slane %v1700, 3
    %v1955 = vsel %vm601, %v1952, %v1954
    %v1956 = vrot.slane %v1701, 3
    %v1957 = vsel %vm601, %v1954, %v1956
    %v1958 = vrot.slane %v1702, 3
    %v1959 = vsel %vm601, %v1956, %v1958
    %v1960 = vrot.slane %v1703, 3
    %v1961 = vsel %vm601, %v1958, %v1960
    %v1962 = vrot.slane %v1704, 3
    %v1963 = vsel %vm601, %v1960, %v1962
    %v1964 = vrot.slane %v1705, 3
    %v1965 = vsel %vm601, %v1962, %v1964
    %v1966 = vrot.slane %v1706, 3
    %v1967 = vsel %vm601, %v1964, %v1966
    %v1992 = vmax.f32 %v1897, %v1923
    %v1993 = vmax.f32 %v1898, %v1925
    %v1994 = vmax.f32 %v1899, %v1927
    %v1995 = vmax.f32 %v1900, %v1929
    %v1996 = vmax.f32 %v1901, %v1931
    %v1997 = vmax.f32 %v1902, %v1933
    %v1998 = vmax.f32 %v1903, %v1935
    %v1999 = vmax.f32 %v1904, %v1937
    %v2000 = vmax.f32 %v1905, %v1939
    %v2001 = vmax.f32 %v1906, %v1941
    %v2002 = vmax.f32 %v1907, %v1943
    %v2003 = vmax.f32 %v1908, %v1945
    %v2004 = vmax.f32 %v1909, %v1947
    %v2005 = vmax.f32 %v1910, %v1949
    %v2006 = vmax.f32 %v1911, %v1951
    %v2007 = vmax.f32 %v1912, %v1953
    %v2008 = vmax.f32 %v1913, %v1955
    %v2009 = vmax.f32 %v1914, %v1957
    %v2010 = vmax.f32 %v1915, %v1959
    %v2011 = vmax.f32 %v1916, %v1961
    %v2012 = vmax.f32 %v1917, %v1963
    %v2013 = vmax.f32 %v1918, %v1965
    %v2014 = vmax.f32 %v1919, %v1967
    %v2015 = vmax.f32 %v1920, %v1966
    %vm2016 = vcmask 523264
    %2017 = vst.msk [vmem:[#allocation2] sm:$0xff] %vm2016, %v1992
    %2018 = vst.msk [vmem:[#allocation2 + $0x8] sm:$0xff] %vm2016, %v1993
    %2019 = vst.msk [vmem:[#allocation2 + $0x10] sm:$0xff] %vm2016, %v1994
    %2020 = vst.msk [vmem:[#allocation2 + $0x18] sm:$0xff] %vm2016, %v1995
    %2021 = vst.msk [vmem:[#allocation2 + $0x20] sm:$0xff] %vm2016, %v1996
    %2022 = vst.msk [vmem:[#allocation2 + $0x28] sm:$0xff] %vm2016, %v1997
    %2023 = vst.msk [vmem:[#allocation2 + $0x30] sm:$0xff] %vm2016, %v1998
    %2024 = vst.msk [vmem:[#allocation2 + $0x38] sm:$0xff] %vm2016, %v1999
    %2025 = vst.msk [vmem:[#allocation2 + $0x40] sm:$0xff] %vm2016, %v2000
    %2026 = vst.msk [vmem:[#allocation2 + $0x48] sm:$0xff] %vm2016, %v2001
    %2027 = vst.msk [vmem:[#allocation2 + $0x50] sm:$0xff] %vm2016, %v2002
    %2028 = vst.msk [vmem:[#allocation2 + $0x58] sm:$0xff] %vm2016, %v2003
    %2029 = vst.msk [vmem:[#allocation2 + $0x60] sm:$0xff] %vm2016, %v2004
    %2030 = vst.msk [vmem:[#allocation2 + $0x68] sm:$0xff] %vm2016, %v2005
    %2031 = vst.msk [vmem:[#allocation2 + $0x70] sm:$0xff] %vm2016, %v2006
    %2032 = vst.msk [vmem:[#allocation2 + $0x78] sm:$0xff] %vm2016, %v2007
    %2033 = vst.msk [vmem:[#allocation2 + $0x80] sm:$0xff] %vm2016, %v2008
    %2034 = vst.msk [vmem:[#allocation2 + $0x88] sm:$0xff] %vm2016, %v2009
    %2035 = vst.msk [vmem:[#allocation2 + $0x90] sm:$0xff] %vm2016, %v2010
    %2036 = vst.msk [vmem:[#allocation2 + $0x98] sm:$0xff] %vm2016, %v2011
    %2037 = vst.msk [vmem:[#allocation2 + $0xa0] sm:$0xff] %vm2016, %v2012
    %2038 = vst.msk [vmem:[#allocation2 + $0xa8] sm:$0xff] %vm2016, %v2013
    %2039 = vst.msk [vmem:[#allocation2 + $0xb0] sm:$0xff] %vm2016, %v2014
    %vm2040 = vcmask 520192
    %2041 = vst.msk [vmem:[#allocation2 + $0xb8] sm:$0x1f] %vm2040, %v2015
    %v2042 = vld [vmem:[#allocation2] ss:$4 sm:$0xff]
    %s2043 = scalar_lea.vmem [#allocation2], 32
    %v2044 = vld [vmem:[%s2043] ss:$4 sm:$0xff]
    %s2045 = scalar_lea.vmem [#allocation2], 64
    %v2046 = vld [vmem:[%s2045] ss:$4 sm:$0xff]
    %s2047 = scalar_lea.vmem [#allocation2], 96
    %v2048 = vld [vmem:[%s2047] ss:$4 sm:$0xff]
    %s2049 = scalar_lea.vmem [#allocation2], 128
    %v2050 = vld [vmem:[%s2049] ss:$4 sm:$0xff]
    %s2051 = scalar_lea.vmem [#allocation2], 160
    %v2052 = vld [vmem:[%s2051] ss:$4 sm:$0xff]
    %v2059 = vrot.slane %v2042, 1
    %v2060 = vrot.slane %v2044, 1
    %v2061 = vsel %vm357, %v2059, %v2060
    %v2062 = vrot.slane %v2046, 1
    %v2063 = vsel %vm357, %v2060, %v2062
    %v2064 = vrot.slane %v2048, 1
    %v2065 = vsel %vm357, %v2062, %v2064
    %v2066 = vrot.slane %v2050, 1
    %v2067 = vsel %vm357, %v2064, %v2066
    %v2068 = vrot.slane %v2052, 1
    %v2069 = vsel %vm357, %v2066, %v2068
    %2070 = vrot.lane.b32.xlu0 %v2061, 64
    %v2071 = vpop.permute.xlu0 %2070
    %2072 = vrot.lane.b32.xlu0 %v2063, 64
    %v2073 = vpop.permute.xlu0 %2072
    %2074 = vrot.lane.b32.xlu0 %v2065, 64
    %v2075 = vpop.permute.xlu0 %2074
    %2076 = vrot.lane.b32.xlu0 %v2067, 64
    %v2077 = vpop.permute.xlu0 %2076
    %2078 = vrot.lane.b32.xlu0 %v2069, 64
    %v2079 = vpop.permute.xlu0 %2078
    %v2085 = vrot.slane %v2042, 2
    %v2086 = vrot.slane %v2044, 2
    %v2087 = vsel %vm479, %v2085, %v2086
    %v2088 = vrot.slane %v2046, 2
    %v2089 = vsel %vm479, %v2086, %v2088
    %v2090 = vrot.slane %v2048, 2
    %v2091 = vsel %vm479, %v2088, %v2090
    %v2092 = vrot.slane %v2050, 2
    %v2093 = vsel %vm479, %v2090, %v2092
    %v2094 = vrot.slane %v2052, 2
    %v2095 = vsel %vm479, %v2092, %v2094
    %v2101 = vrot.slane %v2042, 3
    %v2102 = vrot.slane %v2044, 3
    %v2103 = vsel %vm601, %v2101, %v2102
    %v2104 = vrot.slane %v2046, 3
    %v2105 = vsel %vm601, %v2102, %v2104
    %v2106 = vrot.slane %v2048, 3
    %v2107 = vsel %vm601, %v2104, %v2106
    %v2108 = vrot.slane %v2050, 3
    %v2109 = vsel %vm601, %v2106, %v2108
    %v2110 = vrot.slane %v2052, 3
    %v2111 = vsel %vm601, %v2108, %v2110
    %2112 = vrot.lane.b32.xlu0 %v2103, 64
    %v2113 = vpop.permute.xlu0 %2112
    %2114 = vrot.lane.b32.xlu0 %v2105, 64
    %v2115 = vpop.permute.xlu0 %2114
    %2116 = vrot.lane.b32.xlu0 %v2107, 64
    %v2117 = vpop.permute.xlu0 %2116
    %2118 = vrot.lane.b32.xlu0 %v2109, 64
    %v2119 = vpop.permute.xlu0 %2118
    %2120 = vrot.lane.b32.xlu0 %v2111, 64
    %v2121 = vpop.permute.xlu0 %2120
    %v2127 = vrot.slane %v2042, 4
    %v2128 = vrot.slane %v2044, 4
    %v2129 = vsel %vm723, %v2127, %v2128
    %v2130 = vrot.slane %v2046, 4
    %v2131 = vsel %vm723, %v2128, %v2130
    %v2132 = vrot.slane %v2048, 4
    %v2133 = vsel %vm723, %v2130, %v2132
    %v2134 = vrot.slane %v2050, 4
    %v2135 = vsel %vm723, %v2132, %v2134
    %v2136 = vrot.slane %v2052, 4
    %v2137 = vsel %vm723, %v2134, %v2136
    %v2143 = vrot.slane %v2042, 5
    %v2144 = vrot.slane %v2044, 5
    %v2145 = vsel %vm845, %v2143, %v2144
    %v2146 = vrot.slane %v2046, 5
    %v2147 = vsel %vm845, %v2144, %v2146
    %v2148 = vrot.slane %v2048, 5
    %v2149 = vsel %vm845, %v2146, %v2148
    %v2150 = vrot.slane %v2050, 5
    %v2151 = vsel %vm845, %v2148, %v2150
    %v2152 = vrot.slane %v2052, 5
    %v2153 = vsel %vm845, %v2150, %v2152
    %2154 = vrot.lane.b32.xlu0 %v2145, 64
    %v2155 = vpop.permute.xlu0 %2154
    %2156 = vrot.lane.b32.xlu0 %v2147, 64
    %v2157 = vpop.permute.xlu0 %2156
    %2158 = vrot.lane.b32.xlu0 %v2149, 64
    %v2159 = vpop.permute.xlu0 %2158
    %2160 = vrot.lane.b32.xlu0 %v2151, 64
    %v2161 = vpop.permute.xlu0 %2160
    %2162 = vrot.lane.b32.xlu0 %v2153, 64
    %v2163 = vpop.permute.xlu0 %2162
    %v2169 = vrot.slane %v2042, 6
    %v2170 = vrot.slane %v2044, 6
    %v2171 = vsel %vm967, %v2169, %v2170
    %v2172 = vrot.slane %v2046, 6
    %v2173 = vsel %vm967, %v2170, %v2172
    %v2174 = vrot.slane %v2048, 6
    %v2175 = vsel %vm967, %v2172, %v2174
    %v2176 = vrot.slane %v2050, 6
    %v2177 = vsel %vm967, %v2174, %v2176
    %v2178 = vrot.slane %v2052, 6
    %v2179 = vsel %vm967, %v2176, %v2178
    %v2185 = vrot.slane %v2042, 7
    %v2186 = vrot.slane %v2044, 7
    %v2187 = vsel %vm1089, %v2185, %v2186
    %v2188 = vrot.slane %v2046, 7
    %v2189 = vsel %vm1089, %v2186, %v2188
    %v2190 = vrot.slane %v2048, 7
    %v2191 = vsel %vm1089, %v2188, %v2190
    %v2192 = vrot.slane %v2050, 7
    %v2193 = vsel %vm1089, %v2190, %v2192
    %v2194 = vrot.slane %v2052, 7
    %v2195 = vsel %vm1089, %v2192, %v2194
    %2196 = vrot.lane.b32.xlu0 %v2187, 64
    %v2197 = vpop.permute.xlu0 %2196
    %2198 = vrot.lane.b32.xlu0 %v2189, 64
    %v2199 = vpop.permute.xlu0 %2198
    %2200 = vrot.lane.b32.xlu0 %v2191, 64
    %v2201 = vpop.permute.xlu0 %2200
    %2202 = vrot.lane.b32.xlu0 %v2193, 64
    %v2203 = vpop.permute.xlu0 %2202
    %2204 = vrot.lane.b32.xlu0 %v2195, 64
    %v2205 = vpop.permute.xlu0 %2204
    %v2211 = vsel %vm2016, %v2042, %v2071
    %v2212 = vsel %vm2016, %v2044, %v2073
    %v2213 = vsel %vm2016, %v2046, %v2075
    %v2214 = vsel %vm2016, %v2048, %v2077
    %v2215 = vsel %vm2016, %v2050, %v2079
    %v2216 = vsel %vm2016, %v2087, %v2113
    %v2217 = vsel %vm2016, %v2089, %v2115
    %v2218 = vsel %vm2016, %v2091, %v2117
    %v2219 = vsel %vm2016, %v2093, %v2119
    %v2220 = vsel %vm2016, %v2095, %v2121
    %v2221 = vsel %vm2016, %v2129, %v2155
    %v2222 = vsel %vm2016, %v2131, %v2157
    %v2223 = vsel %vm2016, %v2133, %v2159
    %v2224 = vsel %vm2016, %v2135, %v2161
    %v2225 = vsel %vm2016, %v2137, %v2163
    %v2226 = vsel %vm2016, %v2171, %v2197
    %v2227 = vsel %vm2016, %v2173, %v2199
    %v2228 = vsel %vm2016, %v2175, %v2201
    %v2229 = vsel %vm2016, %v2177, %v2203
    %v2230 = vsel %vm2016, %v2179, %v2205
    %v2231 = vpack.c.bf16 %v2212, %v2211
    %v2232 = vpack.c.bf16 %v2217, %v2216
    %v2233 = vpack.c.bf16 %v2222, %v2221
    %v2234 = vpack.c.bf16 %v2227, %v2226
    %v2235 = vpack.c.bf16 %v2046, %v2044
    %v2236 = vpack.c.bf16 %v2214, %v2213
    %v2237 = vpack.c.bf16 %v2219, %v2218
    %v2238 = vpack.c.bf16 %v2224, %v2223
    %v2239 = vpack.c.bf16 %v2229, %v2228
    %v2240 = vpack.c.bf16 %v2050, %v2048
    %v2241 = vpack.c.bf16 %v2215, %v2215
    %v2242 = vpack.c.bf16 %v2220, %v2220
    %v2243 = vpack.c.bf16 %v2225, %v2225
    %v2244 = vpack.c.bf16 %v2230, %v2230
    %v2245 = vpack.c.bf16 %v2052, %v2052
    %v2247 = vlaneseq
    %v2248 = vshrl.u32 %v2247, 7
    %v2249 = vsub.s32 0, %v2248
    %v2250 = vrot.slane %v305, %v2249
    %v2324 = vunpack.c.l.b16 %v88
    %v2325 = vunpack.c.l.b16 %v89
    %v2326 = vunpack.c.l.b16 %v90
    %v2327 = vunpack.c.l.b16 %v91
    %v2328 = vunpack.c.l.b16 %v92
    %v2329 = vunpack.c.l.b16 %v93
    %v2330 = vunpack.c.l.b16 %v94
    %v2331 = vunpack.c.l.b16 %v95
    %v2332 = vunpack.c.l.b16 %v96
    %v2333 = vunpack.c.l.b16 %v97
    %v2334 = vunpack.c.l.b16 %v98
    %v2335 = vunpack.c.l.b16 %v99
    %v2336 = vunpack.c.l.b16 %v100
    %v2337 = vunpack.c.l.b16 %v101
    %v2338 = vunpack.c.l.b16 %v102
    %v2339 = vunpack.c.l.b16 %v103
    %v2340 = vunpack.c.l.b16 %v104
    %v2341 = vunpack.c.l.b16 %v105
    %v2342 = vunpack.c.l.b16 %v106
    %v2343 = vunpack.c.l.b16 %v107
    %v2344 = vunpack.c.l.b16 %v108
    %v2345 = vunpack.c.l.b16 %v109
    %v2346 = vunpack.c.l.b16 %v110
    %v2347 = vunpack.c.l.b16 %v111
    %v2348 = vunpack.c.l.b16 %v112
    %v2349 = vunpack.c.l.b16 %v113
    %v2350 = vunpack.c.l.b16 %v114
    %v2351 = vunpack.c.l.b16 %v115
    %v2352 = vunpack.c.l.b16 %v116
    %v2353 = vunpack.c.l.b16 %v117
    %v2354 = vunpack.c.l.b16 %v118
    %v2355 = vunpack.c.l.b16 %v119
    %v2356 = vunpack.c.l.b16 %v120
    %v2357 = vunpack.c.l.b16 %v121
    %v2358 = vunpack.c.l.b16 %v122
    %v2359 = vunpack.c.l.b16 %v123
    %v2360 = vunpack.c.l.b16 %v124
    %v2361 = vunpack.c.l.b16 %v125
    %v2362 = vunpack.c.l.b16 %v126
    %v2363 = vunpack.c.l.b16 %v127
    %v2364 = vunpack.c.l.b16 %v128
    %v2365 = vunpack.c.l.b16 %v129
    %v2366 = vunpack.c.l.b16 %v130
    %v2367 = vunpack.c.l.b16 %v131
    %v2368 = vunpack.c.l.b16 %v132
    %v2369 = vunpack.c.l.b16 %v133
    %v2370 = vunpack.c.l.b16 %v134
    %v2371 = vunpack.c.l.b16 %v135
    %v2372 = vunpack.c.l.b16 %v136
    %v2373 = vunpack.c.l.b16 %v137
    %v2374 = vunpack.c.l.b16 %v138
    %v2375 = vunpack.c.l.b16 %v139
    %v2376 = vunpack.c.l.b16 %v140
    %v2377 = vunpack.c.l.b16 %v141
    %v2378 = vunpack.c.l.b16 %v142
    %v2379 = vunpack.c.l.b16 %v143
    %v2380 = vunpack.c.l.b16 %v144
    %v2381 = vunpack.c.l.b16 %v145
    %v2382 = vunpack.c.l.b16 %v146
    %v2383 = vunpack.c.l.b16 %v147
    %v2384 = vunpack.c.l.b16 %v148
    %v2385 = vunpack.c.l.b16 %v149
    %v2386 = vunpack.c.l.b16 %v150
    %v2387 = vunpack.c.l.b16 %v151
    %v2388 = vunpack.c.l.b16 %v152
    %v2389 = vunpack.c.l.b16 %v153
    %v2390 = vunpack.c.l.b16 %v154
    %v2391 = vunpack.c.l.b16 %v155
    %v2392 = vunpack.c.l.b16 %v156
    %v2393 = vunpack.c.l.b16 %v157
    %v2394 = vunpack.c.l.b16 %v158
    %v2395 = vunpack.c.l.b16 %v159
    %v2396 = vpack.c.b16 %v2325, %v2324
    %v2397 = vpack.c.b16 %v2327, %v2326
    %v2398 = vpack.c.b16 %v2329, %v2328
    %v2399 = vpack.c.b16 %v2331, %v2330
    %v2400 = vpack.c.b16 %v2333, %v2332
    %v2401 = vpack.c.b16 %v2335, %v2334
    %v2402 = vpack.c.b16 %v2337, %v2336
    %v2403 = vpack.c.b16 %v2339, %v2338
    %v2404 = vpack.c.b16 %v2341, %v2340
    %v2405 = vpack.c.b16 %v2343, %v2342
    %v2406 = vpack.c.b16 %v2345, %v2344
    %v2407 = vpack.c.b16 %v2347, %v2346
    %v2408 = vpack.c.b16 %v2349, %v2348
    %v2409 = vpack.c.b16 %v2351, %v2350
    %v2410 = vpack.c.b16 %v2353, %v2352
    %v2411 = vpack.c.b16 %v2355, %v2354
    %v2412 = vpack.c.b16 %v2357, %v2356
    %v2413 = vpack.c.b16 %v2359, %v2358
    %v2414 = vpack.c.b16 %v2361, %v2360
    %v2415 = vpack.c.b16 %v2363, %v2362
    %v2416 = vpack.c.b16 %v2365, %v2364
    %v2417 = vpack.c.b16 %v2367, %v2366
    %v2418 = vpack.c.b16 %v2369, %v2368
    %v2419 = vpack.c.b16 %v2371, %v2370
    %v2420 = vpack.c.b16 %v2373, %v2372
    %v2421 = vpack.c.b16 %v2375, %v2374
    %v2422 = vpack.c.b16 %v2377, %v2376
    %v2423 = vpack.c.b16 %v2379, %v2378
    %v2424 = vpack.c.b16 %v2381, %v2380
    %v2425 = vpack.c.b16 %v2383, %v2382
    %v2426 = vpack.c.b16 %v2385, %v2384
    %v2427 = vpack.c.b16 %v2387, %v2386
    %v2428 = vpack.c.b16 %v2389, %v2388
    %v2429 = vpack.c.b16 %v2391, %v2390
    %v2430 = vpack.c.b16 %v2393, %v2392
    %v2431 = vpack.c.b16 %v2395, %v2394
    %v2469 = vsel %vm2016, %v2235, 0
    %v2472 = vsel %vm2016, %v2240, 0
    %v2475 = vsel %vm2016, %v2245, 0
    %2477 = vmatprep.subr.bf16.mxu0 0
    %2478 = vmatpush1.bf16.msra.mxu0 %v2396
    %2479 = vmatprep.subr.bf16.mxu0 0
    %2480 = vmatpush1.bf16.msra.mxu0 %v2397
    %2481 = vmatprep.subr.bf16.mxu0 0
    %2482 = vmatpush1.bf16.msra.mxu0 %v2398
    %2483 = vmatprep.subr.bf16.mxu0 0
    %2484 = vmatpush1.bf16.msra.mxu0 %v2399
    %2485 = vmatprep.subr.bf16.mxu0 0
    %2486 = vmatpush1.bf16.msra.mxu0 %v2400
    %2487 = vmatprep.subr.bf16.mxu0 0
    %2488 = vmatpush1.bf16.msra.mxu0 %v2401
    %2489 = vmatprep.subr.bf16.mxu0 0
    %2490 = vmatpush1.bf16.msra.mxu0 %v2402
    %2491 = vmatprep.subr.bf16.mxu0 0
    %2492 = vmatpush1.bf16.msra.mxu0 %v2403
    %2493 = vmatprep.subr.bf16.mxu0 0
    %2494 = vmatpush1.bf16.msra.mxu0 %v2404
    %2495 = vmatprep.subr.bf16.mxu0 0
    %2496 = vmatpush1.bf16.msra.mxu0 %v2405
    %2497 = vmatprep.subr.bf16.mxu0 0
    %2498 = vmatpush1.bf16.msra.mxu0 %v2406
    %2499 = vmatprep.subr.bf16.mxu0 0
    %2500 = vmatpush1.bf16.msra.mxu0 %v2407
    %2501 = vmatprep.subr.bf16.mxu0 0
    %2502 = vmatpush1.bf16.msra.mxu0 %v2408
    %2503 = vmatprep.subr.bf16.mxu0 0
    %2504 = vmatpush1.bf16.msra.mxu0 %v2409
    %2505 = vmatprep.subr.bf16.mxu0 0
    %2506 = vmatpush1.bf16.msra.mxu0 %v2410
    %2507 = vmatprep.subr.bf16.mxu0 0
    %2508 = vmatpush1.bf16.msra.mxu0 %v2411
    %2509 = vmatprep.mubr.bf16.mxu0 %v2232
    %2510 = vmatmul.mubr.bf16.gmra.mrb[0].mxu0 %v2231
    %v2511 = vpop.f32.mrb[0].mxu0
    %v2512 = vadd.f32 %v2250, %v2511
    %v2513 = vpop.f32.mrb[0].mxu0
    %v2514 = vpop.f32.mrb[0].mxu0
    %v2515 = vadd.f32 %v2250, %v2514
    %v2516 = vpop.f32.mrb[0].mxu0
    %2517 = vmatprep.mubr.bf16.mxu0 %v2237
    %2518 = vmatmul.mubr.bf16.gmra.mrb[0].mxu0 %v2236
    %v2519 = vpop.f32.mrb[0].mxu0
    %v2520 = vadd.f32 %v2250, %v2519
    %v2521 = vpop.f32.mrb[0].mxu0
    %v2522 = vpop.f32.mrb[0].mxu0
    %v2523 = vadd.f32 %v2250, %v2522
    %v2524 = vpop.f32.mrb[0].mxu0
    %2525 = vmatprep.mubr.bf16.mxu0 %v2242
    %2526 = vmatmul.mubr.bf16.gmra.mrb[0].mxu0 %v2241
    %v2527 = vpop.f32.mrb[0].mxu0
    %v2528 = vadd.f32 %v2250, %v2527
    %v2529 = vpop.f32.mrb[0].mxu0
    %v2530 = vpop.f32.mrb[0].mxu0
    %v2531 = vpop.f32.mrb[0].mxu0
    %2532 = vdwg.mxu0
    %2533 = vmatprep.subr.bf16.mxu0 0
    %2534 = vmatpush1.bf16.msra.mxu0 %v2412
    %2535 = vmatprep.subr.bf16.mxu0 0
    %2536 = vmatpush1.bf16.msra.mxu0 %v2413
    %2537 = vmatprep.subr.bf16.mxu0 0
    %2538 = vmatpush1.bf16.msra.mxu0 %v2414
    %2539 = vmatprep.subr.bf16.mxu0 0
    %2540 = vmatpush1.bf16.msra.mxu0 %v2415
    %2541 = vmatprep.subr.bf16.mxu0 0
    %2542 = vmatpush1.bf16.msra.mxu0 %v2416
    %2543 = vmatprep.subr.bf16.mxu0 0
    %2544 = vmatpush1.bf16.msra.mxu0 %v2417
    %2545 = vmatprep.subr.bf16.mxu0 0
    %2546 = vmatpush1.bf16.msra.mxu0 %v2418
    %2547 = vmatprep.subr.bf16.mxu0 0
    %2548 = vmatpush1.bf16.msra.mxu0 %v2419
    %2549 = vmatprep.subr.bf16.mxu0 0
    %2550 = vmatpush1.bf16.msra.mxu0 %v2420
    %2551 = vmatprep.subr.bf16.mxu0 0
    %2552 = vmatpush1.bf16.msra.mxu0 %v2421
    %2553 = vmatprep.subr.bf16.mxu0 0
    %2554 = vmatpush1.bf16.msra.mxu0 %v2422
    %2555 = vmatprep.subr.bf16.mxu0 0
    %2556 = vmatpush1.bf16.msra.mxu0 %v2423
    %2557 = vmatprep.subr.bf16.mxu0 0
    %2558 = vmatpush1.bf16.msra.mxu0 %v2424
    %2559 = vmatprep.subr.bf16.mxu0 0
    %2560 = vmatpush1.bf16.msra.mxu0 %v2425
    %2561 = vmatprep.subr.bf16.mxu0 0
    %2562 = vmatpush1.bf16.msra.mxu0 %v2426
    %2563 = vmatprep.subr.bf16.mxu0 0
    %2564 = vmatpush1.bf16.msra.mxu0 %v2427
    %2565 = vmatprep.mubr.bf16.mxu0 %v2234
    %2566 = vmatmul.mubr.bf16.gmra.mrb[0].mxu0 %v2233
    %v2567 = vpop.f32.mrb[0].mxu0
    %v2568 = vadd.f32 %v2512, %v2567
    %v2569 = vpop.f32.mrb[0].mxu0
    %v2570 = vpop.f32.mrb[0].mxu0
    %v2571 = vadd.f32 %v2515, %v2570
    %v2572 = vpop.f32.mrb[0].mxu0
    %2573 = vmatprep.mubr.bf16.mxu0 %v2239
    %2574 = vmatmul.mubr.bf16.gmra.mrb[0].mxu0 %v2238
    %v2575 = vpop.f32.mrb[0].mxu0
    %v2576 = vadd.f32 %v2520, %v2575
    %v2577 = vpop.f32.mrb[0].mxu0
    %v2578 = vpop.f32.mrb[0].mxu0
    %v2579 = vadd.f32 %v2523, %v2578
    %v2580 = vpop.f32.mrb[0].mxu0
    %2581 = vmatprep.mubr.bf16.mxu0 %v2244
    %2582 = vmatmul.mubr.bf16.gmra.mrb[0].mxu0 %v2243
    %v2583 = vpop.f32.mrb[0].mxu0
    %v2584 = vadd.f32 %v2528, %v2583
    %v2585 = vpop.f32.mrb[0].mxu0
    %v2586 = vpop.f32.mrb[0].mxu0
    %v2587 = vpop.f32.mrb[0].mxu0
    %2588 = vdwg.mxu0
    %2589 = vmatprep.subr.bf16.mxu0 0
    %2590 = vmatpush1.bf16.msra.mxu0 %v2428
    %2591 = vmatprep.subr.bf16.mxu0 0
    %2592 = vmatpush1.bf16.msra.mxu0 %v2429
    %2593 = vmatprep.subr.bf16.mxu0 0
    %2594 = vmatpush1.bf16.msra.mxu0 %v2430
    %2595 = vmatprep.subr.bf16.mxu0 0
    %2596 = vmatpush1.bf16.msra.mxu0 %v2431
    %2597 = vmatprep.subr.bf16.mxu0 0
    %2598 = vmatpush1.bf16.msra.mxu0 0
    %2599 = vmatprep.subr.bf16.mxu0 0
    %2600 = vmatpush1.bf16.msra.mxu0 0
    %2601 = vmatprep.subr.bf16.mxu0 0
    %2602 = vmatpush1.bf16.msra.mxu0 0
    %2603 = vmatprep.subr.bf16.mxu0 0
    %2604 = vmatpush1.bf16.msra.mxu0 0
    %2605 = vmatprep.subr.bf16.mxu0 0
    %2606 = vmatpush1.bf16.msra.mxu0 0
    %2607 = vmatprep.subr.bf16.mxu0 0
    %2608 = vmatpush1.bf16.msra.mxu0 0
    %2609 = vmatprep.subr.bf16.mxu0 0
    %2610 = vmatpush1.bf16.msra.mxu0 0
    %2611 = vmatprep.subr.bf16.mxu0 0
    %2612 = vmatpush1.bf16.msra.mxu0 0
    %2613 = vmatprep.subr.bf16.mxu0 0
    %2614 = vmatpush1.bf16.msra.mxu0 0
    %2615 = vmatprep.subr.bf16.mxu0 0
    %2616 = vmatpush1.bf16.msra.mxu0 0
    %2617 = vmatprep.subr.bf16.mxu0 0
    %2618 = vmatpush1.bf16.msra.mxu0 0
    %2619 = vmatprep.subr.bf16.mxu0 0
    %2620 = vmatpush1.bf16.msra.mxu0 0
    %2621 = vmatprep.mubr.bf16.mxu0 0
    %2622 = vmatmul.mubr.bf16.gmra.mrb[0].mxu0 %v2469
    %v2623 = vpop.f32.mrb[0].mxu0
    %v2624 = vadd.f32 %v2568, %v2623
    %v2625 = vpop.f32.mrb[0].mxu0
    %v2626 = vpop.f32.mrb[0].mxu0
    %v2627 = vadd.f32 %v2571, %v2626
    %v2628 = vpop.f32.mrb[0].mxu0
    %2629 = vmatprep.mubr.bf16.mxu0 0
    %2630 = vmatmul.mubr.bf16.gmra.mrb[0].mxu0 %v2472
    %v2631 = vpop.f32.mrb[0].mxu0
    %v2632 = vadd.f32 %v2576, %v2631
    %v2633 = vpop.f32.mrb[0].mxu0
    %v2634 = vpop.f32.mrb[0].mxu0
    %v2635 = vadd.f32 %v2579, %v2634
    %v2636 = vpop.f32.mrb[0].mxu0
    %2637 = vmatprep.mubr.bf16.mxu0 0
    %2638 = vmatmul.mubr.bf16.gmra.mrb[0].mxu0 %v2475
    %v2639 = vpop.f32.mrb[0].mxu0
    %v2640 = vadd.f32 %v2584, %v2639
    %v2641 = vpop.f32.mrb[0].mxu0
    %v2642 = vpop.f32.mrb[0].mxu0
    %v2643 = vpop.f32.mrb[0].mxu0
    %2644 = vdwg.mxu0
    %v2645 = vmax.f32 %v2624, 0.0
    %v2646 = vmax.f32 %v2627, 0.0
    %v2647 = vmax.f32 %v2632, 0.0
    %v2648 = vmax.f32 %v2635, 0.0
    %v2649 = vmax.f32 %v2640, 0.0
    %v2655 = vrot.slane %v2645, 1
    %v2656 = vrot.slane %v2646, 1
    %v2657 = vsel %vm357, %v2655, %v2656
    %v2658 = vrot.slane %v2647, 1
    %v2659 = vsel %vm357, %v2656, %v2658
    %v2660 = vrot.slane %v2648, 1
    %v2661 = vsel %vm357, %v2658, %v2660
    %v2662 = vrot.slane %v2649, 1
    %v2663 = vsel %vm357, %v2660, %v2662
    %v2669 = vmax.f32 %v2645, %v2657
    %v2670 = vmax.f32 %v2646, %v2659
    %v2671 = vmax.f32 %v2647, %v2661
    %v2672 = vmax.f32 %v2648, %v2663
    %v2673 = vmax.f32 %v2649, %v2662
    %v2674 = vrot.slane %v2645, 2
    %v2675 = vrot.slane %v2646, 2
    %v2676 = vsel %vm479, %v2674, %v2675
    %v2677 = vrot.slane %v2647, 2
    %v2678 = vsel %vm479, %v2675, %v2677
    %v2679 = vrot.slane %v2648, 2
    %v2680 = vsel %vm479, %v2677, %v2679
    %v2681 = vrot.slane %v2649, 2
    %v2682 = vsel %vm479, %v2679, %v2681
    %v2688 = vmax.f32 %v2669, %v2676
    %v2689 = vmax.f32 %v2670, %v2678
    %v2690 = vmax.f32 %v2671, %v2680
    %v2691 = vmax.f32 %v2672, %v2682
    %v2692 = vmax.f32 %v2673, %v2681
    %v2693 = vrot.slane %v2645, 3
    %v2694 = vrot.slane %v2646, 3
    %v2695 = vsel %vm601, %v2693, %v2694
    %v2696 = vrot.slane %v2647, 3
    %v2697 = vsel %vm601, %v2694, %v2696
    %v2698 = vrot.slane %v2648, 3
    %v2699 = vsel %vm601, %v2696, %v2698
    %v2700 = vrot.slane %v2649, 3
    %v2701 = vsel %vm601, %v2698, %v2700
    %v2707 = vmax.f32 %v2688, %v2695
    %v2708 = vmax.f32 %v2689, %v2697
    %v2709 = vmax.f32 %v2690, %v2699
    %v2710 = vmax.f32 %v2691, %v2701
    %v2711 = vmax.f32 %v2692, %v2700
    %2712 = vst [vmem:[#allocation3] sm:$0xff] %v2707
    %2713 = vst [vmem:[#allocation3 + $0x8] sm:$0xff] %v2708
    %2714 = vst [vmem:[#allocation3 + $0x10] sm:$0xff] %v2709
    %2715 = vst [vmem:[#allocation3 + $0x18] sm:$0xff] %v2710
    %2716 = vst [vmem:[#allocation3 + $0x20] sm:$0x1f] %v2711
    %v2717 = vld [vmem:[#allocation3] ss:$4 sm:$0xff]
    %s2718 = scalar_lea.vmem [#allocation3], 32
    %v2719 = vld [vmem:[%s2718] ss:$4 sm:$0x3]
    %v2721 = vrot.slane %v2717, 1
    %v2723 = vrot.slane %v2717, 2
    %v2725 = vrot.slane %v2717, 3
    %v2727 = vrot.slane %v2717, 4
    %v2729 = vrot.slane %v2717, 5
    %v2731 = vrot.slane %v2717, 6
    %v2734 = vrot.slane %v2717, 7
    %v2735 = vrot.slane %v2719, 7
    %v2736 = vsel %vm1089, %v2734, %v2735
    %v2738 = vpack.c.bf16 %v2717, %v2717
    %v2739 = vpack.c.bf16 %v2721, %v2721
    %v2740 = vpack.c.bf16 %v2723, %v2723
    %v2741 = vpack.c.bf16 %v2725, %v2725
    %v2742 = vpack.c.bf16 %v2727, %v2727
    %v2743 = vpack.c.bf16 %v2729, %v2729
    %v2744 = vpack.c.bf16 %v2731, %v2731
    %v2745 = vpack.c.bf16 %v2736, %v2736
    %v2746 = vpack.c.bf16 %v2719, %v2719
    %v2748 = vlaneseq
    %v2749 = vshrl.u32 %v2748, 7
    %v2750 = vsub.s32 0, %v2749
    %v2751 = vrot.slane %v306, %v2750
    %v2897 = vunpack.c.l.b16 %v160
    %v2898 = vunpack.c.l.b16 %v161
    %v2899 = vunpack.c.l.b16 %v162
    %v2900 = vunpack.c.l.b16 %v163
    %v2901 = vunpack.c.l.b16 %v164
    %v2902 = vunpack.c.l.b16 %v165
    %v2903 = vunpack.c.l.b16 %v166
    %v2904 = vunpack.c.l.b16 %v167
    %v2905 = vunpack.c.l.b16 %v168
    %v2906 = vunpack.c.l.b16 %v169
    %v2907 = vunpack.c.l.b16 %v170
    %v2908 = vunpack.c.l.b16 %v171
    %v2909 = vunpack.c.l.b16 %v172
    %v2910 = vunpack.c.l.b16 %v173
    %v2911 = vunpack.c.l.b16 %v174
    %v2912 = vunpack.c.l.b16 %v175
    %v2913 = vunpack.c.l.b16 %v176
    %v2914 = vunpack.c.l.b16 %v177
    %v2915 = vunpack.c.l.b16 %v178
    %v2916 = vunpack.c.l.b16 %v179
    %v2917 = vunpack.c.l.b16 %v180
    %v2918 = vunpack.c.l.b16 %v181
    %v2919 = vunpack.c.l.b16 %v182
    %v2920 = vunpack.c.l.b16 %v183
    %v2921 = vunpack.c.l.b16 %v184
    %v2922 = vunpack.c.l.b16 %v185
    %v2923 = vunpack.c.l.b16 %v186
    %v2924 = vunpack.c.l.b16 %v187
    %v2925 = vunpack.c.l.b16 %v188
    %v2926 = vunpack.c.l.b16 %v189
    %v2927 = vunpack.c.l.b16 %v190
    %v2928 = vunpack.c.l.b16 %v191
    %v2929 = vunpack.c.l.b16 %v192
    %v2930 = vunpack.c.l.b16 %v193
    %v2931 = vunpack.c.l.b16 %v194
    %v2932 = vunpack.c.l.b16 %v195
    %v2933 = vunpack.c.l.b16 %v196
    %v2934 = vunpack.c.l.b16 %v197
    %v2935 = vunpack.c.l.b16 %v198
    %v2936 = vunpack.c.l.b16 %v199
    %v2937 = vunpack.c.l.b16 %v200
    %v2938 = vunpack.c.l.b16 %v201
    %v2939 = vunpack.c.l.b16 %v202
    %v2940 = vunpack.c.l.b16 %v203
    %v2941 = vunpack.c.l.b16 %v204
    %v2942 = vunpack.c.l.b16 %v205
    %v2943 = vunpack.c.l.b16 %v206
    %v2944 = vunpack.c.l.b16 %v207
    %v2945 = vunpack.c.l.b16 %v208
    %v2946 = vunpack.c.l.b16 %v209
    %v2947 = vunpack.c.l.b16 %v210
    %v2948 = vunpack.c.l.b16 %v211
    %v2949 = vunpack.c.l.b16 %v212
    %v2950 = vunpack.c.l.b16 %v213
    %v2951 = vunpack.c.l.b16 %v214
    %v2952 = vunpack.c.l.b16 %v215
    %v2953 = vunpack.c.l.b16 %v216
    %v2954 = vunpack.c.l.b16 %v217
    %v2955 = vunpack.c.l.b16 %v218
    %v2956 = vunpack.c.l.b16 %v219
    %v2957 = vunpack.c.l.b16 %v220
    %v2958 = vunpack.c.l.b16 %v221
    %v2959 = vunpack.c.l.b16 %v222
    %v2960 = vunpack.c.l.b16 %v223
    %v2961 = vunpack.c.l.b16 %v224
    %v2962 = vunpack.c.l.b16 %v225
    %v2963 = vunpack.c.l.b16 %v226
    %v2964 = vunpack.c.l.b16 %v227
    %v2965 = vunpack.c.l.b16 %v228
    %v2966 = vunpack.c.l.b16 %v229
    %v2967 = vunpack.c.l.b16 %v230
    %v2968 = vunpack.c.l.b16 %v231
    %v2969 = vunpack.c.l.b16 %v232
    %v2970 = vunpack.c.l.b16 %v233
    %v2971 = vunpack.c.l.b16 %v234
    %v2972 = vunpack.c.l.b16 %v235
    %v2973 = vunpack.c.l.b16 %v236
    %v2974 = vunpack.c.l.b16 %v237
    %v2975 = vunpack.c.l.b16 %v238
    %v2976 = vunpack.c.l.b16 %v239
    %v2977 = vunpack.c.l.b16 %v240
    %v2978 = vunpack.c.l.b16 %v241
    %v2979 = vunpack.c.l.b16 %v242
    %v2980 = vunpack.c.l.b16 %v243
    %v2981 = vunpack.c.l.b16 %v244
    %v2982 = vunpack.c.l.b16 %v245
    %v2983 = vunpack.c.l.b16 %v246
    %v2984 = vunpack.c.l.b16 %v247
    %v2985 = vunpack.c.l.b16 %v248
    %v2986 = vunpack.c.l.b16 %v249
    %v2987 = vunpack.c.l.b16 %v250
    %v2988 = vunpack.c.l.b16 %v251
    %v2989 = vunpack.c.l.b16 %v252
    %v2990 = vunpack.c.l.b16 %v253
    %v2991 = vunpack.c.l.b16 %v254
    %v2992 = vunpack.c.l.b16 %v255
    %v2993 = vunpack.c.l.b16 %v256
    %v2994 = vunpack.c.l.b16 %v257
    %v2995 = vunpack.c.l.b16 %v258
    %v2996 = vunpack.c.l.b16 %v259
    %v2997 = vunpack.c.l.b16 %v260
    %v2998 = vunpack.c.l.b16 %v261
    %v2999 = vunpack.c.l.b16 %v262
    %v3000 = vunpack.c.l.b16 %v263
    %v3001 = vunpack.c.l.b16 %v264
    %v3002 = vunpack.c.l.b16 %v265
    %v3003 = vunpack.c.l.b16 %v266
    %v3004 = vunpack.c.l.b16 %v267
    %v3005 = vunpack.c.l.b16 %v268
    %v3006 = vunpack.c.l.b16 %v269
    %v3007 = vunpack.c.l.b16 %v270
    %v3008 = vunpack.c.l.b16 %v271
    %v3009 = vunpack.c.l.b16 %v272
    %v3010 = vunpack.c.l.b16 %v273
    %v3011 = vunpack.c.l.b16 %v274
    %v3012 = vunpack.c.l.b16 %v275
    %v3013 = vunpack.c.l.b16 %v276
    %v3014 = vunpack.c.l.b16 %v277
    %v3015 = vunpack.c.l.b16 %v278
    %v3016 = vunpack.c.l.b16 %v279
    %v3017 = vunpack.c.l.b16 %v280
    %v3018 = vunpack.c.l.b16 %v281
    %v3019 = vunpack.c.l.b16 %v282
    %v3020 = vunpack.c.l.b16 %v283
    %v3021 = vunpack.c.l.b16 %v284
    %v3022 = vunpack.c.l.b16 %v285
    %v3023 = vunpack.c.l.b16 %v286
    %v3024 = vunpack.c.l.b16 %v287
    %v3025 = vunpack.c.l.b16 %v288
    %v3026 = vunpack.c.l.b16 %v289
    %v3027 = vunpack.c.l.b16 %v290
    %v3028 = vunpack.c.l.b16 %v291
    %v3029 = vunpack.c.l.b16 %v292
    %v3030 = vunpack.c.l.b16 %v293
    %v3031 = vunpack.c.l.b16 %v294
    %v3032 = vunpack.c.l.b16 %v295
    %v3033 = vunpack.c.l.b16 %v296
    %v3034 = vunpack.c.l.b16 %v297
    %v3035 = vunpack.c.l.b16 %v298
    %v3036 = vunpack.c.l.b16 %v299
    %v3037 = vunpack.c.l.b16 %v300
    %v3038 = vunpack.c.l.b16 %v301
    %v3039 = vunpack.c.l.b16 %v302
    %v3040 = vunpack.c.l.b16 %v303
    %v3041 = vpack.c.b16 %v2898, %v2897
    %v3042 = vpack.c.b16 %v2900, %v2899
    %v3043 = vpack.c.b16 %v2902, %v2901
    %v3044 = vpack.c.b16 %v2904, %v2903
    %v3045 = vpack.c.b16 %v2906, %v2905
    %v3046 = vpack.c.b16 %v2908, %v2907
    %v3047 = vpack.c.b16 %v2910, %v2909
    %v3048 = vpack.c.b16 %v2912, %v2911
    %v3049 = vpack.c.b16 %v2914, %v2913
    %v3050 = vpack.c.b16 %v2916, %v2915
    %v3051 = vpack.c.b16 %v2918, %v2917
    %v3052 = vpack.c.b16 %v2920, %v2919
    %v3053 = vpack.c.b16 %v2922, %v2921
    %v3054 = vpack.c.b16 %v2924, %v2923
    %v3055 = vpack.c.b16 %v2926, %v2925
    %v3056 = vpack.c.b16 %v2928, %v2927
    %v3057 = vpack.c.b16 %v2930, %v2929
    %v3058 = vpack.c.b16 %v2932, %v2931
    %v3059 = vpack.c.b16 %v2934, %v2933
    %v3060 = vpack.c.b16 %v2936, %v2935
    %v3061 = vpack.c.b16 %v2938, %v2937
    %v3062 = vpack.c.b16 %v2940, %v2939
    %v3063 = vpack.c.b16 %v2942, %v2941
    %v3064 = vpack.c.b16 %v2944, %v2943
    %v3065 = vpack.c.b16 %v2946, %v2945
    %v3066 = vpack.c.b16 %v2948, %v2947
    %v3067 = vpack.c.b16 %v2950, %v2949
    %v3068 = vpack.c.b16 %v2952, %v2951
    %v3069 = vpack.c.b16 %v2954, %v2953
    %v3070 = vpack.c.b16 %v2956, %v2955
    %v3071 = vpack.c.b16 %v2958, %v2957
    %v3072 = vpack.c.b16 %v2960, %v2959
    %v3073 = vpack.c.b16 %v2962, %v2961
    %v3074 = vpack.c.b16 %v2964, %v2963
    %v3075 = vpack.c.b16 %v2966, %v2965
    %v3076 = vpack.c.b16 %v2968, %v2967
    %v3077 = vpack.c.b16 %v2970, %v2969
    %v3078 = vpack.c.b16 %v2972, %v2971
    %v3079 = vpack.c.b16 %v2974, %v2973
    %v3080 = vpack.c.b16 %v2976, %v2975
    %v3081 = vpack.c.b16 %v2978, %v2977
    %v3082 = vpack.c.b16 %v2980, %v2979
    %v3083 = vpack.c.b16 %v2982, %v2981
    %v3084 = vpack.c.b16 %v2984, %v2983
    %v3085 = vpack.c.b16 %v2986, %v2985
    %v3086 = vpack.c.b16 %v2988, %v2987
    %v3087 = vpack.c.b16 %v2990, %v2989
    %v3088 = vpack.c.b16 %v2992, %v2991
    %v3089 = vpack.c.b16 %v2994, %v2993
    %v3090 = vpack.c.b16 %v2996, %v2995
    %v3091 = vpack.c.b16 %v2998, %v2997
    %v3092 = vpack.c.b16 %v3000, %v2999
    %v3093 = vpack.c.b16 %v3002, %v3001
    %v3094 = vpack.c.b16 %v3004, %v3003
    %v3095 = vpack.c.b16 %v3006, %v3005
    %v3096 = vpack.c.b16 %v3008, %v3007
    %v3097 = vpack.c.b16 %v3010, %v3009
    %v3098 = vpack.c.b16 %v3012, %v3011
    %v3099 = vpack.c.b16 %v3014, %v3013
    %v3100 = vpack.c.b16 %v3016, %v3015
    %v3101 = vpack.c.b16 %v3018, %v3017
    %v3102 = vpack.c.b16 %v3020, %v3019
    %v3103 = vpack.c.b16 %v3022, %v3021
    %v3104 = vpack.c.b16 %v3024, %v3023
    %v3105 = vpack.c.b16 %v3026, %v3025
    %v3106 = vpack.c.b16 %v3028, %v3027
    %v3107 = vpack.c.b16 %v3030, %v3029
    %v3108 = vpack.c.b16 %v3032, %v3031
    %v3109 = vpack.c.b16 %v3034, %v3033
    %v3110 = vpack.c.b16 %v3036, %v3035
    %v3111 = vpack.c.b16 %v3038, %v3037
    %v3112 = vpack.c.b16 %v3040, %v3039
    %3185 = vmatprep.subr.bf16.mxu0 0
    %3186 = vmatpush1.bf16.msra.mxu0 %v3041
    %3187 = vmatprep.subr.bf16.mxu0 0
    %3188 = vmatpush1.bf16.msra.mxu0 %v3042
    %3189 = vmatprep.subr.bf16.mxu0 0
    %3190 = vmatpush1.bf16.msra.mxu0 %v3043
    %3191 = vmatprep.subr.bf16.mxu0 0
    %3192 = vmatpush1.bf16.msra.mxu0 %v3044
    %3193 = vmatprep.subr.bf16.mxu0 0
    %3194 = vmatpush1.bf16.msra.mxu0 %v3045
    %3195 = vmatprep.subr.bf16.mxu0 0
    %3196 = vmatpush1.bf16.msra.mxu0 %v3046
    %3197 = vmatprep.subr.bf16.mxu0 0
    %3198 = vmatpush1.bf16.msra.mxu0 %v3047
    %3199 = vmatprep.subr.bf16.mxu0 0
    %3200 = vmatpush1.bf16.msra.mxu0 %v3048
    %3201 = vmatprep.subr.bf16.mxu0 0
    %3202 = vmatpush1.bf16.msra.mxu0 %v3049
    %3203 = vmatprep.subr.bf16.mxu0 0
    %3204 = vmatpush1.bf16.msra.mxu0 %v3050
    %3205 = vmatprep.subr.bf16.mxu0 0
    %3206 = vmatpush1.bf16.msra.mxu0 %v3051
    %3207 = vmatprep.subr.bf16.mxu0 0
    %3208 = vmatpush1.bf16.msra.mxu0 %v3052
    %3209 = vmatprep.subr.bf16.mxu0 0
    %3210 = vmatpush1.bf16.msra.mxu0 %v3053
    %3211 = vmatprep.subr.bf16.mxu0 0
    %3212 = vmatpush1.bf16.msra.mxu0 %v3054
    %3213 = vmatprep.subr.bf16.mxu0 0
    %3214 = vmatpush1.bf16.msra.mxu0 %v3055
    %3215 = vmatprep.subr.bf16.mxu0 0
    %3216 = vmatpush1.bf16.msra.mxu0 %v3056
    %3217 = vmatprep.mubr.bf16.mxu0 %v2739
    %3218 = vmatmul.mubr.bf16.gmra.mrb[0].mxu0 %v2738
    %v3219 = vpop.f32.mrb[0].mxu0
    %v3220 = vadd.f32 %v2751, %v3219
    %v3221 = vpop.f32.mrb[0].mxu0
    %v3222 = vpop.f32.mrb[0].mxu0
    %v3223 = vpop.f32.mrb[0].mxu0
    %3224 = vdwg.mxu0
    %3225 = vmatprep.subr.bf16.mxu0 0
    %3226 = vmatpush1.bf16.msra.mxu0 %v3057
    %3227 = vmatprep.subr.bf16.mxu0 0
    %3228 = vmatpush1.bf16.msra.mxu0 %v3058
    %3229 = vmatprep.subr.bf16.mxu0 0
    %3230 = vmatpush1.bf16.msra.mxu0 %v3059
    %3231 = vmatprep.subr.bf16.mxu0 0
    %3232 = vmatpush1.bf16.msra.mxu0 %v3060
    %3233 = vmatprep.subr.bf16.mxu0 0
    %3234 = vmatpush1.bf16.msra.mxu0 %v3061
    %3235 = vmatprep.subr.bf16.mxu0 0
    %3236 = vmatpush1.bf16.msra.mxu0 %v3062
    %3237 = vmatprep.subr.bf16.mxu0 0
    %3238 = vmatpush1.bf16.msra.mxu0 %v3063
    %3239 = vmatprep.subr.bf16.mxu0 0
    %3240 = vmatpush1.bf16.msra.mxu0 %v3064
    %3241 = vmatprep.subr.bf16.mxu0 0
    %3242 = vmatpush1.bf16.msra.mxu0 %v3065
    %3243 = vmatprep.subr.bf16.mxu0 0
    %3244 = vmatpush1.bf16.msra.mxu0 %v3066
    %3245 = vmatprep.subr.bf16.mxu0 0
    %3246 = vmatpush1.bf16.msra.mxu0 %v3067
    %3247 = vmatprep.subr.bf16.mxu0 0
    %3248 = vmatpush1.bf16.msra.mxu0 %v3068
    %3249 = vmatprep.subr.bf16.mxu0 0
    %3250 = vmatpush1.bf16.msra.mxu0 %v3069
    %3251 = vmatprep.subr.bf16.mxu0 0
    %3252 = vmatpush1.bf16.msra.mxu0 %v3070
    %3253 = vmatprep.subr.bf16.mxu0 0
    %3254 = vmatpush1.bf16.msra.mxu0 %v3071
    %3255 = vmatprep.subr.bf16.mxu0 0
    %3256 = vmatpush1.bf16.msra.mxu0 %v3072
    %3257 = vmatprep.mubr.bf16.mxu0 %v2741
    %3258 = vmatmul.mubr.bf16.gmra.mrb[0].mxu0 %v2740
    %v3259 = vpop.f32.mrb[0].mxu0
    %v3260 = vadd.f32 %v3220, %v3259
    %v3261 = vpop.f32.mrb[0].mxu0
    %v3262 = vpop.f32.mrb[0].mxu0
    %v3263 = vpop.f32.mrb[0].mxu0
    %3264 = vdwg.mxu0
    %3265 = vmatprep.subr.bf16.mxu0 0
    %3266 = vmatpush1.bf16.msra.mxu0 %v3073
    %3267 = vmatprep.subr.bf16.mxu0 0
    %3268 = vmatpush1.bf16.msra.mxu0 %v3074
    %3269 = vmatprep.subr.bf16.mxu0 0
    %3270 = vmatpush1.bf16.msra.mxu0 %v3075
    %3271 = vmatprep.subr.bf16.mxu0 0
    %3272 = vmatpush1.bf16.msra.mxu0 %v3076
    %3273 = vmatprep.subr.bf16.mxu0 0
    %3274 = vmatpush1.bf16.msra.mxu0 %v3077
    %3275 = vmatprep.subr.bf16.mxu0 0
    %3276 = vmatpush1.bf16.msra.mxu0 %v3078
    %3277 = vmatprep.subr.bf16.mxu0 0
    %3278 = vmatpush1.bf16.msra.mxu0 %v3079
    %3279 = vmatprep.subr.bf16.mxu0 0
    %3280 = vmatpush1.bf16.msra.mxu0 %v3080
    %3281 = vmatprep.subr.bf16.mxu0 0
    %3282 = vmatpush1.bf16.msra.mxu0 %v3081
    %3283 = vmatprep.subr.bf16.mxu0 0
    %3284 = vmatpush1.bf16.msra.mxu0 %v3082
    %3285 = vmatprep.subr.bf16.mxu0 0
    %3286 = vmatpush1.bf16.msra.mxu0 %v3083
    %3287 = vmatprep.subr.bf16.mxu0 0
    %3288 = vmatpush1.bf16.msra.mxu0 %v3084
    %3289 = vmatprep.subr.bf16.mxu0 0
    %3290 = vmatpush1.bf16.msra.mxu0 %v3085
    %3291 = vmatprep.subr.bf16.mxu0 0
    %3292 = vmatpush1.bf16.msra.mxu0 %v3086
    %3293 = vmatprep.subr.bf16.mxu0 0
    %3294 = vmatpush1.bf16.msra.mxu0 %v3087
    %3295 = vmatprep.subr.bf16.mxu0 0
    %3296 = vmatpush1.bf16.msra.mxu0 %v3088
    %3297 = vmatprep.mubr.bf16.mxu0 %v2743
    %3298 = vmatmul.mubr.bf16.gmra.mrb[0].mxu0 %v2742
    %v3299 = vpop.f32.mrb[0].mxu0
    %v3300 = vadd.f32 %v3260, %v3299
    %v3301 = vpop.f32.mrb[0].mxu0
    %v3302 = vpop.f32.mrb[0].mxu0
    %v3303 = vpop.f32.mrb[0].mxu0
    %3304 = vdwg.mxu0
    %3305 = vmatprep.subr.bf16.mxu0 0
    %3306 = vmatpush1.bf16.msra.mxu0 %v3089
    %3307 = vmatprep.subr.bf16.mxu0 0
    %3308 = vmatpush1.bf16.msra.mxu0 %v3090
    %3309 = vmatprep.subr.bf16.mxu0 0
    %3310 = vmatpush1.bf16.msra.mxu0 %v3091
    %3311 = vmatprep.subr.bf16.mxu0 0
    %3312 = vmatpush1.bf16.msra.mxu0 %v3092
    %3313 = vmatprep.subr.bf16.mxu0 0
    %3314 = vmatpush1.bf16.msra.mxu0 %v3093
    %3315 = vmatprep.subr.bf16.mxu0 0
    %3316 = vmatpush1.bf16.msra.mxu0 %v3094
    %3317 = vmatprep.subr.bf16.mxu0 0
    %3318 = vmatpush1.bf16.msra.mxu0 %v3095
    %3319 = vmatprep.subr.bf16.mxu0 0
    %3320 = vmatpush1.bf16.msra.mxu0 %v3096
    %3321 = vmatprep.subr.bf16.mxu0 0
    %3322 = vmatpush1.bf16.msra.mxu0 %v3097
    %3323 = vmatprep.subr.bf16.mxu0 0
    %3324 = vmatpush1.bf16.msra.mxu0 %v3098
    %3325 = vmatprep.subr.bf16.mxu0 0
    %3326 = vmatpush1.bf16.msra.mxu0 %v3099
    %3327 = vmatprep.subr.bf16.mxu0 0
    %3328 = vmatpush1.bf16.msra.mxu0 %v3100
    %3329 = vmatprep.subr.bf16.mxu0 0
    %3330 = vmatpush1.bf16.msra.mxu0 %v3101
    %3331 = vmatprep.subr.bf16.mxu0 0
    %3332 = vmatpush1.bf16.msra.mxu0 %v3102
    %3333 = vmatprep.subr.bf16.mxu0 0
    %3334 = vmatpush1.bf16.msra.mxu0 %v3103
    %3335 = vmatprep.subr.bf16.mxu0 0
    %3336 = vmatpush1.bf16.msra.mxu0 %v3104
    %3337 = vmatprep.mubr.bf16.mxu0 %v2745
    %3338 = vmatmul.mubr.bf16.gmra.mrb[0].mxu0 %v2744
    %v3339 = vpop.f32.mrb[0].mxu0
    %v3340 = vadd.f32 %v3300, %v3339
    %v3341 = vpop.f32.mrb[0].mxu0
    %v3342 = vpop.f32.mrb[0].mxu0
    %v3343 = vpop.f32.mrb[0].mxu0
    %3344 = vdwg.mxu0
    %3345 = vmatprep.subr.bf16.mxu0 0
    %3346 = vmatpush1.bf16.msra.mxu0 %v3105
    %3347 = vmatprep.subr.bf16.mxu0 0
    %3348 = vmatpush1.bf16.msra.mxu0 %v3106
    %3349 = vmatprep.subr.bf16.mxu0 0
    %3350 = vmatpush1.bf16.msra.mxu0 %v3107
    %3351 = vmatprep.subr.bf16.mxu0 0
    %3352 = vmatpush1.bf16.msra.mxu0 %v3108
    %3353 = vmatprep.subr.bf16.mxu0 0
    %3354 = vmatpush1.bf16.msra.mxu0 %v3109
    %3355 = vmatprep.subr.bf16.mxu0 0
    %3356 = vmatpush1.bf16.msra.mxu0 %v3110
    %3357 = vmatprep.subr.bf16.mxu0 0
    %3358 = vmatpush1.bf16.msra.mxu0 %v3111
    %3359 = vmatprep.subr.bf16.mxu0 0
    %3360 = vmatpush1.bf16.msra.mxu0 %v3112
    %3361 = vmatprep.subr.bf16.mxu0 0
    %3362 = vmatpush1.bf16.msra.mxu0 0
    %3363 = vmatprep.subr.bf16.mxu0 0
    %3364 = vmatpush1.bf16.msra.mxu0 0
    %3365 = vmatprep.subr.bf16.mxu0 0
    %3366 = vmatpush1.bf16.msra.mxu0 0
    %3367 = vmatprep.subr.bf16.mxu0 0
    %3368 = vmatpush1.bf16.msra.mxu0 0
    %3369 = vmatprep.subr.bf16.mxu0 0
    %3370 = vmatpush1.bf16.msra.mxu0 0
    %3371 = vmatprep.subr.bf16.mxu0 0
    %3372 = vmatpush1.bf16.msra.mxu0 0
    %3373 = vmatprep.subr.bf16.mxu0 0
    %3374 = vmatpush1.bf16.msra.mxu0 0
    %3375 = vmatprep.subr.bf16.mxu0 0
    %3376 = vmatpush1.bf16.msra.mxu0 0
    %3377 = vmatprep.mubr.bf16.mxu0 0
    %3378 = vmatmul.mubr.bf16.gmra.mrb[0].mxu0 %v2746
    %v3379 = vpop.f32.mrb[0].mxu0
    %v3380 = vadd.f32 %v3340, %v3379
    %v3381 = vpop.f32.mrb[0].mxu0
    %v3382 = vpop.f32.mrb[0].mxu0
    %v3383 = vpop.f32.mrb[0].mxu0
    %3384 = vdwg.mxu0
    %v3385 = vmax.f32 %v3380, 0.0
    %v3386 = vsel %vm967, %v3385, -inf
    %v3387 = vrot.slane %v3386, 4
    %v3388 = vmax.f32 %v3386, %v3387
    %v3389 = vrot.slane %v3388, 2
    %v3390 = vmax.f32 %v3388, %v3389
    %v3391 = vrot.slane %v3390, 1
    %v3392 = vmax.f32 %v3390, %v3391
    %3393 = vst [vmem:[#allocation10] sm:$0x1] %v3392
    %s3394 = scalar_lea.vmem %s0, 200
    %v3395 = vld [vmem:[%s3394] sm:$0xff]
    %v3396 = vld [vmem:[%s3394 + $0x8] sm:$0xff]
    %v3397 = vld [vmem:[%s3394 + $0x10] sm:$0xff]
    %v3398 = vld [vmem:[%s3394 + $0x18] sm:$0xff]
    %v3399 = vld [vmem:[%s3394 + $0x20] sm:$0xff]
    %v3400 = vld [vmem:[%s3394 + $0x28] sm:$0xff]
    %v3401 = vld [vmem:[%s3394 + $0x30] sm:$0xff]
    %v3402 = vld [vmem:[%s3394 + $0x38] sm:$0xff]
    %v3403 = vld [vmem:[%s3394 + $0x40] sm:$0xff]
    %v3404 = vld [vmem:[%s3394 + $0x48] sm:$0xff]
    %v3405 = vld [vmem:[%s3394 + $0x50] sm:$0xff]
    %v3406 = vld [vmem:[%s3394 + $0x58] sm:$0xff]
    %v3407 = vld [vmem:[%s3394 + $0x60] sm:$0xff]
    %v3408 = vld [vmem:[%s3394 + $0x68] sm:$0xff]
    %v3409 = vld [vmem:[%s3394 + $0x70] sm:$0xff]
    %v3410 = vld [vmem:[%s3394 + $0x78] sm:$0xff]
    %v3411 = vld [vmem:[%s3394 + $0x80] sm:$0xff]
    %v3412 = vld [vmem:[%s3394 + $0x88] sm:$0xff]
    %v3413 = vld [vmem:[%s3394 + $0x90] sm:$0xff]
    %v3414 = vld [vmem:[%s3394 + $0x98] sm:$0xff]
    %v3415 = vld [vmem:[%s3394 + $0xa0] sm:$0xff]
    %v3416 = vld [vmem:[%s3394 + $0xa8] sm:$0xff]
    %v3417 = vld [vmem:[%s3394 + $0xb0] sm:$0xff]
    %v3418 = vld [vmem:[%s3394 + $0xb8] sm:$0xff]
    %v3419 = vld [vmem:[%s3394 + $0xc0] sm:$0xff]
    %v3445 = vrot.slane %v3395, 1
    %v3446 = vrot.slane %v3396, 1
    %v3447 = vsel %vm357, %v3445, %v3446
    %v3448 = vrot.slane %v3397, 1
    %v3449 = vsel %vm357, %v3446, %v3448
    %v3450 = vrot.slane %v3398, 1
    %v3451 = vsel %vm357, %v3448, %v3450
    %v3452 = vrot.slane %v3399, 1
    %v3453 = vsel %vm357, %v3450, %v3452
    %v3454 = vrot.slane %v3400, 1
    %v3455 = vsel %vm357, %v3452, %v3454
    %v3456 = vrot.slane %v3401, 1
    %v3457 = vsel %vm357, %v3454, %v3456
    %v3458 = vrot.slane %v3402, 1
    %v3459 = vsel %vm357, %v3456, %v3458
    %v3460 = vrot.slane %v3403, 1
    %v3461 = vsel %vm357, %v3458, %v3460
    %v3462 = vrot.slane %v3404, 1
    %v3463 = vsel %vm357, %v3460, %v3462
    %v3464 = vrot.slane %v3405, 1
    %v3465 = vsel %vm357, %v3462, %v3464
    %v3466 = vrot.slane %v3406, 1
    %v3467 = vsel %vm357, %v3464, %v3466
    %v3468 = vrot.slane %v3407, 1
    %v3469 = vsel %vm357, %v3466, %v3468
    %v3470 = vrot.slane %v3408, 1
    %v3471 = vsel %vm357, %v3468, %v3470
    %v3472 = vrot.slane %v3409, 1
    %v3473 = vsel %vm357, %v3470, %v3472
    %v3474 = vrot.slane %v3410, 1
    %v3475 = vsel %vm357, %v3472, %v3474
    %v3476 = vrot.slane %v3411, 1
    %v3477 = vsel %vm357, %v3474, %v3476
    %v3478 = vrot.slane %v3412, 1
    %v3479 = vsel %vm357, %v3476, %v3478
    %v3480 = vrot.slane %v3413, 1
    %v3481 = vsel %vm357, %v3478, %v3480
    %v3482 = vrot.slane %v3414, 1
    %v3483 = vsel %vm357, %v3480, %v3482
    %v3484 = vrot.slane %v3415, 1
    %v3485 = vsel %vm357, %v3482, %v3484
    %v3486 = vrot.slane %v3416, 1
    %v3487 = vsel %vm357, %v3484, %v3486
    %v3488 = vrot.slane %v3417, 1
    %v3489 = vsel %vm357, %v3486, %v3488
    %v3490 = vrot.slane %v3418, 1
    %v3491 = vsel %vm357, %v3488, %v3490
    %v3492 = vrot.slane %v3419, 1
    %v3493 = vsel %vm357, %v3490, %v3492
    %3494 = vrot.lane.b32.xlu0 %v3447, 3
    %v3495 = vpop.permute.xlu0 %3494
    %3496 = vrot.lane.b32.xlu0 %v3449, 3
    %v3497 = vpop.permute.xlu0 %3496
    %3498 = vrot.lane.b32.xlu0 %v3451, 3
    %v3499 = vpop.permute.xlu0 %3498
    %3500 = vrot.lane.b32.xlu0 %v3453, 3
    %v3501 = vpop.permute.xlu0 %3500
    %3502 = vrot.lane.b32.xlu0 %v3455, 3
    %v3503 = vpop.permute.xlu0 %3502
    %3504 = vrot.lane.b32.xlu0 %v3457, 3
    %v3505 = vpop.permute.xlu0 %3504
    %3506 = vrot.lane.b32.xlu0 %v3459, 3
    %v3507 = vpop.permute.xlu0 %3506
    %3508 = vrot.lane.b32.xlu0 %v3461, 3
    %v3509 = vpop.permute.xlu0 %3508
    %3510 = vrot.lane.b32.xlu0 %v3463, 3
    %v3511 = vpop.permute.xlu0 %3510
    %3512 = vrot.lane.b32.xlu0 %v3465, 3
    %v3513 = vpop.permute.xlu0 %3512
    %3514 = vrot.lane.b32.xlu0 %v3467, 3
    %v3515 = vpop.permute.xlu0 %3514
    %3516 = vrot.lane.b32.xlu0 %v3469, 3
    %v3517 = vpop.permute.xlu0 %3516
    %3518 = vrot.lane.b32.xlu0 %v3471, 3
    %v3519 = vpop.permute.xlu0 %3518
    %3520 = vrot.lane.b32.xlu0 %v3473, 3
    %v3521 = vpop.permute.xlu0 %3520
    %3522 = vrot.lane.b32.xlu0 %v3475, 3
    %v3523 = vpop.permute.xlu0 %3522
    %3524 = vrot.lane.b32.xlu0 %v3477, 3
    %v3525 = vpop.permute.xlu0 %3524
    %3526 = vrot.lane.b32.xlu0 %v3479, 3
    %v3527 = vpop.permute.xlu0 %3526
    %3528 = vrot.lane.b32.xlu0 %v3481, 3
    %v3529 = vpop.permute.xlu0 %3528
    %3530 = vrot.lane.b32.xlu0 %v3483, 3
    %v3531 = vpop.permute.xlu0 %3530
    %3532 = vrot.lane.b32.xlu0 %v3485, 3
    %v3533 = vpop.permute.xlu0 %3532
    %3534 = vrot.lane.b32.xlu0 %v3487, 3
    %v3535 = vpop.permute.xlu0 %3534
    %3536 = vrot.lane.b32.xlu0 %v3489, 3
    %v3537 = vpop.permute.xlu0 %3536
    %3538 = vrot.lane.b32.xlu0 %v3491, 3
    %v3539 = vpop.permute.xlu0 %3538
    %3540 = vrot.lane.b32.xlu0 %v3493, 3
    %v3541 = vpop.permute.xlu0 %3540
    %v3566 = vrot.slane %v3395, 2
    %v3567 = vrot.slane %v3396, 2
    %v3568 = vsel %vm479, %v3566, %v3567
    %v3569 = vrot.slane %v3397, 2
    %v3570 = vsel %vm479, %v3567, %v3569
    %v3571 = vrot.slane %v3398, 2
    %v3572 = vsel %vm479, %v3569, %v3571
    %v3573 = vrot.slane %v3399, 2
    %v3574 = vsel %vm479, %v3571, %v3573
    %v3575 = vrot.slane %v3400, 2
    %v3576 = vsel %vm479, %v3573, %v3575
    %v3577 = vrot.slane %v3401, 2
    %v3578 = vsel %vm479, %v3575, %v3577
    %v3579 = vrot.slane %v3402, 2
    %v3580 = vsel %vm479, %v3577, %v3579
    %v3581 = vrot.slane %v3403, 2
    %v3582 = vsel %vm479, %v3579, %v3581
    %v3583 = vrot.slane %v3404, 2
    %v3584 = vsel %vm479, %v3581, %v3583
    %v3585 = vrot.slane %v3405, 2
    %v3586 = vsel %vm479, %v3583, %v3585
    %v3587 = vrot.slane %v3406, 2
    %v3588 = vsel %vm479, %v3585, %v3587
    %v3589 = vrot.slane %v3407, 2
    %v3590 = vsel %vm479, %v3587, %v3589
    %v3591 = vrot.slane %v3408, 2
    %v3592 = vsel %vm479, %v3589, %v3591
    %v3593 = vrot.slane %v3409, 2
    %v3594 = vsel %vm479, %v3591, %v3593
    %v3595 = vrot.slane %v3410, 2
    %v3596 = vsel %vm479, %v3593, %v3595
    %v3597 = vrot.slane %v3411, 2
    %v3598 = vsel %vm479, %v3595, %v3597
    %v3599 = vrot.slane %v3412, 2
    %v3600 = vsel %vm479, %v3597, %v3599
    %v3601 = vrot.slane %v3413, 2
    %v3602 = vsel %vm479, %v3599, %v3601
    %v3603 = vrot.slane %v3414, 2
    %v3604 = vsel %vm479, %v3601, %v3603
    %v3605 = vrot.slane %v3415, 2
    %v3606 = vsel %vm479, %v3603, %v3605
    %v3607 = vrot.slane %v3416, 2
    %v3608 = vsel %vm479, %v3605, %v3607
    %v3609 = vrot.slane %v3417, 2
    %v3610 = vsel %vm479, %v3607, %v3609
    %v3611 = vrot.slane %v3418, 2
    %v3612 = vsel %vm479, %v3609, %v3611
    %v3613 = vrot.slane %v3419, 2
    %v3614 = vsel %vm479, %v3611, %v3613
    %3615 = vrot.lane.b32.xlu0 %v3568, 6
    %v3616 = vpop.permute.xlu0 %3615
    %3617 = vrot.lane.b32.xlu0 %v3570, 6
    %v3618 = vpop.permute.xlu0 %3617
    %3619 = vrot.lane.b32.xlu0 %v3572, 6
    %v3620 = vpop.permute.xlu0 %3619
    %3621 = vrot.lane.b32.xlu0 %v3574, 6
    %v3622 = vpop.permute.xlu0 %3621
    %3623 = vrot.lane.b32.xlu0 %v3576, 6
    %v3624 = vpop.permute.xlu0 %3623
    %3625 = vrot.lane.b32.xlu0 %v3578, 6
    %v3626 = vpop.permute.xlu0 %3625
    %3627 = vrot.lane.b32.xlu0 %v3580, 6
    %v3628 = vpop.permute.xlu0 %3627
    %3629 = vrot.lane.b32.xlu0 %v3582, 6
    %v3630 = vpop.permute.xlu0 %3629
    %3631 = vrot.lane.b32.xlu0 %v3584, 6
    %v3632 = vpop.permute.xlu0 %3631
    %3633 = vrot.lane.b32.xlu0 %v3586, 6
    %v3634 = vpop.permute.xlu0 %3633
    %3635 = vrot.lane.b32.xlu0 %v3588, 6
    %v3636 = vpop.permute.xlu0 %3635
    %3637 = vrot.lane.b32.xlu0 %v3590, 6
    %v3638 = vpop.permute.xlu0 %3637
    %3639 = vrot.lane.b32.xlu0 %v3592, 6
    %v3640 = vpop.permute.xlu0 %3639
    %3641 = vrot.lane.b32.xlu0 %v3594, 6
    %v3642 = vpop.permute.xlu0 %3641
    %3643 = vrot.lane.b32.xlu0 %v3596, 6
    %v3644 = vpop.permute.xlu0 %3643
    %3645 = vrot.lane.b32.xlu0 %v3598, 6
    %v3646 = vpop.permute.xlu0 %3645
    %3647 = vrot.lane.b32.xlu0 %v3600, 6
    %v3648 = vpop.permute.xlu0 %3647
    %3649 = vrot.lane.b32.xlu0 %v3602, 6
    %v3650 = vpop.permute.xlu0 %3649
    %3651 = vrot.lane.b32.xlu0 %v3604, 6
    %v3652 = vpop.permute.xlu0 %3651
    %3653 = vrot.lane.b32.xlu0 %v3606, 6
    %v3654 = vpop.permute.xlu0 %3653
    %3655 = vrot.lane.b32.xlu0 %v3608, 6
    %v3656 = vpop.permute.xlu0 %3655
    %3657 = vrot.lane.b32.xlu0 %v3610, 6
    %v3658 = vpop.permute.xlu0 %3657
    %3659 = vrot.lane.b32.xlu0 %v3612, 6
    %v3660 = vpop.permute.xlu0 %3659
    %3661 = vrot.lane.b32.xlu0 %v3614, 6
    %v3662 = vpop.permute.xlu0 %3661
    %v3687 = vrot.slane %v3395, 3
    %v3688 = vrot.slane %v3396, 3
    %v3689 = vsel %vm601, %v3687, %v3688
    %v3690 = vrot.slane %v3397, 3
    %v3691 = vsel %vm601, %v3688, %v3690
    %v3692 = vrot.slane %v3398, 3
    %v3693 = vsel %vm601, %v3690, %v3692
    %v3694 = vrot.slane %v3399, 3
    %v3695 = vsel %vm601, %v3692, %v3694
    %v3696 = vrot.slane %v3400, 3
    %v3697 = vsel %vm601, %v3694, %v3696
    %v3698 = vrot.slane %v3401, 3
    %v3699 = vsel %vm601, %v3696, %v3698
    %v3700 = vrot.slane %v3402, 3
    %v3701 = vsel %vm601, %v3698, %v3700
    %v3702 = vrot.slane %v3403, 3
    %v3703 = vsel %vm601, %v3700, %v3702
    %v3704 = vrot.slane %v3404, 3
    %v3705 = vsel %vm601, %v3702, %v3704
    %v3706 = vrot.slane %v3405, 3
    %v3707 = vsel %vm601, %v3704, %v3706
    %v3708 = vrot.slane %v3406, 3
    %v3709 = vsel %vm601, %v3706, %v3708
    %v3710 = vrot.slane %v3407, 3
    %v3711 = vsel %vm601, %v3708, %v3710
    %v3712 = vrot.slane %v3408, 3
    %v3713 = vsel %vm601, %v3710, %v3712
    %v3714 = vrot.slane %v3409, 3
    %v3715 = vsel %vm601, %v3712, %v3714
    %v3716 = vrot.slane %v3410, 3
    %v3717 = vsel %vm601, %v3714, %v3716
    %v3718 = vrot.slane %v3411, 3
    %v3719 = vsel %vm601, %v3716, %v3718
    %v3720 = vrot.slane %v3412, 3
    %v3721 = vsel %vm601, %v3718, %v3720
    %v3722 = vrot.slane %v3413, 3
    %v3723 = vsel %vm601, %v3720, %v3722
    %v3724 = vrot.slane %v3414, 3
    %v3725 = vsel %vm601, %v3722, %v3724
    %v3726 = vrot.slane %v3415, 3
    %v3727 = vsel %vm601, %v3724, %v3726
    %v3728 = vrot.slane %v3416, 3
    %v3729 = vsel %vm601, %v3726, %v3728
    %v3730 = vrot.slane %v3417, 3
    %v3731 = vsel %vm601, %v3728, %v3730
    %v3732 = vrot.slane %v3418, 3
    %v3733 = vsel %vm601, %v3730, %v3732
    %v3734 = vrot.slane %v3419, 3
    %v3735 = vsel %vm601, %v3732, %v3734
    %3736 = vrot.lane.b32.xlu0 %v3689, 9
    %v3737 = vpop.permute.xlu0 %3736
    %3738 = vrot.lane.b32.xlu0 %v3691, 9
    %v3739 = vpop.permute.xlu0 %3738
    %3740 = vrot.lane.b32.xlu0 %v3693, 9
    %v3741 = vpop.permute.xlu0 %3740
    %3742 = vrot.lane.b32.xlu0 %v3695, 9
    %v3743 = vpop.permute.xlu0 %3742
    %3744 = vrot.lane.b32.xlu0 %v3697, 9
    %v3745 = vpop.permute.xlu0 %3744
    %3746 = vrot.lane.b32.xlu0 %v3699, 9
    %v3747 = vpop.permute.xlu0 %3746
    %3748 = vrot.lane.b32.xlu0 %v3701, 9
    %v3749 = vpop.permute.xlu0 %3748
    %3750 = vrot.lane.b32.xlu0 %v3703, 9
    %v3751 = vpop.permute.xlu0 %3750
    %3752 = vrot.lane.b32.xlu0 %v3705, 9
    %v3753 = vpop.permute.xlu0 %3752
    %3754 = vrot.lane.b32.xlu0 %v3707, 9
    %v3755 = vpop.permute.xlu0 %3754
    %3756 = vrot.lane.b32.xlu0 %v3709, 9
    %v3757 = vpop.permute.xlu0 %3756
    %3758 = vrot.lane.b32.xlu0 %v3711, 9
    %v3759 = vpop.permute.xlu0 %3758
    %3760 = vrot.lane.b32.xlu0 %v3713, 9
    %v3761 = vpop.permute.xlu0 %3760
    %3762 = vrot.lane.b32.xlu0 %v3715, 9
    %v3763 = vpop.permute.xlu0 %3762
    %3764 = vrot.lane.b32.xlu0 %v3717, 9
    %v3765 = vpop.permute.xlu0 %3764
    %3766 = vrot.lane.b32.xlu0 %v3719, 9
    %v3767 = vpop.permute.xlu0 %3766
    %3768 = vrot.lane.b32.xlu0 %v3721, 9
    %v3769 = vpop.permute.xlu0 %3768
    %3770 = vrot.lane.b32.xlu0 %v3723, 9
    %v3771 = vpop.permute.xlu0 %3770
    %3772 = vrot.lane.b32.xlu0 %v3725, 9
    %v3773 = vpop.permute.xlu0 %3772
    %3774 = vrot.lane.b32.xlu0 %v3727, 9
    %v3775 = vpop.permute.xlu0 %3774
    %3776 = vrot.lane.b32.xlu0 %v3729, 9
    %v3777 = vpop.permute.xlu0 %3776
    %3778 = vrot.lane.b32.xlu0 %v3731, 9
    %v3779 = vpop.permute.xlu0 %3778
    %3780 = vrot.lane.b32.xlu0 %v3733, 9
    %v3781 = vpop.permute.xlu0 %3780
    %3782 = vrot.lane.b32.xlu0 %v3735, 9
    %v3783 = vpop.permute.xlu0 %3782
    %v3808 = vrot.slane %v3395, 4
    %v3809 = vrot.slane %v3396, 4
    %v3810 = vsel %vm723, %v3808, %v3809
    %v3811 = vrot.slane %v3397, 4
    %v3812 = vsel %vm723, %v3809, %v3811
    %v3813 = vrot.slane %v3398, 4
    %v3814 = vsel %vm723, %v3811, %v3813
    %v3815 = vrot.slane %v3399, 4
    %v3816 = vsel %vm723, %v3813, %v3815
    %v3817 = vrot.slane %v3400, 4
    %v3818 = vsel %vm723, %v3815, %v3817
    %v3819 = vrot.slane %v3401, 4
    %v3820 = vsel %vm723, %v3817, %v3819
    %v3821 = vrot.slane %v3402, 4
    %v3822 = vsel %vm723, %v3819, %v3821
    %v3823 = vrot.slane %v3403, 4
    %v3824 = vsel %vm723, %v3821, %v3823
    %v3825 = vrot.slane %v3404, 4
    %v3826 = vsel %vm723, %v3823, %v3825
    %v3827 = vrot.slane %v3405, 4
    %v3828 = vsel %vm723, %v3825, %v3827
    %v3829 = vrot.slane %v3406, 4
    %v3830 = vsel %vm723, %v3827, %v3829
    %v3831 = vrot.slane %v3407, 4
    %v3832 = vsel %vm723, %v3829, %v3831
    %v3833 = vrot.slane %v3408, 4
    %v3834 = vsel %vm723, %v3831, %v3833
    %v3835 = vrot.slane %v3409, 4
    %v3836 = vsel %vm723, %v3833, %v3835
    %v3837 = vrot.slane %v3410, 4
    %v3838 = vsel %vm723, %v3835, %v3837
    %v3839 = vrot.slane %v3411, 4
    %v3840 = vsel %vm723, %v3837, %v3839
    %v3841 = vrot.slane %v3412, 4
    %v3842 = vsel %vm723, %v3839, %v3841
    %v3843 = vrot.slane %v3413, 4
    %v3844 = vsel %vm723, %v3841, %v3843
    %v3845 = vrot.slane %v3414, 4
    %v3846 = vsel %vm723, %v3843, %v3845
    %v3847 = vrot.slane %v3415, 4
    %v3848 = vsel %vm723, %v3845, %v3847
    %v3849 = vrot.slane %v3416, 4
    %v3850 = vsel %vm723, %v3847, %v3849
    %v3851 = vrot.slane %v3417, 4
    %v3852 = vsel %vm723, %v3849, %v3851
    %v3853 = vrot.slane %v3418, 4
    %v3854 = vsel %vm723, %v3851, %v3853
    %v3855 = vrot.slane %v3419, 4
    %v3856 = vsel %vm723, %v3853, %v3855
    %3857 = vrot.lane.b32.xlu0 %v3810, 12
    %v3858 = vpop.permute.xlu0 %3857
    %3859 = vrot.lane.b32.xlu0 %v3812, 12
    %v3860 = vpop.permute.xlu0 %3859
    %3861 = vrot.lane.b32.xlu0 %v3814, 12
    %v3862 = vpop.permute.xlu0 %3861
    %3863 = vrot.lane.b32.xlu0 %v3816, 12
    %v3864 = vpop.permute.xlu0 %3863
    %3865 = vrot.lane.b32.xlu0 %v3818, 12
    %v3866 = vpop.permute.xlu0 %3865
    %3867 = vrot.lane.b32.xlu0 %v3820, 12
    %v3868 = vpop.permute.xlu0 %3867
    %3869 = vrot.lane.b32.xlu0 %v3822, 12
    %v3870 = vpop.permute.xlu0 %3869
    %3871 = vrot.lane.b32.xlu0 %v3824, 12
    %v3872 = vpop.permute.xlu0 %3871
    %3873 = vrot.lane.b32.xlu0 %v3826, 12
    %v3874 = vpop.permute.xlu0 %3873
    %3875 = vrot.lane.b32.xlu0 %v3828, 12
    %v3876 = vpop.permute.xlu0 %3875
    %3877 = vrot.lane.b32.xlu0 %v3830, 12
    %v3878 = vpop.permute.xlu0 %3877
    %3879 = vrot.lane.b32.xlu0 %v3832, 12
    %v3880 = vpop.permute.xlu0 %3879
    %3881 = vrot.lane.b32.xlu0 %v3834, 12
    %v3882 = vpop.permute.xlu0 %3881
    %3883 = vrot.lane.b32.xlu0 %v3836, 12
    %v3884 = vpop.permute.xlu0 %3883
    %3885 = vrot.lane.b32.xlu0 %v3838, 12
    %v3886 = vpop.permute.xlu0 %3885
    %3887 = vrot.lane.b32.xlu0 %v3840, 12
    %v3888 = vpop.permute.xlu0 %3887
    %3889 = vrot.lane.b32.xlu0 %v3842, 12
    %v3890 = vpop.permute.xlu0 %3889
    %3891 = vrot.lane.b32.xlu0 %v3844, 12
    %v3892 = vpop.permute.xlu0 %3891
    %3893 = vrot.lane.b32.xlu0 %v3846, 12
    %v3894 = vpop.permute.xlu0 %3893
    %3895 = vrot.lane.b32.xlu0 %v3848, 12
    %v3896 = vpop.permute.xlu0 %3895
    %3897 = vrot.lane.b32.xlu0 %v3850, 12
    %v3898 = vpop.permute.xlu0 %3897
    %3899 = vrot.lane.b32.xlu0 %v3852, 12
    %v3900 = vpop.permute.xlu0 %3899
    %3901 = vrot.lane.b32.xlu0 %v3854, 12
    %v3902 = vpop.permute.xlu0 %3901
    %3903 = vrot.lane.b32.xlu0 %v3856, 12
    %v3904 = vpop.permute.xlu0 %3903
    %v3929 = vrot.slane %v3395, 5
    %v3930 = vrot.slane %v3396, 5
    %v3931 = vsel %vm845, %v3929, %v3930
    %v3932 = vrot.slane %v3397, 5
    %v3933 = vsel %vm845, %v3930, %v3932
    %v3934 = vrot.slane %v3398, 5
    %v3935 = vsel %vm845, %v3932, %v3934
    %v3936 = vrot.slane %v3399, 5
    %v3937 = vsel %vm845, %v3934, %v3936
    %v3938 = vrot.slane %v3400, 5
    %v3939 = vsel %vm845, %v3936, %v3938
    %v3940 = vrot.slane %v3401, 5
    %v3941 = vsel %vm845, %v3938, %v3940
    %v3942 = vrot.slane %v3402, 5
    %v3943 = vsel %vm845, %v3940, %v3942
    %v3944 = vrot.slane %v3403, 5
    %v3945 = vsel %vm845, %v3942, %v3944
    %v3946 = vrot.slane %v3404, 5
    %v3947 = vsel %vm845, %v3944, %v3946
    %v3948 = vrot.slane %v3405, 5
    %v3949 = vsel %vm845, %v3946, %v3948
    %v3950 = vrot.slane %v3406, 5
    %v3951 = vsel %vm845, %v3948, %v3950
    %v3952 = vrot.slane %v3407, 5
    %v3953 = vsel %vm845, %v3950, %v3952
    %v3954 = vrot.slane %v3408, 5
    %v3955 = vsel %vm845, %v3952, %v3954
    %v3956 = vrot.slane %v3409, 5
    %v3957 = vsel %vm845, %v3954, %v3956
    %v3958 = vrot.slane %v3410, 5
    %v3959 = vsel %vm845, %v3956, %v3958
    %v3960 = vrot.slane %v3411, 5
    %v3961 = vsel %vm845, %v3958, %v3960
    %v3962 = vrot.slane %v3412, 5
    %v3963 = vsel %vm845, %v3960, %v3962
    %v3964 = vrot.slane %v3413, 5
    %v3965 = vsel %vm845, %v3962, %v3964
    %v3966 = vrot.slane %v3414, 5
    %v3967 = vsel %vm845, %v3964, %v3966
    %v3968 = vrot.slane %v3415, 5
    %v3969 = vsel %vm845, %v3966, %v3968
    %v3970 = vrot.slane %v3416, 5
    %v3971 = vsel %vm845, %v3968, %v3970
    %v3972 = vrot.slane %v3417, 5
    %v3973 = vsel %vm845, %v3970, %v3972
    %v3974 = vrot.slane %v3418, 5
    %v3975 = vsel %vm845, %v3972, %v3974
    %v3976 = vrot.slane %v3419, 5
    %v3977 = vsel %vm845, %v3974, %v3976
    %3978 = vrot.lane.b32.xlu0 %v3931, 15
    %v3979 = vpop.permute.xlu0 %3978
    %3980 = vrot.lane.b32.xlu0 %v3933, 15
    %v3981 = vpop.permute.xlu0 %3980
    %3982 = vrot.lane.b32.xlu0 %v3935, 15
    %v3983 = vpop.permute.xlu0 %3982
    %3984 = vrot.lane.b32.xlu0 %v3937, 15
    %v3985 = vpop.permute.xlu0 %3984
    %3986 = vrot.lane.b32.xlu0 %v3939, 15
    %v3987 = vpop.permute.xlu0 %3986
    %3988 = vrot.lane.b32.xlu0 %v3941, 15
    %v3989 = vpop.permute.xlu0 %3988
    %3990 = vrot.lane.b32.xlu0 %v3943, 15
    %v3991 = vpop.permute.xlu0 %3990
    %3992 = vrot.lane.b32.xlu0 %v3945, 15
    %v3993 = vpop.permute.xlu0 %3992
    %3994 = vrot.lane.b32.xlu0 %v3947, 15
    %v3995 = vpop.permute.xlu0 %3994
    %3996 = vrot.lane.b32.xlu0 %v3949, 15
    %v3997 = vpop.permute.xlu0 %3996
    %3998 = vrot.lane.b32.xlu0 %v3951, 15
    %v3999 = vpop.permute.xlu0 %3998
    %4000 = vrot.lane.b32.xlu0 %v3953, 15
    %v4001 = vpop.permute.xlu0 %4000
    %4002 = vrot.lane.b32.xlu0 %v3955, 15
    %v4003 = vpop.permute.xlu0 %4002
    %4004 = vrot.lane.b32.xlu0 %v3957, 15
    %v4005 = vpop.permute.xlu0 %4004
    %4006 = vrot.lane.b32.xlu0 %v3959, 15
    %v4007 = vpop.permute.xlu0 %4006
    %4008 = vrot.lane.b32.xlu0 %v3961, 15
    %v4009 = vpop.permute.xlu0 %4008
    %4010 = vrot.lane.b32.xlu0 %v3963, 15
    %v4011 = vpop.permute.xlu0 %4010
    %4012 = vrot.lane.b32.xlu0 %v3965, 15
    %v4013 = vpop.permute.xlu0 %4012
    %4014 = vrot.lane.b32.xlu0 %v3967, 15
    %v4015 = vpop.permute.xlu0 %4014
    %4016 = vrot.lane.b32.xlu0 %v3969, 15
    %v4017 = vpop.permute.xlu0 %4016
    %4018 = vrot.lane.b32.xlu0 %v3971, 15
    %v4019 = vpop.permute.xlu0 %4018
    %4020 = vrot.lane.b32.xlu0 %v3973, 15
    %v4021 = vpop.permute.xlu0 %4020
    %4022 = vrot.lane.b32.xlu0 %v3975, 15
    %v4023 = vpop.permute.xlu0 %4022
    %4024 = vrot.lane.b32.xlu0 %v3977, 15
    %v4025 = vpop.permute.xlu0 %4024
    %v4050 = vrot.slane %v3395, 6
    %v4051 = vrot.slane %v3396, 6
    %v4052 = vsel %vm967, %v4050, %v4051
    %v4053 = vrot.slane %v3397, 6
    %v4054 = vsel %vm967, %v4051, %v4053
    %v4055 = vrot.slane %v3398, 6
    %v4056 = vsel %vm967, %v4053, %v4055
    %v4057 = vrot.slane %v3399, 6
    %v4058 = vsel %vm967, %v4055, %v4057
    %v4059 = vrot.slane %v3400, 6
    %v4060 = vsel %vm967, %v4057, %v4059
    %v4061 = vrot.slane %v3401, 6
    %v4062 = vsel %vm967, %v4059, %v4061
    %v4063 = vrot.slane %v3402, 6
    %v4064 = vsel %vm967, %v4061, %v4063
    %v4065 = vrot.slane %v3403, 6
    %v4066 = vsel %vm967, %v4063, %v4065
    %v4067 = vrot.slane %v3404, 6
    %v4068 = vsel %vm967, %v4065, %v4067
    %v4069 = vrot.slane %v3405, 6
    %v4070 = vsel %vm967, %v4067, %v4069
    %v4071 = vrot.slane %v3406, 6
    %v4072 = vsel %vm967, %v4069, %v4071
    %v4073 = vrot.slane %v3407, 6
    %v4074 = vsel %vm967, %v4071, %v4073
    %v4075 = vrot.slane %v3408, 6
    %v4076 = vsel %vm967, %v4073, %v4075
    %v4077 = vrot.slane %v3409, 6
    %v4078 = vsel %vm967, %v4075, %v4077
    %v4079 = vrot.slane %v3410, 6
    %v4080 = vsel %vm967, %v4077, %v4079
    %v4081 = vrot.slane %v3411, 6
    %v4082 = vsel %vm967, %v4079, %v4081
    %v4083 = vrot.slane %v3412, 6
    %v4084 = vsel %vm967, %v4081, %v4083
    %v4085 = vrot.slane %v3413, 6
    %v4086 = vsel %vm967, %v4083, %v4085
    %v4087 = vrot.slane %v3414, 6
    %v4088 = vsel %vm967, %v4085, %v4087
    %v4089 = vrot.slane %v3415, 6
    %v4090 = vsel %vm967, %v4087, %v4089
    %v4091 = vrot.slane %v3416, 6
    %v4092 = vsel %vm967, %v4089, %v4091
    %v4093 = vrot.slane %v3417, 6
    %v4094 = vsel %vm967, %v4091, %v4093
    %v4095 = vrot.slane %v3418, 6
    %v4096 = vsel %vm967, %v4093, %v4095
    %v4097 = vrot.slane %v3419, 6
    %v4098 = vsel %vm967, %v4095, %v4097
    %4099 = vrot.lane.b32.xlu0 %v4052, 18
    %v4100 = vpop.permute.xlu0 %4099
    %4101 = vrot.lane.b32.xlu0 %v4054, 18
    %v4102 = vpop.permute.xlu0 %4101
    %4103 = vrot.lane.b32.xlu0 %v4056, 18
    %v4104 = vpop.permute.xlu0 %4103
    %4105 = vrot.lane.b32.xlu0 %v4058, 18
    %v4106 = vpop.permute.xlu0 %4105
    %4107 = vrot.lane.b32.xlu0 %v4060, 18
    %v4108 = vpop.permute.xlu0 %4107
    %4109 = vrot.lane.b32.xlu0 %v4062, 18
    %v4110 = vpop.permute.xlu0 %4109
    %4111 = vrot.lane.b32.xlu0 %v4064, 18
    %v4112 = vpop.permute.xlu0 %4111
    %4113 = vrot.lane.b32.xlu0 %v4066, 18
    %v4114 = vpop.permute.xlu0 %4113
    %4115 = vrot.lane.b32.xlu0 %v4068, 18
    %v4116 = vpop.permute.xlu0 %4115
    %4117 = vrot.lane.b32.xlu0 %v4070, 18
    %v4118 = vpop.permute.xlu0 %4117
    %4119 = vrot.lane.b32.xlu0 %v4072, 18
    %v4120 = vpop.permute.xlu0 %4119
    %4121 = vrot.lane.b32.xlu0 %v4074, 18
    %v4122 = vpop.permute.xlu0 %4121
    %4123 = vrot.lane.b32.xlu0 %v4076, 18
    %v4124 = vpop.permute.xlu0 %4123
    %4125 = vrot.lane.b32.xlu0 %v4078, 18
    %v4126 = vpop.permute.xlu0 %4125
    %4127 = vrot.lane.b32.xlu0 %v4080, 18
    %v4128 = vpop.permute.xlu0 %4127
    %4129 = vrot.lane.b32.xlu0 %v4082, 18
    %v4130 = vpop.permute.xlu0 %4129
    %4131 = vrot.lane.b32.xlu0 %v4084, 18
    %v4132 = vpop.permute.xlu0 %4131
    %4133 = vrot.lane.b32.xlu0 %v4086, 18
    %v4134 = vpop.permute.xlu0 %4133
    %4135 = vrot.lane.b32.xlu0 %v4088, 18
    %v4136 = vpop.permute.xlu0 %4135
    %4137 = vrot.lane.b32.xlu0 %v4090, 18
    %v4138 = vpop.permute.xlu0 %4137
    %4139 = vrot.lane.b32.xlu0 %v4092, 18
    %v4140 = vpop.permute.xlu0 %4139
    %4141 = vrot.lane.b32.xlu0 %v4094, 18
    %v4142 = vpop.permute.xlu0 %4141
    %4143 = vrot.lane.b32.xlu0 %v4096, 18
    %v4144 = vpop.permute.xlu0 %4143
    %4145 = vrot.lane.b32.xlu0 %v4098, 18
    %v4146 = vpop.permute.xlu0 %4145
    %v4171 = vrot.slane %v3395, 7
    %v4172 = vrot.slane %v3396, 7
    %v4173 = vsel %vm1089, %v4171, %v4172
    %v4174 = vrot.slane %v3397, 7
    %v4175 = vsel %vm1089, %v4172, %v4174
    %v4176 = vrot.slane %v3398, 7
    %v4177 = vsel %vm1089, %v4174, %v4176
    %v4178 = vrot.slane %v3399, 7
    %v4179 = vsel %vm1089, %v4176, %v4178
    %v4180 = vrot.slane %v3400, 7
    %v4181 = vsel %vm1089, %v4178, %v4180
    %v4182 = vrot.slane %v3401, 7
    %v4183 = vsel %vm1089, %v4180, %v4182
    %v4184 = vrot.slane %v3402, 7
    %v4185 = vsel %vm1089, %v4182, %v4184
    %v4186 = vrot.slane %v3403, 7
    %v4187 = vsel %vm1089, %v4184, %v4186
    %v4188 = vrot.slane %v3404, 7
    %v4189 = vsel %vm1089, %v4186, %v4188
    %v4190 = vrot.slane %v3405, 7
    %v4191 = vsel %vm1089, %v4188, %v4190
    %v4192 = vrot.slane %v3406, 7
    %v4193 = vsel %vm1089, %v4190, %v4192
    %v4194 = vrot.slane %v3407, 7
    %v4195 = vsel %vm1089, %v4192, %v4194
    %v4196 = vrot.slane %v3408, 7
    %v4197 = vsel %vm1089, %v4194, %v4196
    %v4198 = vrot.slane %v3409, 7
    %v4199 = vsel %vm1089, %v4196, %v4198
    %v4200 = vrot.slane %v3410, 7
    %v4201 = vsel %vm1089, %v4198, %v4200
    %v4202 = vrot.slane %v3411, 7
    %v4203 = vsel %vm1089, %v4200, %v4202
    %v4204 = vrot.slane %v3412, 7
    %v4205 = vsel %vm1089, %v4202, %v4204
    %v4206 = vrot.slane %v3413, 7
    %v4207 = vsel %vm1089, %v4204, %v4206
    %v4208 = vrot.slane %v3414, 7
    %v4209 = vsel %vm1089, %v4206, %v4208
    %v4210 = vrot.slane %v3415, 7
    %v4211 = vsel %vm1089, %v4208, %v4210
    %v4212 = vrot.slane %v3416, 7
    %v4213 = vsel %vm1089, %v4210, %v4212
    %v4214 = vrot.slane %v3417, 7
    %v4215 = vsel %vm1089, %v4212, %v4214
    %v4216 = vrot.slane %v3418, 7
    %v4217 = vsel %vm1089, %v4214, %v4216
    %v4218 = vrot.slane %v3419, 7
    %v4219 = vsel %vm1089, %v4216, %v4218
    %4220 = vrot.lane.b32.xlu0 %v4173, 21
    %v4221 = vpop.permute.xlu0 %4220
    %4222 = vrot.lane.b32.xlu0 %v4175, 21
    %v4223 = vpop.permute.xlu0 %4222
    %4224 = vrot.lane.b32.xlu0 %v4177, 21
    %v4225 = vpop.permute.xlu0 %4224
    %4226 = vrot.lane.b32.xlu0 %v4179, 21
    %v4227 = vpop.permute.xlu0 %4226
    %4228 = vrot.lane.b32.xlu0 %v4181, 21
    %v4229 = vpop.permute.xlu0 %4228
    %4230 = vrot.lane.b32.xlu0 %v4183, 21
    %v4231 = vpop.permute.xlu0 %4230
    %4232 = vrot.lane.b32.xlu0 %v4185, 21
    %v4233 = vpop.permute.xlu0 %4232
    %4234 = vrot.lane.b32.xlu0 %v4187, 21
    %v4235 = vpop.permute.xlu0 %4234
    %4236 = vrot.lane.b32.xlu0 %v4189, 21
    %v4237 = vpop.permute.xlu0 %4236
    %4238 = vrot.lane.b32.xlu0 %v4191, 21
    %v4239 = vpop.permute.xlu0 %4238
    %4240 = vrot.lane.b32.xlu0 %v4193, 21
    %v4241 = vpop.permute.xlu0 %4240
    %4242 = vrot.lane.b32.xlu0 %v4195, 21
    %v4243 = vpop.permute.xlu0 %4242
    %4244 = vrot.lane.b32.xlu0 %v4197, 21
    %v4245 = vpop.permute.xlu0 %4244
    %4246 = vrot.lane.b32.xlu0 %v4199, 21
    %v4247 = vpop.permute.xlu0 %4246
    %4248 = vrot.lane.b32.xlu0 %v4201, 21
    %v4249 = vpop.permute.xlu0 %4248
    %4250 = vrot.lane.b32.xlu0 %v4203, 21
    %v4251 = vpop.permute.xlu0 %4250
    %4252 = vrot.lane.b32.xlu0 %v4205, 21
    %v4253 = vpop.permute.xlu0 %4252
    %4254 = vrot.lane.b32.xlu0 %v4207, 21
    %v4255 = vpop.permute.xlu0 %4254
    %4256 = vrot.lane.b32.xlu0 %v4209, 21
    %v4257 = vpop.permute.xlu0 %4256
    %4258 = vrot.lane.b32.xlu0 %v4211, 21
    %v4259 = vpop.permute.xlu0 %4258
    %4260 = vrot.lane.b32.xlu0 %v4213, 21
    %v4261 = vpop.permute.xlu0 %4260
    %4262 = vrot.lane.b32.xlu0 %v4215, 21
    %v4263 = vpop.permute.xlu0 %4262
    %4264 = vrot.lane.b32.xlu0 %v4217, 21
    %v4265 = vpop.permute.xlu0 %4264
    %4266 = vrot.lane.b32.xlu0 %v4219, 21
    %v4267 = vpop.permute.xlu0 %4266
    %4292 = vrot.lane.b32.xlu0 %v3396, 24
    %v4293 = vpop.permute.xlu0 %4292
    %4294 = vrot.lane.b32.xlu0 %v3397, 24
    %v4295 = vpop.permute.xlu0 %4294
    %4296 = vrot.lane.b32.xlu0 %v3398, 24
    %v4297 = vpop.permute.xlu0 %4296
    %4298 = vrot.lane.b32.xlu0 %v3399, 24
    %v4299 = vpop.permute.xlu0 %4298
    %4300 = vrot.lane.b32.xlu0 %v3400, 24
    %v4301 = vpop.permute.xlu0 %4300
    %4302 = vrot.lane.b32.xlu0 %v3401, 24
    %v4303 = vpop.permute.xlu0 %4302
    %4304 = vrot.lane.b32.xlu0 %v3402, 24
    %v4305 = vpop.permute.xlu0 %4304
    %4306 = vrot.lane.b32.xlu0 %v3403, 24
    %v4307 = vpop.permute.xlu0 %4306
    %4308 = vrot.lane.b32.xlu0 %v3404, 24
    %v4309 = vpop.permute.xlu0 %4308
    %4310 = vrot.lane.b32.xlu0 %v3405, 24
    %v4311 = vpop.permute.xlu0 %4310
    %4312 = vrot.lane.b32.xlu0 %v3406, 24
    %v4313 = vpop.permute.xlu0 %4312
    %4314 = vrot.lane.b32.xlu0 %v3407, 24
    %v4315 = vpop.permute.xlu0 %4314
    %4316 = vrot.lane.b32.xlu0 %v3408, 24
    %v4317 = vpop.permute.xlu0 %4316
    %4318 = vrot.lane.b32.xlu0 %v3409, 24
    %v4319 = vpop.permute.xlu0 %4318
    %4320 = vrot.lane.b32.xlu0 %v3410, 24
    %v4321 = vpop.permute.xlu0 %4320
    %4322 = vrot.lane.b32.xlu0 %v3411, 24
    %v4323 = vpop.permute.xlu0 %4322
    %4324 = vrot.lane.b32.xlu0 %v3412, 24
    %v4325 = vpop.permute.xlu0 %4324
    %4326 = vrot.lane.b32.xlu0 %v3413, 24
    %v4327 = vpop.permute.xlu0 %4326
    %4328 = vrot.lane.b32.xlu0 %v3414, 24
    %v4329 = vpop.permute.xlu0 %4328
    %4330 = vrot.lane.b32.xlu0 %v3415, 24
    %v4331 = vpop.permute.xlu0 %4330
    %4332 = vrot.lane.b32.xlu0 %v3416, 24
    %v4333 = vpop.permute.xlu0 %4332
    %4334 = vrot.lane.b32.xlu0 %v3417, 24
    %v4335 = vpop.permute.xlu0 %4334
    %4336 = vrot.lane.b32.xlu0 %v3418, 24
    %v4337 = vpop.permute.xlu0 %4336
    %4338 = vrot.lane.b32.xlu0 %v3419, 24
    %v4339 = vpop.permute.xlu0 %4338
    %v4364 = vsel %vm1283, %v3395, %v3495
    %v4365 = vsel %vm1283, %v3396, %v3497
    %v4366 = vsel %vm1283, %v3397, %v3499
    %v4367 = vsel %vm1283, %v3398, %v3501
    %v4368 = vsel %vm1283, %v3399, %v3503
    %v4369 = vsel %vm1283, %v3400, %v3505
    %v4370 = vsel %vm1283, %v3401, %v3507
    %v4371 = vsel %vm1283, %v3402, %v3509
    %v4372 = vsel %vm1283, %v3403, %v3511
    %v4373 = vsel %vm1283, %v3404, %v3513
    %v4374 = vsel %vm1283, %v3405, %v3515
    %v4375 = vsel %vm1283, %v3406, %v3517
    %v4376 = vsel %vm1283, %v3407, %v3519
    %v4377 = vsel %vm1283, %v3408, %v3521
    %v4378 = vsel %vm1283, %v3409, %v3523
    %v4379 = vsel %vm1283, %v3410, %v3525
    %v4380 = vsel %vm1283, %v3411, %v3527
    %v4381 = vsel %vm1283, %v3412, %v3529
    %v4382 = vsel %vm1283, %v3413, %v3531
    %v4383 = vsel %vm1283, %v3414, %v3533
    %v4384 = vsel %vm1283, %v3415, %v3535
    %v4385 = vsel %vm1283, %v3416, %v3537
    %v4386 = vsel %vm1283, %v3417, %v3539
    %v4387 = vsel %vm1283, %v3418, %v3541
    %v4388 = vsel %vm1308, %v4364, %v3616
    %v4389 = vsel %vm1308, %v4365, %v3618
    %v4390 = vsel %vm1308, %v4366, %v3620
    %v4391 = vsel %vm1308, %v4367, %v3622
    %v4392 = vsel %vm1308, %v4368, %v3624
    %v4393 = vsel %vm1308, %v4369, %v3626
    %v4394 = vsel %vm1308, %v4370, %v3628
    %v4395 = vsel %vm1308, %v4371, %v3630
    %v4396 = vsel %vm1308, %v4372, %v3632
    %v4397 = vsel %vm1308, %v4373, %v3634
    %v4398 = vsel %vm1308, %v4374, %v3636
    %v4399 = vsel %vm1308, %v4375, %v3638
    %v4400 = vsel %vm1308, %v4376, %v3640
    %v4401 = vsel %vm1308, %v4377, %v3642
    %v4402 = vsel %vm1308, %v4378, %v3644
    %v4403 = vsel %vm1308, %v4379, %v3646
    %v4404 = vsel %vm1308, %v4380, %v3648
    %v4405 = vsel %vm1308, %v4381, %v3650
    %v4406 = vsel %vm1308, %v4382, %v3652
    %v4407 = vsel %vm1308, %v4383, %v3654
    %v4408 = vsel %vm1308, %v4384, %v3656
    %v4409 = vsel %vm1308, %v4385, %v3658
    %v4410 = vsel %vm1308, %v4386, %v3660
    %v4411 = vsel %vm1308, %v4387, %v3662
    %v4412 = vsel %vm1333, %v4388, %v3737
    %v4413 = vsel %vm1333, %v4389, %v3739
    %v4414 = vsel %vm1333, %v4390, %v3741
    %v4415 = vsel %vm1333, %v4391, %v3743
    %v4416 = vsel %vm1333, %v4392, %v3745
    %v4417 = vsel %vm1333, %v4393, %v3747
    %v4418 = vsel %vm1333, %v4394, %v3749
    %v4419 = vsel %vm1333, %v4395, %v3751
    %v4420 = vsel %vm1333, %v4396, %v3753
    %v4421 = vsel %vm1333, %v4397, %v3755
    %v4422 = vsel %vm1333, %v4398, %v3757
    %v4423 = vsel %vm1333, %v4399, %v3759
    %v4424 = vsel %vm1333, %v4400, %v3761
    %v4425 = vsel %vm1333, %v4401, %v3763
    %v4426 = vsel %vm1333, %v4402, %v3765
    %v4427 = vsel %vm1333, %v4403, %v3767
    %v4428 = vsel %vm1333, %v4404, %v3769
    %v4429 = vsel %vm1333, %v4405, %v3771
    %v4430 = vsel %vm1333, %v4406, %v3773
    %v4431 = vsel %vm1333, %v4407, %v3775
    %v4432 = vsel %vm1333, %v4408, %v3777
    %v4433 = vsel %vm1333, %v4409, %v3779
    %v4434 = vsel %vm1333, %v4410, %v3781
    %v4435 = vsel %vm1333, %v4411, %v3783
    %v4436 = vsel %vm1358, %v4412, %v3858
    %v4437 = vsel %vm1358, %v4413, %v3860
    %v4438 = vsel %vm1358, %v4414, %v3862
    %v4439 = vsel %vm1358, %v4415, %v3864
    %v4440 = vsel %vm1358, %v4416, %v3866
    %v4441 = vsel %vm1358, %v4417, %v3868
    %v4442 = vsel %vm1358, %v4418, %v3870
    %v4443 = vsel %vm1358, %v4419, %v3872
    %v4444 = vsel %vm1358, %v4420, %v3874
    %v4445 = vsel %vm1358, %v4421, %v3876
    %v4446 = vsel %vm1358, %v4422, %v3878
    %v4447 = vsel %vm1358, %v4423, %v3880
    %v4448 = vsel %vm1358, %v4424, %v3882
    %v4449 = vsel %vm1358, %v4425, %v3884
    %v4450 = vsel %vm1358, %v4426, %v3886
    %v4451 = vsel %vm1358, %v4427, %v3888
    %v4452 = vsel %vm1358, %v4428, %v3890
    %v4453 = vsel %vm1358, %v4429, %v3892
    %v4454 = vsel %vm1358, %v4430, %v3894
    %v4455 = vsel %vm1358, %v4431, %v3896
    %v4456 = vsel %vm1358, %v4432, %v3898
    %v4457 = vsel %vm1358, %v4433, %v3900
    %v4458 = vsel %vm1358, %v4434, %v3902
    %v4459 = vsel %vm1358, %v4435, %v3904
    %v4460 = vsel %vm1383, %v4436, %v3979
    %v4461 = vsel %vm1383, %v4437, %v3981
    %v4462 = vsel %vm1383, %v4438, %v3983
    %v4463 = vsel %vm1383, %v4439, %v3985
    %v4464 = vsel %vm1383, %v4440, %v3987
    %v4465 = vsel %vm1383, %v4441, %v3989
    %v4466 = vsel %vm1383, %v4442, %v3991
    %v4467 = vsel %vm1383, %v4443, %v3993
    %v4468 = vsel %vm1383, %v4444, %v3995
    %v4469 = vsel %vm1383, %v4445, %v3997
    %v4470 = vsel %vm1383, %v4446, %v3999
    %v4471 = vsel %vm1383, %v4447, %v4001
    %v4472 = vsel %vm1383, %v4448, %v4003
    %v4473 = vsel %vm1383, %v4449, %v4005
    %v4474 = vsel %vm1383, %v4450, %v4007
    %v4475 = vsel %vm1383, %v4451, %v4009
    %v4476 = vsel %vm1383, %v4452, %v4011
    %v4477 = vsel %vm1383, %v4453, %v4013
    %v4478 = vsel %vm1383, %v4454, %v4015
    %v4479 = vsel %vm1383, %v4455, %v4017
    %v4480 = vsel %vm1383, %v4456, %v4019
    %v4481 = vsel %vm1383, %v4457, %v4021
    %v4482 = vsel %vm1383, %v4458, %v4023
    %v4483 = vsel %vm1383, %v4459, %v4025
    %v4484 = vsel %vm1408, %v4460, %v4100
    %v4485 = vsel %vm1408, %v4461, %v4102
    %v4486 = vsel %vm1408, %v4462, %v4104
    %v4487 = vsel %vm1408, %v4463, %v4106
    %v4488 = vsel %vm1408, %v4464, %v4108
    %v4489 = vsel %vm1408, %v4465, %v4110
    %v4490 = vsel %vm1408, %v4466, %v4112
    %v4491 = vsel %vm1408, %v4467, %v4114
    %v4492 = vsel %vm1408, %v4468, %v4116
    %v4493 = vsel %vm1408, %v4469, %v4118
    %v4494 = vsel %vm1408, %v4470, %v4120
    %v4495 = vsel %vm1408, %v4471, %v4122
    %v4496 = vsel %vm1408, %v4472, %v4124
    %v4497 = vsel %vm1408, %v4473, %v4126
    %v4498 = vsel %vm1408, %v4474, %v4128
    %v4499 = vsel %vm1408, %v4475, %v4130
    %v4500 = vsel %vm1408, %v4476, %v4132
    %v4501 = vsel %vm1408, %v4477, %v4134
    %v4502 = vsel %vm1408, %v4478, %v4136
    %v4503 = vsel %vm1408, %v4479, %v4138
    %v4504 = vsel %vm1408, %v4480, %v4140
    %v4505 = vsel %vm1408, %v4481, %v4142
    %v4506 = vsel %vm1408, %v4482, %v4144
    %v4507 = vsel %vm1408, %v4483, %v4146
    %v4508 = vsel %vm1433, %v4484, %v4221
    %v4509 = vsel %vm1433, %v4485, %v4223
    %v4510 = vsel %vm1433, %v4486, %v4225
    %v4511 = vsel %vm1433, %v4487, %v4227
    %v4512 = vsel %vm1433, %v4488, %v4229
    %v4513 = vsel %vm1433, %v4489, %v4231
    %v4514 = vsel %vm1433, %v4490, %v4233
    %v4515 = vsel %vm1433, %v4491, %v4235
    %v4516 = vsel %vm1433, %v4492, %v4237
    %v4517 = vsel %vm1433, %v4493, %v4239
    %v4518 = vsel %vm1433, %v4494, %v4241
    %v4519 = vsel %vm1433, %v4495, %v4243
    %v4520 = vsel %vm1433, %v4496, %v4245
    %v4521 = vsel %vm1433, %v4497, %v4247
    %v4522 = vsel %vm1433, %v4498, %v4249
    %v4523 = vsel %vm1433, %v4499, %v4251
    %v4524 = vsel %vm1433, %v4500, %v4253
    %v4525 = vsel %vm1433, %v4501, %v4255
    %v4526 = vsel %vm1433, %v4502, %v4257
    %v4527 = vsel %vm1433, %v4503, %v4259
    %v4528 = vsel %vm1433, %v4504, %v4261
    %v4529 = vsel %vm1433, %v4505, %v4263
    %v4530 = vsel %vm1433, %v4506, %v4265
    %v4531 = vsel %vm1433, %v4507, %v4267
    %v4532 = vsel %vm1458, %v4508, %v4293
    %v4533 = vsel %vm1458, %v4509, %v4295
    %v4534 = vsel %vm1458, %v4510, %v4297
    %v4535 = vsel %vm1458, %v4511, %v4299
    %v4536 = vsel %vm1458, %v4512, %v4301
    %v4537 = vsel %vm1458, %v4513, %v4303
    %v4538 = vsel %vm1458, %v4514, %v4305
    %v4539 = vsel %vm1458, %v4515, %v4307
    %v4540 = vsel %vm1458, %v4516, %v4309
    %v4541 = vsel %vm1458, %v4517, %v4311
    %v4542 = vsel %vm1458, %v4518, %v4313
    %v4543 = vsel %vm1458, %v4519, %v4315
    %v4544 = vsel %vm1458, %v4520, %v4317
    %v4545 = vsel %vm1458, %v4521, %v4319
    %v4546 = vsel %vm1458, %v4522, %v4321
    %v4547 = vsel %vm1458, %v4523, %v4323
    %v4548 = vsel %vm1458, %v4524, %v4325
    %v4549 = vsel %vm1458, %v4525, %v4327
    %v4550 = vsel %vm1458, %v4526, %v4329
    %v4551 = vsel %vm1458, %v4527, %v4331
    %v4552 = vsel %vm1458, %v4528, %v4333
    %v4553 = vsel %vm1458, %v4529, %v4335
    %v4554 = vsel %vm1458, %v4530, %v4337
    %v4555 = vsel %vm1458, %v4531, %v4339
    %v4556 = vpack.c.bf16 %v4533, %v4532
    %v4557 = vpack.c.bf16 %v4535, %v4534
    %v4558 = vpack.c.bf16 %v4537, %v4536
    %v4559 = vpack.c.bf16 %v4539, %v4538
    %v4560 = vpack.c.bf16 %v4541, %v4540
    %v4561 = vpack.c.bf16 %v4543, %v4542
    %v4562 = vpack.c.bf16 %v4545, %v4544
    %v4563 = vpack.c.bf16 %v4547, %v4546
    %v4564 = vpack.c.bf16 %v4549, %v4548
    %v4565 = vpack.c.bf16 %v4551, %v4550
    %v4566 = vpack.c.bf16 %v4553, %v4552
    %v4567 = vpack.c.bf16 %v4555, %v4554
    %v4569 = vsel %vm1512, %v4556, 0
    %v4572 = vsel %vm1512, %v4557, 0
    %v4575 = vsel %vm1512, %v4558, 0
    %v4578 = vsel %vm1512, %v4559, 0
    %v4581 = vsel %vm1512, %v4560, 0
    %v4584 = vsel %vm1512, %v4561, 0
    %v4587 = vsel %vm1512, %v4562, 0
    %v4590 = vsel %vm1512, %v4563, 0
    %v4593 = vsel %vm1512, %v4564, 0
    %v4596 = vsel %vm1512, %v4565, 0
    %v4599 = vsel %vm1512, %v4566, 0
    %v4602 = vsel %vm1512, %v4567, 0
    %4604 = vmatprep.subr.bf16.mxu0 0
    %4605 = vmatpush1.bf16.msra.mxu0 %v1509
    %4606 = vmatprep.subr.bf16.mxu0 0
    %4607 = vmatpush1.bf16.msra.mxu0 %v1552
    %4608 = vmatprep.subr.bf16.mxu0 0
    %4609 = vmatpush1.bf16.msra.mxu0 0
    %4610 = vmatprep.subr.bf16.mxu0 0
    %4611 = vmatpush1.bf16.msra.mxu0 0
    %4612 = vmatprep.subr.bf16.mxu0 0
    %4613 = vmatpush1.bf16.msra.mxu0 0
    %4614 = vmatprep.subr.bf16.mxu0 0
    %4615 = vmatpush1.bf16.msra.mxu0 0
    %4616 = vmatprep.subr.bf16.mxu0 0
    %4617 = vmatpush1.bf16.msra.mxu0 0
    %4618 = vmatprep.subr.bf16.mxu0 0
    %4619 = vmatpush1.bf16.msra.mxu0 0
    %4620 = vmatprep.subr.bf16.mxu0 0
    %4621 = vmatpush1.bf16.msra.mxu0 0
    %4622 = vmatprep.subr.bf16.mxu0 0
    %4623 = vmatpush1.bf16.msra.mxu0 0
    %4624 = vmatprep.subr.bf16.mxu0 0
    %4625 = vmatpush1.bf16.msra.mxu0 0
    %4626 = vmatprep.subr.bf16.mxu0 0
    %4627 = vmatpush1.bf16.msra.mxu0 0
    %4628 = vmatprep.subr.bf16.mxu0 0
    %4629 = vmatpush1.bf16.msra.mxu0 0
    %4630 = vmatprep.subr.bf16.mxu0 0
    %4631 = vmatpush1.bf16.msra.mxu0 0
    %4632 = vmatprep.subr.bf16.mxu0 0
    %4633 = vmatpush1.bf16.msra.mxu0 0
    %4634 = vmatprep.subr.bf16.mxu0 0
    %4635 = vmatpush1.bf16.msra.mxu0 0
    %4636 = vmatprep.mubr.bf16.mxu0 0
    %4637 = vmatmul.mubr.bf16.gmra.mrb[0].mxu0 %v4569
    %v4638 = vpop.f32.mrb[0].mxu0
    %v4639 = vadd.f32 %v1499, %v4638
    %v4640 = vpop.f32.mrb[0].mxu0
    %v4641 = vpop.f32.mrb[0].mxu0
    %v4642 = vadd.f32 %v1499, %v4641
    %v4643 = vpop.f32.mrb[0].mxu0
    %4644 = vmatprep.mubr.bf16.mxu0 0
    %4645 = vmatmul.mubr.bf16.gmra.mrb[0].mxu0 %v4572
    %v4646 = vpop.f32.mrb[0].mxu0
    %v4647 = vadd.f32 %v1499, %v4646
    %v4648 = vpop.f32.mrb[0].mxu0
    %v4649 = vpop.f32.mrb[0].mxu0
    %v4650 = vadd.f32 %v1499, %v4649
    %v4651 = vpop.f32.mrb[0].mxu0
    %4652 = vmatprep.mubr.bf16.mxu0 0
    %4653 = vmatmul.mubr.bf16.gmra.mrb[0].mxu0 %v4575
    %v4654 = vpop.f32.mrb[0].mxu0
    %v4655 = vadd.f32 %v1499, %v4654
    %v4656 = vpop.f32.mrb[0].mxu0
    %v4657 = vpop.f32.mrb[0].mxu0
    %v4658 = vadd.f32 %v1499, %v4657
    %v4659 = vpop.f32.mrb[0].mxu0
    %4660 = vmatprep.mubr.bf16.mxu0 0
    %4661 = vmatmul.mubr.bf16.gmra.mrb[0].mxu0 %v4578
    %v4662 = vpop.f32.mrb[0].mxu0
    %v4663 = vadd.f32 %v1499, %v4662
    %v4664 = vpop.f32.mrb[0].mxu0
    %v4665 = vpop.f32.mrb[0].mxu0
    %v4666 = vadd.f32 %v1499, %v4665
    %v4667 = vpop.f32.mrb[0].mxu0
    %4668 = vmatprep.mubr.bf16.mxu0 0
    %4669 = vmatmul.mubr.bf16.gmra.mrb[0].mxu0 %v4581
    %v4670 = vpop.f32.mrb[0].mxu0
    %v4671 = vadd.f32 %v1499, %v4670
    %v4672 = vpop.f32.mrb[0].mxu0
    %v4673 = vpop.f32.mrb[0].mxu0
    %v4674 = vadd.f32 %v1499, %v4673
    %v4675 = vpop.f32.mrb[0].mxu0
    %4676 = vmatprep.mubr.bf16.mxu0 0
    %4677 = vmatmul.mubr.bf16.gmra.mrb[0].mxu0 %v4584
    %v4678 = vpop.f32.mrb[0].mxu0
    %v4679 = vadd.f32 %v1499, %v4678
    %v4680 = vpop.f32.mrb[0].mxu0
    %v4681 = vpop.f32.mrb[0].mxu0
    %v4682 = vadd.f32 %v1499, %v4681
    %v4683 = vpop.f32.mrb[0].mxu0
    %4684 = vmatprep.mubr.bf16.mxu0 0
    %4685 = vmatmul.mubr.bf16.gmra.mrb[0].mxu0 %v4587
    %v4686 = vpop.f32.mrb[0].mxu0
    %v4687 = vadd.f32 %v1499, %v4686
    %v4688 = vpop.f32.mrb[0].mxu0
    %v4689 = vpop.f32.mrb[0].mxu0
    %v4690 = vadd.f32 %v1499, %v4689
    %v4691 = vpop.f32.mrb[0].mxu0
    %4692 = vmatprep.mubr.bf16.mxu0 0
    %4693 = vmatmul.mubr.bf16.gmra.mrb[0].mxu0 %v4590
    %v4694 = vpop.f32.mrb[0].mxu0
    %v4695 = vadd.f32 %v1499, %v4694
    %v4696 = vpop.f32.mrb[0].mxu0
    %v4697 = vpop.f32.mrb[0].mxu0
    %v4698 = vadd.f32 %v1499, %v4697
    %v4699 = vpop.f32.mrb[0].mxu0
    %4700 = vmatprep.mubr.bf16.mxu0 0
    %4701 = vmatmul.mubr.bf16.gmra.mrb[0].mxu0 %v4593
    %v4702 = vpop.f32.mrb[0].mxu0
    %v4703 = vadd.f32 %v1499, %v4702
    %v4704 = vpop.f32.mrb[0].mxu0
    %v4705 = vpop.f32.mrb[0].mxu0
    %v4706 = vadd.f32 %v1499, %v4705
    %v4707 = vpop.f32.mrb[0].mxu0
    %4708 = vmatprep.mubr.bf16.mxu0 0
    %4709 = vmatmul.mubr.bf16.gmra.mrb[0].mxu0 %v4596
    %v4710 = vpop.f32.mrb[0].mxu0
    %v4711 = vadd.f32 %v1499, %v4710
    %v4712 = vpop.f32.mrb[0].mxu0
    %v4713 = vpop.f32.mrb[0].mxu0
    %v4714 = vadd.f32 %v1499, %v4713
    %v4715 = vpop.f32.mrb[0].mxu0
    %4716 = vmatprep.mubr.bf16.mxu0 0
    %4717 = vmatmul.mubr.bf16.gmra.mrb[0].mxu0 %v4599
    %v4718 = vpop.f32.mrb[0].mxu0
    %v4719 = vadd.f32 %v1499, %v4718
    %v4720 = vpop.f32.mrb[0].mxu0
    %v4721 = vpop.f32.mrb[0].mxu0
    %v4722 = vadd.f32 %v1499, %v4721
    %v4723 = vpop.f32.mrb[0].mxu0
    %4724 = vmatprep.mubr.bf16.mxu0 0
    %4725 = vmatmul.mubr.bf16.gmra.mrb[0].mxu0 %v4602
    %v4726 = vpop.f32.mrb[0].mxu0
    %v4727 = vadd.f32 %v1499, %v4726
    %v4728 = vpop.f32.mrb[0].mxu0
    %v4729 = vpop.f32.mrb[0].mxu0
    %v4730 = vadd.f32 %v1499, %v4729
    %v4731 = vpop.f32.mrb[0].mxu0
    %4732 = vdwg.mxu0
    %v4733 = vmax.f32 %v4639, 0.0
    %v4734 = vmax.f32 %v4642, 0.0
    %v4735 = vmax.f32 %v4647, 0.0
    %v4736 = vmax.f32 %v4650, 0.0
    %v4737 = vmax.f32 %v4655, 0.0
    %v4738 = vmax.f32 %v4658, 0.0
    %v4739 = vmax.f32 %v4663, 0.0
    %v4740 = vmax.f32 %v4666, 0.0
    %v4741 = vmax.f32 %v4671, 0.0
    %v4742 = vmax.f32 %v4674, 0.0
    %v4743 = vmax.f32 %v4679, 0.0
    %v4744 = vmax.f32 %v4682, 0.0
    %v4745 = vmax.f32 %v4687, 0.0
    %v4746 = vmax.f32 %v4690, 0.0
    %v4747 = vmax.f32 %v4695, 0.0
    %v4748 = vmax.f32 %v4698, 0.0
    %v4749 = vmax.f32 %v4703, 0.0
    %v4750 = vmax.f32 %v4706, 0.0
    %v4751 = vmax.f32 %v4711, 0.0
    %v4752 = vmax.f32 %v4714, 0.0
    %v4753 = vmax.f32 %v4719, 0.0
    %v4754 = vmax.f32 %v4722, 0.0
    %v4755 = vmax.f32 %v4727, 0.0
    %v4756 = vmax.f32 %v4730, 0.0
    %v4781 = vrot.slane %v4733, 1
    %v4782 = vrot.slane %v4734, 1
    %v4783 = vsel %vm357, %v4781, %v4782
    %v4784 = vrot.slane %v4735, 1
    %v4785 = vsel %vm357, %v4782, %v4784
    %v4786 = vrot.slane %v4736, 1
    %v4787 = vsel %vm357, %v4784, %v4786
    %v4788 = vrot.slane %v4737, 1
    %v4789 = vsel %vm357, %v4786, %v4788
    %v4790 = vrot.slane %v4738, 1
    %v4791 = vsel %vm357, %v4788, %v4790
    %v4792 = vrot.slane %v4739, 1
    %v4793 = vsel %vm357, %v4790, %v4792
    %v4794 = vrot.slane %v4740, 1
    %v4795 = vsel %vm357, %v4792, %v4794
    %v4796 = vrot.slane %v4741, 1
    %v4797 = vsel %vm357, %v4794, %v4796
    %v4798 = vrot.slane %v4742, 1
    %v4799 = vsel %vm357, %v4796, %v4798
    %v4800 = vrot.slane %v4743, 1
    %v4801 = vsel %vm357, %v4798, %v4800
    %v4802 = vrot.slane %v4744, 1
    %v4803 = vsel %vm357, %v4800, %v4802
    %v4804 = vrot.slane %v4745, 1
    %v4805 = vsel %vm357, %v4802, %v4804
    %v4806 = vrot.slane %v4746, 1
    %v4807 = vsel %vm357, %v4804, %v4806
    %v4808 = vrot.slane %v4747, 1
    %v4809 = vsel %vm357, %v4806, %v4808
    %v4810 = vrot.slane %v4748, 1
    %v4811 = vsel %vm357, %v4808, %v4810
    %v4812 = vrot.slane %v4749, 1
    %v4813 = vsel %vm357, %v4810, %v4812
    %v4814 = vrot.slane %v4750, 1
    %v4815 = vsel %vm357, %v4812, %v4814
    %v4816 = vrot.slane %v4751, 1
    %v4817 = vsel %vm357, %v4814, %v4816
    %v4818 = vrot.slane %v4752, 1
    %v4819 = vsel %vm357, %v4816, %v4818
    %v4820 = vrot.slane %v4753, 1
    %v4821 = vsel %vm357, %v4818, %v4820
    %v4822 = vrot.slane %v4754, 1
    %v4823 = vsel %vm357, %v4820, %v4822
    %v4824 = vrot.slane %v4755, 1
    %v4825 = vsel %vm357, %v4822, %v4824
    %v4826 = vrot.slane %v4756, 1
    %v4827 = vsel %vm357, %v4824, %v4826
    %v4852 = vmax.f32 %v4733, %v4783
    %v4853 = vmax.f32 %v4734, %v4785
    %v4854 = vmax.f32 %v4735, %v4787
    %v4855 = vmax.f32 %v4736, %v4789
    %v4856 = vmax.f32 %v4737, %v4791
    %v4857 = vmax.f32 %v4738, %v4793
    %v4858 = vmax.f32 %v4739, %v4795
    %v4859 = vmax.f32 %v4740, %v4797
    %v4860 = vmax.f32 %v4741, %v4799
    %v4861 = vmax.f32 %v4742, %v4801
    %v4862 = vmax.f32 %v4743, %v4803
    %v4863 = vmax.f32 %v4744, %v4805
    %v4864 = vmax.f32 %v4745, %v4807
    %v4865 = vmax.f32 %v4746, %v4809
    %v4866 = vmax.f32 %v4747, %v4811
    %v4867 = vmax.f32 %v4748, %v4813
    %v4868 = vmax.f32 %v4749, %v4815
    %v4869 = vmax.f32 %v4750, %v4817
    %v4870 = vmax.f32 %v4751, %v4819
    %v4871 = vmax.f32 %v4752, %v4821
    %v4872 = vmax.f32 %v4753, %v4823
    %v4873 = vmax.f32 %v4754, %v4825
    %v4874 = vmax.f32 %v4755, %v4827
    %v4875 = vmax.f32 %v4756, %v4826
    %v4876 = vrot.slane %v4733, 2
    %v4877 = vrot.slane %v4734, 2
    %v4878 = vsel %vm479, %v4876, %v4877
    %v4879 = vrot.slane %v4735, 2
    %v4880 = vsel %vm479, %v4877, %v4879
    %v4881 = vrot.slane %v4736, 2
    %v4882 = vsel %vm479, %v4879, %v4881
    %v4883 = vrot.slane %v4737, 2
    %v4884 = vsel %vm479, %v4881, %v4883
    %v4885 = vrot.slane %v4738, 2
    %v4886 = vsel %vm479, %v4883, %v4885
    %v4887 = vrot.slane %v4739, 2
    %v4888 = vsel %vm479, %v4885, %v4887
    %v4889 = vrot.slane %v4740, 2
    %v4890 = vsel %vm479, %v4887, %v4889
    %v4891 = vrot.slane %v4741, 2
    %v4892 = vsel %vm479, %v4889, %v4891
    %v4893 = vrot.slane %v4742, 2
    %v4894 = vsel %vm479, %v4891, %v4893
    %v4895 = vrot.slane %v4743, 2
    %v4896 = vsel %vm479, %v4893, %v4895
    %v4897 = vrot.slane %v4744, 2
    %v4898 = vsel %vm479, %v4895, %v4897
    %v4899 = vrot.slane %v4745, 2
    %v4900 = vsel %vm479, %v4897, %v4899
    %v4901 = vrot.slane %v4746, 2
    %v4902 = vsel %vm479, %v4899, %v4901
    %v4903 = vrot.slane %v4747, 2
    %v4904 = vsel %vm479, %v4901, %v4903
    %v4905 = vrot.slane %v4748, 2
    %v4906 = vsel %vm479, %v4903, %v4905
    %v4907 = vrot.slane %v4749, 2
    %v4908 = vsel %vm479, %v4905, %v4907
    %v4909 = vrot.slane %v4750, 2
    %v4910 = vsel %vm479, %v4907, %v4909
    %v4911 = vrot.slane %v4751, 2
    %v4912 = vsel %vm479, %v4909, %v4911
    %v4913 = vrot.slane %v4752, 2
    %v4914 = vsel %vm479, %v4911, %v4913
    %v4915 = vrot.slane %v4753, 2
    %v4916 = vsel %vm479, %v4913, %v4915
    %v4917 = vrot.slane %v4754, 2
    %v4918 = vsel %vm479, %v4915, %v4917
    %v4919 = vrot.slane %v4755, 2
    %v4920 = vsel %vm479, %v4917, %v4919
    %v4921 = vrot.slane %v4756, 2
    %v4922 = vsel %vm479, %v4919, %v4921
    %v4947 = vmax.f32 %v4852, %v4878
    %v4948 = vmax.f32 %v4853, %v4880
    %v4949 = vmax.f32 %v4854, %v4882
    %v4950 = vmax.f32 %v4855, %v4884
    %v4951 = vmax.f32 %v4856, %v4886
    %v4952 = vmax.f32 %v4857, %v4888
    %v4953 = vmax.f32 %v4858, %v4890
    %v4954 = vmax.f32 %v4859, %v4892
    %v4955 = vmax.f32 %v4860, %v4894
    %v4956 = vmax.f32 %v4861, %v4896
    %v4957 = vmax.f32 %v4862, %v4898
    %v4958 = vmax.f32 %v4863, %v4900
    %v4959 = vmax.f32 %v4864, %v4902
    %v4960 = vmax.f32 %v4865, %v4904
    %v4961 = vmax.f32 %v4866, %v4906
    %v4962 = vmax.f32 %v4867, %v4908
    %v4963 = vmax.f32 %v4868, %v4910
    %v4964 = vmax.f32 %v4869, %v4912
    %v4965 = vmax.f32 %v4870, %v4914
    %v4966 = vmax.f32 %v4871, %v4916
    %v4967 = vmax.f32 %v4872, %v4918
    %v4968 = vmax.f32 %v4873, %v4920
    %v4969 = vmax.f32 %v4874, %v4922
    %v4970 = vmax.f32 %v4875, %v4921
    %v4971 = vrot.slane %v4733, 3
    %v4972 = vrot.slane %v4734, 3
    %v4973 = vsel %vm601, %v4971, %v4972
    %v4974 = vrot.slane %v4735, 3
    %v4975 = vsel %vm601, %v4972, %v4974
    %v4976 = vrot.slane %v4736, 3
    %v4977 = vsel %vm601, %v4974, %v4976
    %v4978 = vrot.slane %v4737, 3
    %v4979 = vsel %vm601, %v4976, %v4978
    %v4980 = vrot.slane %v4738, 3
    %v4981 = vsel %vm601, %v4978, %v4980
    %v4982 = vrot.slane %v4739, 3
    %v4983 = vsel %vm601, %v4980, %v4982
    %v4984 = vrot.slane %v4740, 3
    %v4985 = vsel %vm601, %v4982, %v4984
    %v4986 = vrot.slane %v4741, 3
    %v4987 = vsel %vm601, %v4984, %v4986
    %v4988 = vrot.slane %v4742, 3
    %v4989 = vsel %vm601, %v4986, %v4988
    %v4990 = vrot.slane %v4743, 3
    %v4991 = vsel %vm601, %v4988, %v4990
    %v4992 = vrot.slane %v4744, 3
    %v4993 = vsel %vm601, %v4990, %v4992
    %v4994 = vrot.slane %v4745, 3
    %v4995 = vsel %vm601, %v4992, %v4994
    %v4996 = vrot.slane %v4746, 3
    %v4997 = vsel %vm601, %v4994, %v4996
    %v4998 = vrot.slane %v4747, 3
    %v4999 = vsel %vm601, %v4996, %v4998
    %v5000 = vrot.slane %v4748, 3
    %v5001 = vsel %vm601, %v4998, %v5000
    %v5002 = vrot.slane %v4749, 3
    %v5003 = vsel %vm601, %v5000, %v5002
    %v5004 = vrot.slane %v4750, 3
    %v5005 = vsel %vm601, %v5002, %v5004
    %v5006 = vrot.slane %v4751, 3
    %v5007 = vsel %vm601, %v5004, %v5006
    %v5008 = vrot.slane %v4752, 3
    %v5009 = vsel %vm601, %v5006, %v5008
    %v5010 = vrot.slane %v4753, 3
    %v5011 = vsel %vm601, %v5008, %v5010
    %v5012 = vrot.slane %v4754, 3
    %v5013 = vsel %vm601, %v5010, %v5012
    %v5014 = vrot.slane %v4755, 3
    %v5015 = vsel %vm601, %v5012, %v5014
    %v5016 = vrot.slane %v4756, 3
    %v5017 = vsel %vm601, %v5014, %v5016
    %v5042 = vmax.f32 %v4947, %v4973
    %v5043 = vmax.f32 %v4948, %v4975
    %v5044 = vmax.f32 %v4949, %v4977
    %v5045 = vmax.f32 %v4950, %v4979
    %v5046 = vmax.f32 %v4951, %v4981
    %v5047 = vmax.f32 %v4952, %v4983
    %v5048 = vmax.f32 %v4953, %v4985
    %v5049 = vmax.f32 %v4954, %v4987
    %v5050 = vmax.f32 %v4955, %v4989
    %v5051 = vmax.f32 %v4956, %v4991
    %v5052 = vmax.f32 %v4957, %v4993
    %v5053 = vmax.f32 %v4958, %v4995
    %v5054 = vmax.f32 %v4959, %v4997
    %v5055 = vmax.f32 %v4960, %v4999
    %v5056 = vmax.f32 %v4961, %v5001
    %v5057 = vmax.f32 %v4962, %v5003
    %v5058 = vmax.f32 %v4963, %v5005
    %v5059 = vmax.f32 %v4964, %v5007
    %v5060 = vmax.f32 %v4965, %v5009
    %v5061 = vmax.f32 %v4966, %v5011
    %v5062 = vmax.f32 %v4967, %v5013
    %v5063 = vmax.f32 %v4968, %v5015
    %v5064 = vmax.f32 %v4969, %v5017
    %v5065 = vmax.f32 %v4970, %v5016
    %5066 = vst.msk [vmem:[#allocation2] sm:$0xff] %vm2016, %v5042
    %5067 = vst.msk [vmem:[#allocation2 + $0x8] sm:$0xff] %vm2016, %v5043
    %5068 = vst.msk [vmem:[#allocation2 + $0x10] sm:$0xff] %vm2016, %v5044
    %5069 = vst.msk [vmem:[#allocation2 + $0x18] sm:$0xff] %vm2016, %v5045
    %5070 = vst.msk [vmem:[#allocation2 + $0x20] sm:$0xff] %vm2016, %v5046
    %5071 = vst.msk [vmem:[#allocation2 + $0x28] sm:$0xff] %vm2016, %v5047
    %5072 = vst.msk [vmem:[#allocation2 + $0x30] sm:$0xff] %vm2016, %v5048
    %5073 = vst.msk [vmem:[#allocation2 + $0x38] sm:$0xff] %vm2016, %v5049
    %5074 = vst.msk [vmem:[#allocation2 + $0x40] sm:$0xff] %vm2016, %v5050
    %5075 = vst.msk [vmem:[#allocation2 + $0x48] sm:$0xff] %vm2016, %v5051
    %5076 = vst.msk [vmem:[#allocation2 + $0x50] sm:$0xff] %vm2016, %v5052
    %5077 = vst.msk [vmem:[#allocation2 + $0x58] sm:$0xff] %vm2016, %v5053
    %5078 = vst.msk [vmem:[#allocation2 + $0x60] sm:$0xff] %vm2016, %v5054
    %5079 = vst.msk [vmem:[#allocation2 + $0x68] sm:$0xff] %vm2016, %v5055
    %5080 = vst.msk [vmem:[#allocation2 + $0x70] sm:$0xff] %vm2016, %v5056
    %5081 = vst.msk [vmem:[#allocation2 + $0x78] sm:$0xff] %vm2016, %v5057
    %5082 = vst.msk [vmem:[#allocation2 + $0x80] sm:$0xff] %vm2016, %v5058
    %5083 = vst.msk [vmem:[#allocation2 + $0x88] sm:$0xff] %vm2016, %v5059
    %5084 = vst.msk [vmem:[#allocation2 + $0x90] sm:$0xff] %vm2016, %v5060
    %5085 = vst.msk [vmem:[#allocation2 + $0x98] sm:$0xff] %vm2016, %v5061
    %5086 = vst.msk [vmem:[#allocation2 + $0xa0] sm:$0xff] %vm2016, %v5062
    %5087 = vst.msk [vmem:[#allocation2 + $0xa8] sm:$0xff] %vm2016, %v5063
    %5088 = vst.msk [vmem:[#allocation2 + $0xb0] sm:$0xff] %vm2016, %v5064
    %5089 = vst.msk [vmem:[#allocation2 + $0xb8] sm:$0x1f] %vm2040, %v5065
    %v5090 = vld [vmem:[#allocation2] ss:$4 sm:$0xff]
    %v5091 = vld [vmem:[%s2043] ss:$4 sm:$0xff]
    %v5092 = vld [vmem:[%s2045] ss:$4 sm:$0xff]
    %v5093 = vld [vmem:[%s2047] ss:$4 sm:$0xff]
    %v5094 = vld [vmem:[%s2049] ss:$4 sm:$0xff]
    %v5095 = vld [vmem:[%s2051] ss:$4 sm:$0xff]
    %v5102 = vrot.slane %v5090, 1
    %v5103 = vrot.slane %v5091, 1
    %v5104 = vsel %vm357, %v5102, %v5103
    %v5105 = vrot.slane %v5092, 1
    %v5106 = vsel %vm357, %v5103, %v5105
    %v5107 = vrot.slane %v5093, 1
    %v5108 = vsel %vm357, %v5105, %v5107
    %v5109 = vrot.slane %v5094, 1
    %v5110 = vsel %vm357, %v5107, %v5109
    %v5111 = vrot.slane %v5095, 1
    %v5112 = vsel %vm357, %v5109, %v5111
    %5113 = vrot.lane.b32.xlu0 %v5104, 64
    %v5114 = vpop.permute.xlu0 %5113
    %5115 = vrot.lane.b32.xlu0 %v5106, 64
    %v5116 = vpop.permute.xlu0 %5115
    %5117 = vrot.lane.b32.xlu0 %v5108, 64
    %v5118 = vpop.permute.xlu0 %5117
    %5119 = vrot.lane.b32.xlu0 %v5110, 64
    %v5120 = vpop.permute.xlu0 %5119
    %5121 = vrot.lane.b32.xlu0 %v5112, 64
    %v5122 = vpop.permute.xlu0 %5121
    %v5128 = vrot.slane %v5090, 2
    %v5129 = vrot.slane %v5091, 2
    %v5130 = vsel %vm479, %v5128, %v5129
    %v5131 = vrot.slane %v5092, 2
    %v5132 = vsel %vm479, %v5129, %v5131
    %v5133 = vrot.slane %v5093, 2
    %v5134 = vsel %vm479, %v5131, %v5133
    %v5135 = vrot.slane %v5094, 2
    %v5136 = vsel %vm479, %v5133, %v5135
    %v5137 = vrot.slane %v5095, 2
    %v5138 = vsel %vm479, %v5135, %v5137
    %v5144 = vrot.slane %v5090, 3
    %v5145 = vrot.slane %v5091, 3
    %v5146 = vsel %vm601, %v5144, %v5145
    %v5147 = vrot.slane %v5092, 3
    %v5148 = vsel %vm601, %v5145, %v5147
    %v5149 = vrot.slane %v5093, 3
    %v5150 = vsel %vm601, %v5147, %v5149
    %v5151 = vrot.slane %v5094, 3
    %v5152 = vsel %vm601, %v5149, %v5151
    %v5153 = vrot.slane %v5095, 3
    %v5154 = vsel %vm601, %v5151, %v5153
    %5155 = vrot.lane.b32.xlu0 %v5146, 64
    %v5156 = vpop.permute.xlu0 %5155
    %5157 = vrot.lane.b32.xlu0 %v5148, 64
    %v5158 = vpop.permute.xlu0 %5157
    %5159 = vrot.lane.b32.xlu0 %v5150, 64
    %v5160 = vpop.permute.xlu0 %5159
    %5161 = vrot.lane.b32.xlu0 %v5152, 64
    %v5162 = vpop.permute.xlu0 %5161
    %5163 = vrot.lane.b32.xlu0 %v5154, 64
    %v5164 = vpop.permute.xlu0 %5163
    %v5170 = vrot.slane %v5090, 4
    %v5171 = vrot.slane %v5091, 4
    %v5172 = vsel %vm723, %v5170, %v5171
    %v5173 = vrot.slane %v5092, 4
    %v5174 = vsel %vm723, %v5171, %v5173
    %v5175 = vrot.slane %v5093, 4
    %v5176 = vsel %vm723, %v5173, %v5175
    %v5177 = vrot.slane %v5094, 4
    %v5178 = vsel %vm723, %v5175, %v5177
    %v5179 = vrot.slane %v5095, 4
    %v5180 = vsel %vm723, %v5177, %v5179
    %v5186 = vrot.slane %v5090, 5
    %v5187 = vrot.slane %v5091, 5
    %v5188 = vsel %vm845, %v5186, %v5187
    %v5189 = vrot.slane %v5092, 5
    %v5190 = vsel %vm845, %v5187, %v5189
    %v5191 = vrot.slane %v5093, 5
    %v5192 = vsel %vm845, %v5189, %v5191
    %v5193 = vrot.slane %v5094, 5
    %v5194 = vsel %vm845, %v5191, %v5193
    %v5195 = vrot.slane %v5095, 5
    %v5196 = vsel %vm845, %v5193, %v5195
    %5197 = vrot.lane.b32.xlu0 %v5188, 64
    %v5198 = vpop.permute.xlu0 %5197
    %5199 = vrot.lane.b32.xlu0 %v5190, 64
    %v5200 = vpop.permute.xlu0 %5199
    %5201 = vrot.lane.b32.xlu0 %v5192, 64
    %v5202 = vpop.permute.xlu0 %5201
    %5203 = vrot.lane.b32.xlu0 %v5194, 64
    %v5204 = vpop.permute.xlu0 %5203
    %5205 = vrot.lane.b32.xlu0 %v5196, 64
    %v5206 = vpop.permute.xlu0 %5205
    %v5212 = vrot.slane %v5090, 6
    %v5213 = vrot.slane %v5091, 6
    %v5214 = vsel %vm967, %v5212, %v5213
    %v5215 = vrot.slane %v5092, 6
    %v5216 = vsel %vm967, %v5213, %v5215
    %v5217 = vrot.slane %v5093, 6
    %v5218 = vsel %vm967, %v5215, %v5217
    %v5219 = vrot.slane %v5094, 6
    %v5220 = vsel %vm967, %v5217, %v5219
    %v5221 = vrot.slane %v5095, 6
    %v5222 = vsel %vm967, %v5219, %v5221
    %v5228 = vrot.slane %v5090, 7
    %v5229 = vrot.slane %v5091, 7
    %v5230 = vsel %vm1089, %v5228, %v5229
    %v5231 = vrot.slane %v5092, 7
    %v5232 = vsel %vm1089, %v5229, %v5231
    %v5233 = vrot.slane %v5093, 7
    %v5234 = vsel %vm1089, %v5231, %v5233
    %v5235 = vrot.slane %v5094, 7
    %v5236 = vsel %vm1089, %v5233, %v5235
    %v5237 = vrot.slane %v5095, 7
    %v5238 = vsel %vm1089, %v5235, %v5237
    %5239 = vrot.lane.b32.xlu0 %v5230, 64
    %v5240 = vpop.permute.xlu0 %5239
    %5241 = vrot.lane.b32.xlu0 %v5232, 64
    %v5242 = vpop.permute.xlu0 %5241
    %5243 = vrot.lane.b32.xlu0 %v5234, 64
    %v5244 = vpop.permute.xlu0 %5243
    %5245 = vrot.lane.b32.xlu0 %v5236, 64
    %v5246 = vpop.permute.xlu0 %5245
    %5247 = vrot.lane.b32.xlu0 %v5238, 64
    %v5248 = vpop.permute.xlu0 %5247
    %v5254 = vsel %vm2016, %v5090, %v5114
    %v5255 = vsel %vm2016, %v5091, %v5116
    %v5256 = vsel %vm2016, %v5092, %v5118
    %v5257 = vsel %vm2016, %v5093, %v5120
    %v5258 = vsel %vm2016, %v5094, %v5122
    %v5259 = vsel %vm2016, %v5130, %v5156
    %v5260 = vsel %vm2016, %v5132, %v5158
    %v5261 = vsel %vm2016, %v5134, %v5160
    %v5262 = vsel %vm2016, %v5136, %v5162
    %v5263 = vsel %vm2016, %v5138, %v5164
    %v5264 = vsel %vm2016, %v5172, %v5198
    %v5265 = vsel %vm2016, %v5174, %v5200
    %v5266 = vsel %vm2016, %v5176, %v5202
    %v5267 = vsel %vm2016, %v5178, %v5204
    %v5268 = vsel %vm2016, %v5180, %v5206
    %v5269 = vsel %vm2016, %v5214, %v5240
    %v5270 = vsel %vm2016, %v5216, %v5242
    %v5271 = vsel %vm2016, %v5218, %v5244
    %v5272 = vsel %vm2016, %v5220, %v5246
    %v5273 = vsel %vm2016, %v5222, %v5248
    %v5274 = vpack.c.bf16 %v5255, %v5254
    %v5275 = vpack.c.bf16 %v5260, %v5259
    %v5276 = vpack.c.bf16 %v5265, %v5264
    %v5277 = vpack.c.bf16 %v5270, %v5269
    %v5278 = vpack.c.bf16 %v5092, %v5091
    %v5279 = vpack.c.bf16 %v5257, %v5256
    %v5280 = vpack.c.bf16 %v5262, %v5261
    %v5281 = vpack.c.bf16 %v5267, %v5266
    %v5282 = vpack.c.bf16 %v5272, %v5271
    %v5283 = vpack.c.bf16 %v5094, %v5093
    %v5284 = vpack.c.bf16 %v5258, %v5258
    %v5285 = vpack.c.bf16 %v5263, %v5263
    %v5286 = vpack.c.bf16 %v5268, %v5268
    %v5287 = vpack.c.bf16 %v5273, %v5273
    %v5288 = vpack.c.bf16 %v5095, %v5095
    %v5290 = vsel %vm2016, %v5278, 0
    %v5293 = vsel %vm2016, %v5283, 0
    %v5296 = vsel %vm2016, %v5288, 0
    %5298 = vmatprep.subr.bf16.mxu0 0
    %5299 = vmatpush1.bf16.msra.mxu0 %v2396
    %5300 = vmatprep.subr.bf16.mxu0 0
    %5301 = vmatpush1.bf16.msra.mxu0 %v2397
    %5302 = vmatprep.subr.bf16.mxu0 0
    %5303 = vmatpush1.bf16.msra.mxu0 %v2398
    %5304 = vmatprep.subr.bf16.mxu0 0
    %5305 = vmatpush1.bf16.msra.mxu0 %v2399
    %5306 = vmatprep.subr.bf16.mxu0 0
    %5307 = vmatpush1.bf16.msra.mxu0 %v2400
    %5308 = vmatprep.subr.bf16.mxu0 0
    %5309 = vmatpush1.bf16.msra.mxu0 %v2401
    %5310 = vmatprep.subr.bf16.mxu0 0
    %5311 = vmatpush1.bf16.msra.mxu0 %v2402
    %5312 = vmatprep.subr.bf16.mxu0 0
    %5313 = vmatpush1.bf16.msra.mxu0 %v2403
    %5314 = vmatprep.subr.bf16.mxu0 0
    %5315 = vmatpush1.bf16.msra.mxu0 %v2404
    %5316 = vmatprep.subr.bf16.mxu0 0
    %5317 = vmatpush1.bf16.msra.mxu0 %v2405
    %5318 = vmatprep.subr.bf16.mxu0 0
    %5319 = vmatpush1.bf16.msra.mxu0 %v2406
    %5320 = vmatprep.subr.bf16.mxu0 0
    %5321 = vmatpush1.bf16.msra.mxu0 %v2407
    %5322 = vmatprep.subr.bf16.mxu0 0
    %5323 = vmatpush1.bf16.msra.mxu0 %v2408
    %5324 = vmatprep.subr.bf16.mxu0 0
    %5325 = vmatpush1.bf16.msra.mxu0 %v2409
    %5326 = vmatprep.subr.bf16.mxu0 0
    %5327 = vmatpush1.bf16.msra.mxu0 %v2410
    %5328 = vmatprep.subr.bf16.mxu0 0
    %5329 = vmatpush1.bf16.msra.mxu0 %v2411
    %5330 = vmatprep.mubr.bf16.mxu0 %v5275
    %5331 = vmatmul.mubr.bf16.gmra.mrb[0].mxu0 %v5274
    %v5332 = vpop.f32.mrb[0].mxu0
    %v5333 = vadd.f32 %v2250, %v5332
    %v5334 = vpop.f32.mrb[0].mxu0
    %v5335 = vpop.f32.mrb[0].mxu0
    %v5336 = vadd.f32 %v2250, %v5335
    %v5337 = vpop.f32.mrb[0].mxu0
    %5338 = vmatprep.mubr.bf16.mxu0 %v5280
    %5339 = vmatmul.mubr.bf16.gmra.mrb[0].mxu0 %v5279
    %v5340 = vpop.f32.mrb[0].mxu0
    %v5341 = vadd.f32 %v2250, %v5340
    %v5342 = vpop.f32.mrb[0].mxu0
    %v5343 = vpop.f32.mrb[0].mxu0
    %v5344 = vadd.f32 %v2250, %v5343
    %v5345 = vpop.f32.mrb[0].mxu0
    %5346 = vmatprep.mubr.bf16.mxu0 %v5285
    %5347 = vmatmul.mubr.bf16.gmra.mrb[0].mxu0 %v5284
    %v5348 = vpop.f32.mrb[0].mxu0
    %v5349 = vadd.f32 %v2250, %v5348
    %v5350 = vpop.f32.mrb[0].mxu0
    %v5351 = vpop.f32.mrb[0].mxu0
    %v5352 = vpop.f32.mrb[0].mxu0
    %5353 = vdwg.mxu0
    %5354 = vmatprep.subr.bf16.mxu0 0
    %5355 = vmatpush1.bf16.msra.mxu0 %v2412
    %5356 = vmatprep.subr.bf16.mxu0 0
    %5357 = vmatpush1.bf16.msra.mxu0 %v2413
    %5358 = vmatprep.subr.bf16.mxu0 0
    %5359 = vmatpush1.bf16.msra.mxu0 %v2414
    %5360 = vmatprep.subr.bf16.mxu0 0
    %5361 = vmatpush1.bf16.msra.mxu0 %v2415
    %5362 = vmatprep.subr.bf16.mxu0 0
    %5363 = vmatpush1.bf16.msra.mxu0 %v2416
    %5364 = vmatprep.subr.bf16.mxu0 0
    %5365 = vmatpush1.bf16.msra.mxu0 %v2417
    %5366 = vmatprep.subr.bf16.mxu0 0
    %5367 = vmatpush1.bf16.msra.mxu0 %v2418
    %5368 = vmatprep.subr.bf16.mxu0 0
    %5369 = vmatpush1.bf16.msra.mxu0 %v2419
    %5370 = vmatprep.subr.bf16.mxu0 0
    %5371 = vmatpush1.bf16.msra.mxu0 %v2420
    %5372 = vmatprep.subr.bf16.mxu0 0
    %5373 = vmatpush1.bf16.msra.mxu0 %v2421
    %5374 = vmatprep.subr.bf16.mxu0 0
    %5375 = vmatpush1.bf16.msra.mxu0 %v2422
    %5376 = vmatprep.subr.bf16.mxu0 0
    %5377 = vmatpush1.bf16.msra.mxu0 %v2423
    %5378 = vmatprep.subr.bf16.mxu0 0
    %5379 = vmatpush1.bf16.msra.mxu0 %v2424
    %5380 = vmatprep.subr.bf16.mxu0 0
    %5381 = vmatpush1.bf16.msra.mxu0 %v2425
    %5382 = vmatprep.subr.bf16.mxu0 0
    %5383 = vmatpush1.bf16.msra.mxu0 %v2426
    %5384 = vmatprep.subr.bf16.mxu0 0
    %5385 = vmatpush1.bf16.msra.mxu0 %v2427
    %5386 = vmatprep.mubr.bf16.mxu0 %v5277
    %5387 = vmatmul.mubr.bf16.gmra.mrb[0].mxu0 %v5276
    %v5388 = vpop.f32.mrb[0].mxu0
    %v5389 = vadd.f32 %v5333, %v5388
    %v5390 = vpop.f32.mrb[0].mxu0
    %v5391 = vpop.f32.mrb[0].mxu0
    %v5392 = vadd.f32 %v5336, %v5391
    %v5393 = vpop.f32.mrb[0].mxu0
    %5394 = vmatprep.mubr.bf16.mxu0 %v5282
    %5395 = vmatmul.mubr.bf16.gmra.mrb[0].mxu0 %v5281
    %v5396 = vpop.f32.mrb[0].mxu0
    %v5397 = vadd.f32 %v5341, %v5396
    %v5398 = vpop.f32.mrb[0].mxu0
    %v5399 = vpop.f32.mrb[0].mxu0
    %v5400 = vadd.f32 %v5344, %v5399
    %v5401 = vpop.f32.mrb[0].mxu0
    %5402 = vmatprep.mubr.bf16.mxu0 %v5287
    %5403 = vmatmul.mubr.bf16.gmra.mrb[0].mxu0 %v5286
    %v5404 = vpop.f32.mrb[0].mxu0
    %v5405 = vadd.f32 %v5349, %v5404
    %v5406 = vpop.f32.mrb[0].mxu0
    %v5407 = vpop.f32.mrb[0].mxu0
    %v5408 = vpop.f32.mrb[0].mxu0
    %5409 = vdwg.mxu0
    %5410 = vmatprep.subr.bf16.mxu0 0
    %5411 = vmatpush1.bf16.msra.mxu0 %v2428
    %5412 = vmatprep.subr.bf16.mxu0 0
    %5413 = vmatpush1.bf16.msra.mxu0 %v2429
    %5414 = vmatprep.subr.bf16.mxu0 0
    %5415 = vmatpush1.bf16.msra.mxu0 %v2430
    %5416 = vmatprep.subr.bf16.mxu0 0
    %5417 = vmatpush1.bf16.msra.mxu0 %v2431
    %5418 = vmatprep.subr.bf16.mxu0 0
    %5419 = vmatpush1.bf16.msra.mxu0 0
    %5420 = vmatprep.subr.bf16.mxu0 0
    %5421 = vmatpush1.bf16.msra.mxu0 0
    %5422 = vmatprep.subr.bf16.mxu0 0
    %5423 = vmatpush1.bf16.msra.mxu0 0
    %5424 = vmatprep.subr.bf16.mxu0 0
    %5425 = vmatpush1.bf16.msra.mxu0 0
    %5426 = vmatprep.subr.bf16.mxu0 0
    %5427 = vmatpush1.bf16.msra.mxu0 0
    %5428 = vmatprep.subr.bf16.mxu0 0
    %5429 = vmatpush1.bf16.msra.mxu0 0
    %5430 = vmatprep.subr.bf16.mxu0 0
    %5431 = vmatpush1.bf16.msra.mxu0 0
    %5432 = vmatprep.subr.bf16.mxu0 0
    %5433 = vmatpush1.bf16.msra.mxu0 0
    %5434 = vmatprep.subr.bf16.mxu0 0
    %5435 = vmatpush1.bf16.msra.mxu0 0
    %5436 = vmatprep.subr.bf16.mxu0 0
    %5437 = vmatpush1.bf16.msra.mxu0 0
    %5438 = vmatprep.subr.bf16.mxu0 0
    %5439 = vmatpush1.bf16.msra.mxu0 0
    %5440 = vmatprep.subr.bf16.mxu0 0
    %5441 = vmatpush1.bf16.msra.mxu0 0
    %5442 = vmatprep.mubr.bf16.mxu0 0
    %5443 = vmatmul.mubr.bf16.gmra.mrb[0].mxu0 %v5290
    %v5444 = vpop.f32.mrb[0].mxu0
    %v5445 = vadd.f32 %v5389, %v5444
    %v5446 = vpop.f32.mrb[0].mxu0
    %v5447 = vpop.f32.mrb[0].mxu0
    %v5448 = vadd.f32 %v5392, %v5447
    %v5449 = vpop.f32.mrb[0].mxu0
    %5450 = vmatprep.mubr.bf16.mxu0 0
    %5451 = vmatmul.mubr.bf16.gmra.mrb[0].mxu0 %v5293
    %v5452 = vpop.f32.mrb[0].mxu0
    %v5453 = vadd.f32 %v5397, %v5452
    %v5454 = vpop.f32.mrb[0].mxu0
    %v5455 = vpop.f32.mrb[0].mxu0
    %v5456 = vadd.f32 %v5400, %v5455
    %v5457 = vpop.f32.mrb[0].mxu0
    %5458 = vmatprep.mubr.bf16.mxu0 0
    %5459 = vmatmul.mubr.bf16.gmra.mrb[0].mxu0 %v5296
    %v5460 = vpop.f32.mrb[0].mxu0
    %v5461 = vadd.f32 %v5405, %v5460
    %v5462 = vpop.f32.mrb[0].mxu0
    %v5463 = vpop.f32.mrb[0].mxu0
    %v5464 = vpop.f32.mrb[0].mxu0
    %5465 = vdwg.mxu0
    %v5466 = vmax.f32 %v5445, 0.0
    %v5467 = vmax.f32 %v5448, 0.0
    %v5468 = vmax.f32 %v5453, 0.0
    %v5469 = vmax.f32 %v5456, 0.0
    %v5470 = vmax.f32 %v5461, 0.0
    %v5476 = vrot.slane %v5466, 1
    %v5477 = vrot.slane %v5467, 1
    %v5478 = vsel %vm357, %v5476, %v5477
    %v5479 = vrot.slane %v5468, 1
    %v5480 = vsel %vm357, %v5477, %v5479
    %v5481 = vrot.slane %v5469, 1
    %v5482 = vsel %vm357, %v5479, %v5481
    %v5483 = vrot.slane %v5470, 1
    %v5484 = vsel %vm357, %v5481, %v5483
    %v5490 = vmax.f32 %v5466, %v5478
    %v5491 = vmax.f32 %v5467, %v5480
    %v5492 = vmax.f32 %v5468, %v5482
    %v5493 = vmax.f32 %v5469, %v5484
    %v5494 = vmax.f32 %v5470, %v5483
    %v5495 = vrot.slane %v5466, 2
    %v5496 = vrot.slane %v5467, 2
    %v5497 = vsel %vm479, %v5495, %v5496
    %v5498 = vrot.slane %v5468, 2
    %v5499 = vsel %vm479, %v5496, %v5498
    %v5500 = vrot.slane %v5469, 2
    %v5501 = vsel %vm479, %v5498, %v5500
    %v5502 = vrot.slane %v5470, 2
    %v5503 = vsel %vm479, %v5500, %v5502
    %v5509 = vmax.f32 %v5490, %v5497
    %v5510 = vmax.f32 %v5491, %v5499
    %v5511 = vmax.f32 %v5492, %v5501
    %v5512 = vmax.f32 %v5493, %v5503
    %v5513 = vmax.f32 %v5494, %v5502
    %v5514 = vrot.slane %v5466, 3
    %v5515 = vrot.slane %v5467, 3
    %v5516 = vsel %vm601, %v5514, %v5515
    %v5517 = vrot.slane %v5468, 3
    %v5518 = vsel %vm601, %v5515, %v5517
    %v5519 = vrot.slane %v5469, 3
    %v5520 = vsel %vm601, %v5517, %v5519
    %v5521 = vrot.slane %v5470, 3
    %v5522 = vsel %vm601, %v5519, %v5521
    %v5528 = vmax.f32 %v5509, %v5516
    %v5529 = vmax.f32 %v5510, %v5518
    %v5530 = vmax.f32 %v5511, %v5520
    %v5531 = vmax.f32 %v5512, %v5522
    %v5532 = vmax.f32 %v5513, %v5521
    %5533 = vst [vmem:[#allocation3] sm:$0xff] %v5528
    %5534 = vst [vmem:[#allocation3 + $0x8] sm:$0xff] %v5529
    %5535 = vst [vmem:[#allocation3 + $0x10] sm:$0xff] %v5530
    %5536 = vst [vmem:[#allocation3 + $0x18] sm:$0xff] %v5531
    %5537 = vst [vmem:[#allocation3 + $0x20] sm:$0x1f] %v5532
    %v5538 = vld [vmem:[#allocation3] ss:$4 sm:$0xff]
    %v5539 = vld [vmem:[%s2718] ss:$4 sm:$0x3]
    %v5541 = vrot.slane %v5538, 1
    %v5543 = vrot.slane %v5538, 2
    %v5545 = vrot.slane %v5538, 3
    %v5547 = vrot.slane %v5538, 4
    %v5549 = vrot.slane %v5538, 5
    %v5551 = vrot.slane %v5538, 6
    %v5554 = vrot.slane %v5538, 7
    %v5555 = vrot.slane %v5539, 7
    %v5556 = vsel %vm1089, %v5554, %v5555
    %v5558 = vpack.c.bf16 %v5538, %v5538
    %v5559 = vpack.c.bf16 %v5541, %v5541
    %v5560 = vpack.c.bf16 %v5543, %v5543
    %v5561 = vpack.c.bf16 %v5545, %v5545
    %v5562 = vpack.c.bf16 %v5547, %v5547
    %v5563 = vpack.c.bf16 %v5549, %v5549
    %v5564 = vpack.c.bf16 %v5551, %v5551
    %v5565 = vpack.c.bf16 %v5556, %v5556
    %v5566 = vpack.c.bf16 %v5539, %v5539
    %5567 = vmatprep.subr.bf16.mxu0 0
    %5568 = vmatpush1.bf16.msra.mxu0 %v3041
    %5569 = vmatprep.subr.bf16.mxu0 0
    %5570 = vmatpush1.bf16.msra.mxu0 %v3042
    %5571 = vmatprep.subr.bf16.mxu0 0
    %5572 = vmatpush1.bf16.msra.mxu0 %v3043
    %5573 = vmatprep.subr.bf16.mxu0 0
    %5574 = vmatpush1.bf16.msra.mxu0 %v3044
    %5575 = vmatprep.subr.bf16.mxu0 0
    %5576 = vmatpush1.bf16.msra.mxu0 %v3045
    %5577 = vmatprep.subr.bf16.mxu0 0
    %5578 = vmatpush1.bf16.msra.mxu0 %v3046
    %5579 = vmatprep.subr.bf16.mxu0 0
    %5580 = vmatpush1.bf16.msra.mxu0 %v3047
    %5581 = vmatprep.subr.bf16.mxu0 0
    %5582 = vmatpush1.bf16.msra.mxu0 %v3048
    %5583 = vmatprep.subr.bf16.mxu0 0
    %5584 = vmatpush1.bf16.msra.mxu0 %v3049
    %5585 = vmatprep.subr.bf16.mxu0 0
    %5586 = vmatpush1.bf16.msra.mxu0 %v3050
    %5587 = vmatprep.subr.bf16.mxu0 0
    %5588 = vmatpush1.bf16.msra.mxu0 %v3051
    %5589 = vmatprep.subr.bf16.mxu0 0
    %5590 = vmatpush1.bf16.msra.mxu0 %v3052
    %5591 = vmatprep.subr.bf16.mxu0 0
    %5592 = vmatpush1.bf16.msra.mxu0 %v3053
    %5593 = vmatprep.subr.bf16.mxu0 0
    %5594 = vmatpush1.bf16.msra.mxu0 %v3054
    %5595 = vmatprep.subr.bf16.mxu0 0
    %5596 = vmatpush1.bf16.msra.mxu0 %v3055
    %5597 = vmatprep.subr.bf16.mxu0 0
    %5598 = vmatpush1.bf16.msra.mxu0 %v3056
    %5599 = vmatprep.mubr.bf16.mxu0 %v5559
    %5600 = vmatmul.mubr.bf16.gmra.mrb[0].mxu0 %v5558
    %v5601 = vpop.f32.mrb[0].mxu0
    %v5602 = vadd.f32 %v2751, %v5601
    %v5603 = vpop.f32.mrb[0].mxu0
    %v5604 = vpop.f32.mrb[0].mxu0
    %v5605 = vpop.f32.mrb[0].mxu0
    %5606 = vdwg.mxu0
    %5607 = vmatprep.subr.bf16.mxu0 0
    %5608 = vmatpush1.bf16.msra.mxu0 %v3057
    %5609 = vmatprep.subr.bf16.mxu0 0
    %5610 = vmatpush1.bf16.msra.mxu0 %v3058
    %5611 = vmatprep.subr.bf16.mxu0 0
    %5612 = vmatpush1.bf16.msra.mxu0 %v3059
    %5613 = vmatprep.subr.bf16.mxu0 0
    %5614 = vmatpush1.bf16.msra.mxu0 %v3060
    %5615 = vmatprep.subr.bf16.mxu0 0
    %5616 = vmatpush1.bf16.msra.mxu0 %v3061
    %5617 = vmatprep.subr.bf16.mxu0 0
    %5618 = vmatpush1.bf16.msra.mxu0 %v3062
    %5619 = vmatprep.subr.bf16.mxu0 0
    %5620 = vmatpush1.bf16.msra.mxu0 %v3063
    %5621 = vmatprep.subr.bf16.mxu0 0
    %5622 = vmatpush1.bf16.msra.mxu0 %v3064
    %5623 = vmatprep.subr.bf16.mxu0 0
    %5624 = vmatpush1.bf16.msra.mxu0 %v3065
    %5625 = vmatprep.subr.bf16.mxu0 0
    %5626 = vmatpush1.bf16.msra.mxu0 %v3066
    %5627 = vmatprep.subr.bf16.mxu0 0
    %5628 = vmatpush1.bf16.msra.mxu0 %v3067
    %5629 = vmatprep.subr.bf16.mxu0 0
    %5630 = vmatpush1.bf16.msra.mxu0 %v3068
    %5631 = vmatprep.subr.bf16.mxu0 0
    %5632 = vmatpush1.bf16.msra.mxu0 %v3069
    %5633 = vmatprep.subr.bf16.mxu0 0
    %5634 = vmatpush1.bf16.msra.mxu0 %v3070
    %5635 = vmatprep.subr.bf16.mxu0 0
    %5636 = vmatpush1.bf16.msra.mxu0 %v3071
    %5637 = vmatprep.subr.bf16.mxu0 0
    %5638 = vmatpush1.bf16.msra.mxu0 %v3072
    %5639 = vmatprep.mubr.bf16.mxu0 %v5561
    %5640 = vmatmul.mubr.bf16.gmra.mrb[0].mxu0 %v5560
    %v5641 = vpop.f32.mrb[0].mxu0
    %v5642 = vadd.f32 %v5602, %v5641
    %v5643 = vpop.f32.mrb[0].mxu0
    %v5644 = vpop.f32.mrb[0].mxu0
    %v5645 = vpop.f32.mrb[0].mxu0
    %5646 = vdwg.mxu0
    %5647 = vmatprep.subr.bf16.mxu0 0
    %5648 = vmatpush1.bf16.msra.mxu0 %v3073
    %5649 = vmatprep.subr.bf16.mxu0 0
    %5650 = vmatpush1.bf16.msra.mxu0 %v3074
    %5651 = vmatprep.subr.bf16.mxu0 0
    %5652 = vmatpush1.bf16.msra.mxu0 %v3075
    %5653 = vmatprep.subr.bf16.mxu0 0
    %5654 = vmatpush1.bf16.msra.mxu0 %v3076
    %5655 = vmatprep.subr.bf16.mxu0 0
    %5656 = vmatpush1.bf16.msra.mxu0 %v3077
    %5657 = vmatprep.subr.bf16.mxu0 0
    %5658 = vmatpush1.bf16.msra.mxu0 %v3078
    %5659 = vmatprep.subr.bf16.mxu0 0
    %5660 = vmatpush1.bf16.msra.mxu0 %v3079
    %5661 = vmatprep.subr.bf16.mxu0 0
    %5662 = vmatpush1.bf16.msra.mxu0 %v3080
    %5663 = vmatprep.subr.bf16.mxu0 0
    %5664 = vmatpush1.bf16.msra.mxu0 %v3081
    %5665 = vmatprep.subr.bf16.mxu0 0
    %5666 = vmatpush1.bf16.msra.mxu0 %v3082
    %5667 = vmatprep.subr.bf16.mxu0 0
    %5668 = vmatpush1.bf16.msra.mxu0 %v3083
    %5669 = vmatprep.subr.bf16.mxu0 0
    %5670 = vmatpush1.bf16.msra.mxu0 %v3084
    %5671 = vmatprep.subr.bf16.mxu0 0
    %5672 = vmatpush1.bf16.msra.mxu0 %v3085
    %5673 = vmatprep.subr.bf16.mxu0 0
    %5674 = vmatpush1.bf16.msra.mxu0 %v3086
    %5675 = vmatprep.subr.bf16.mxu0 0
    %5676 = vmatpush1.bf16.msra.mxu0 %v3087
    %5677 = vmatprep.subr.bf16.mxu0 0
    %5678 = vmatpush1.bf16.msra.mxu0 %v3088
    %5679 = vmatprep.mubr.bf16.mxu0 %v5563
    %5680 = vmatmul.mubr.bf16.gmra.mrb[0].mxu0 %v5562
    %v5681 = vpop.f32.mrb[0].mxu0
    %v5682 = vadd.f32 %v5642, %v5681
    %v5683 = vpop.f32.mrb[0].mxu0
    %v5684 = vpop.f32.mrb[0].mxu0
    %v5685 = vpop.f32.mrb[0].mxu0
    %5686 = vdwg.mxu0
    %5687 = vmatprep.subr.bf16.mxu0 0
    %5688 = vmatpush1.bf16.msra.mxu0 %v3089
    %5689 = vmatprep.subr.bf16.mxu0 0
    %5690 = vmatpush1.bf16.msra.mxu0 %v3090
    %5691 = vmatprep.subr.bf16.mxu0 0
    %5692 = vmatpush1.bf16.msra.mxu0 %v3091
    %5693 = vmatprep.subr.bf16.mxu0 0
    %5694 = vmatpush1.bf16.msra.mxu0 %v3092
    %5695 = vmatprep.subr.bf16.mxu0 0
    %5696 = vmatpush1.bf16.msra.mxu0 %v3093
    %5697 = vmatprep.subr.bf16.mxu0 0
    %5698 = vmatpush1.bf16.msra.mxu0 %v3094
    %5699 = vmatprep.subr.bf16.mxu0 0
    %5700 = vmatpush1.bf16.msra.mxu0 %v3095
    %5701 = vmatprep.subr.bf16.mxu0 0
    %5702 = vmatpush1.bf16.msra.mxu0 %v3096
    %5703 = vmatprep.subr.bf16.mxu0 0
    %5704 = vmatpush1.bf16.msra.mxu0 %v3097
    %5705 = vmatprep.subr.bf16.mxu0 0
    %5706 = vmatpush1.bf16.msra.mxu0 %v3098
    %5707 = vmatprep.subr.bf16.mxu0 0
    %5708 = vmatpush1.bf16.msra.mxu0 %v3099
    %5709 = vmatprep.subr.bf16.mxu0 0
    %5710 = vmatpush1.bf16.msra.mxu0 %v3100
    %5711 = vmatprep.subr.bf16.mxu0 0
    %5712 = vmatpush1.bf16.msra.mxu0 %v3101
    %5713 = vmatprep.subr.bf16.mxu0 0
    %5714 = vmatpush1.bf16.msra.mxu0 %v3102
    %5715 = vmatprep.subr.bf16.mxu0 0
    %5716 = vmatpush1.bf16.msra.mxu0 %v3103
    %5717 = vmatprep.subr.bf16.mxu0 0
    %5718 = vmatpush1.bf16.msra.mxu0 %v3104
    %5719 = vmatprep.mubr.bf16.mxu0 %v5565
    %5720 = vmatmul.mubr.bf16.gmra.mrb[0].mxu0 %v5564
    %v5721 = vpop.f32.mrb[0].mxu0
    %v5722 = vadd.f32 %v5682, %v5721
    %v5723 = vpop.f32.mrb[0].mxu0
    %v5724 = vpop.f32.mrb[0].mxu0
    %v5725 = vpop.f32.mrb[0].mxu0
    %5726 = vdwg.mxu0
    %5727 = vmatprep.subr.bf16.mxu0 0
    %5728 = vmatpush1.bf16.msra.mxu0 %v3105
    %5729 = vmatprep.subr.bf16.mxu0 0
    %5730 = vmatpush1.bf16.msra.mxu0 %v3106
    %5731 = vmatprep.subr.bf16.mxu0 0
    %5732 = vmatpush1.bf16.msra.mxu0 %v3107
    %5733 = vmatprep.subr.bf16.mxu0 0
    %5734 = vmatpush1.bf16.msra.mxu0 %v3108
    %5735 = vmatprep.subr.bf16.mxu0 0
    %5736 = vmatpush1.bf16.msra.mxu0 %v3109
    %5737 = vmatprep.subr.bf16.mxu0 0
    %5738 = vmatpush1.bf16.msra.mxu0 %v3110
    %5739 = vmatprep.subr.bf16.mxu0 0
    %5740 = vmatpush1.bf16.msra.mxu0 %v3111
    %5741 = vmatprep.subr.bf16.mxu0 0
    %5742 = vmatpush1.bf16.msra.mxu0 %v3112
    %5743 = vmatprep.subr.bf16.mxu0 0
    %5744 = vmatpush1.bf16.msra.mxu0 0
    %5745 = vmatprep.subr.bf16.mxu0 0
    %5746 = vmatpush1.bf16.msra.mxu0 0
    %5747 = vmatprep.subr.bf16.mxu0 0
    %5748 = vmatpush1.bf16.msra.mxu0 0
    %5749 = vmatprep.subr.bf16.mxu0 0
    %5750 = vmatpush1.bf16.msra.mxu0 0
    %5751 = vmatprep.subr.bf16.mxu0 0
    %5752 = vmatpush1.bf16.msra.mxu0 0
    %5753 = vmatprep.subr.bf16.mxu0 0
    %5754 = vmatpush1.bf16.msra.mxu0 0
    %5755 = vmatprep.subr.bf16.mxu0 0
    %5756 = vmatpush1.bf16.msra.mxu0 0
    %5757 = vmatprep.subr.bf16.mxu0 0
    %5758 = vmatpush1.bf16.msra.mxu0 0
    %5759 = vmatprep.mubr.bf16.mxu0 0
    %5760 = vmatmul.mubr.bf16.gmra.mrb[0].mxu0 %v5566
    %v5761 = vpop.f32.mrb[0].mxu0
    %v5762 = vadd.f32 %v5722, %v5761
    %v5763 = vpop.f32.mrb[0].mxu0
    %v5764 = vpop.f32.mrb[0].mxu0
    %v5765 = vpop.f32.mrb[0].mxu0
    %5766 = vdwg.mxu0
    %v5767 = vmax.f32 %v5762, 0.0
    %v5768 = vsel %vm967, %v5767, -inf
    %v5769 = vrot.slane %v5768, 4
    %v5770 = vmax.f32 %v5768, %v5769
    %v5771 = vrot.slane %v5770, 2
    %v5772 = vmax.f32 %v5770, %v5771
    %v5773 = vrot.slane %v5772, 1
    %v5774 = vmax.f32 %v5772, %v5773
    %5775 = vst [vmem:[#allocation10 + $0x1] sm:$0x1] %v5774
    %v5776 = vld [vmem:[#allocation10] sm:$0x3]
    %v5777 = vld [vmem:[%s7] sm:$0xff]
    %v5778 = vld [vmem:[%s7 + $0x8] sm:$0xff]
    %v5779 = vld [vmem:[%s7 + $0x10] sm:$0xff]
    %v5780 = vld [vmem:[%s7 + $0x18] sm:$0xff]
    %v5781 = vld [vmem:[%s7 + $0x20] sm:$0xff]
    %v5782 = vld [vmem:[%s7 + $0x28] sm:$0xff]
    %v5783 = vld [vmem:[%s7 + $0x30] sm:$0xff]
    %v5784 = vld [vmem:[%s7 + $0x38] sm:$0xff]
    %v5785 = vld [vmem:[%s7 + $0x40] sm:$0xff]
    %v5786 = vld [vmem:[%s7 + $0x48] sm:$0xff]
    %v5787 = vld [vmem:[%s7 + $0x50] sm:$0xff]
    %v5788 = vld [vmem:[%s7 + $0x58] sm:$0xff]
    %v5789 = vld [vmem:[%s7 + $0x60] sm:$0xff]
    %v5790 = vld [vmem:[%s7 + $0x68] sm:$0xff]
    %v5791 = vld [vmem:[%s7 + $0x70] sm:$0xff]
    %v5792 = vld [vmem:[%s7 + $0x78] sm:$0xff]
    %v5793 = vld [vmem:[%s8] sm:$0x1]
    %v5795 = vlaneseq
    %v5796 = vshrl.u32 %v5795, 7
    %v5797 = vsub.s32 0, %v5796
    %v5798 = vrot.slane %v5793, %v5797
    %5800 = vmatprep.subr.mxu0 0.0
    %5801 = vmatpush1.msra.mxu0 %v5777
    %5802 = vmatprep.subr.mxu0 0.0
    %5803 = vmatpush1.msra.mxu0 %v5778
    %5804 = vmatprep.subr.mxu0 0.0
    %5805 = vmatpush1.msra.mxu0 %v5779
    %5806 = vmatprep.subr.mxu0 0.0
    %5807 = vmatpush1.msra.mxu0 %v5780
    %5808 = vmatprep.subr.mxu0 0.0
    %5809 = vmatpush1.msra.mxu0 %v5781
    %5810 = vmatprep.subr.mxu0 0.0
    %5811 = vmatpush1.msra.mxu0 %v5782
    %5812 = vmatprep.subr.mxu0 0.0
    %5813 = vmatpush1.msra.mxu0 %v5783
    %5814 = vmatprep.subr.mxu0 0.0
    %5815 = vmatpush1.msra.mxu0 %v5784
    %5816 = vmatprep.subr.mxu0 0.0
    %5817 = vmatpush1.msra.mxu0 %v5785
    %5818 = vmatprep.subr.mxu0 0.0
    %5819 = vmatpush1.msra.mxu0 %v5786
    %5820 = vmatprep.subr.mxu0 0.0
    %5821 = vmatpush1.msra.mxu0 %v5787
    %5822 = vmatprep.subr.mxu0 0.0
    %5823 = vmatpush1.msra.mxu0 %v5788
    %5824 = vmatprep.subr.mxu0 0.0
    %5825 = vmatpush1.msra.mxu0 %v5789
    %5826 = vmatprep.subr.mxu0 0.0
    %5827 = vmatpush1.msra.mxu0 %v5790
    %5828 = vmatprep.subr.mxu0 0.0
    %5829 = vmatpush1.msra.mxu0 %v5791
    %5830 = vmatprep.subr.mxu0 0.0
    %5831 = vmatpush1.msra.mxu0 %v5792
    %5832 = vmatprep.subr.mxu0 0.0
    %5833 = vmatpush1.msra.mxu0 0.0
    %5834 = vmatprep.subr.mxu0 0.0
    %5835 = vmatpush1.msra.mxu0 0.0
    %5836 = vmatprep.subr.mxu0 0.0
    %5837 = vmatpush1.msra.mxu0 0.0
    %5838 = vmatprep.subr.mxu0 0.0
    %5839 = vmatpush1.msra.mxu0 0.0
    %5840 = vmatprep.subr.mxu0 0.0
    %5841 = vmatpush1.msra.mxu0 0.0
    %5842 = vmatprep.subr.mxu0 0.0
    %5843 = vmatpush1.msra.mxu0 0.0
    %5844 = vmatprep.subr.mxu0 0.0
    %5845 = vmatpush1.msra.mxu0 0.0
    %5846 = vmatprep.subr.mxu0 0.0
    %5847 = vmatpush1.msra.mxu0 0.0
    %5848 = vmatprep.subr.mxu0 0.0
    %5849 = vmatpush1.msra.mxu0 0.0
    %5850 = vmatprep.subr.mxu0 0.0
    %5851 = vmatpush1.msra.mxu0 0.0
    %5852 = vmatprep.subr.mxu0 0.0
    %5853 = vmatpush1.msra.mxu0 0.0
    %5854 = vmatprep.subr.mxu0 0.0
    %5855 = vmatpush1.msra.mxu0 0.0
    %5856 = vmatprep.subr.mxu0 0.0
    %5857 = vmatpush1.msra.mxu0 0.0
    %5858 = vmatprep.subr.mxu0 0.0
    %5859 = vmatpush1.msra.mxu0 0.0
    %5860 = vmatprep.subr.mxu0 0.0
    %5861 = vmatpush1.msra.mxu0 0.0
    %5862 = vmatprep.subr.mxu0 0.0
    %5863 = vmatpush1.msra.mxu0 0.0
    %5864 = vmatprep.mubr.f32.mxu0 0.0
    %5865 = vmatmul.mubr.f32.gmra.mrb[0].mxu0 %v5776
    %v5866 = vpop.f32.mrb[0].mxu0
    %v5867 = vadd.f32 %v5798, %v5866
    %v5868 = vpop.f32.mrb[0].mxu0
    %5869 = vdwg.mxu0
    %v5870 = vmax.f32 %v5867, 0.0
    %v5871 = vld [vmem:[#allocation9] sm:$0xff]
    %v5872 = vld [vmem:[#allocation9 + $0x8] sm:$0xff]
    %v5873 = vld [vmem:[#allocation9 + $0x10] sm:$0xff]
    %v5874 = vld [vmem:[#allocation9 + $0x18] sm:$0xff]
    %v5875 = vld [vmem:[#allocation9 + $0x20] sm:$0xff]
    %v5876 = vld [vmem:[#allocation9 + $0x28] sm:$0xff]
    %v5877 = vld [vmem:[#allocation9 + $0x30] sm:$0xff]
    %v5878 = vld [vmem:[#allocation9 + $0x38] sm:$0xff]
    %v5879 = vld [vmem:[#allocation9 + $0x40] sm:$0xff]
    %v5880 = vld [vmem:[#allocation9 + $0x48] sm:$0xff]
    %v5881 = vld [vmem:[#allocation9 + $0x50] sm:$0xff]
    %v5882 = vld [vmem:[#allocation9 + $0x58] sm:$0xff]
    %v5883 = vld [vmem:[#allocation9 + $0x60] sm:$0xff]
    %v5884 = vld [vmem:[#allocation9 + $0x68] sm:$0xff]
    %v5885 = vld [vmem:[#allocation9 + $0x70] sm:$0xff]
    %v5886 = vld [vmem:[#allocation9 + $0x78] sm:$0xff]
    %v5887 = vld [vmem:[%s10] sm:$0x1]
    %v5889 = vlaneseq
    %v5890 = vshrl.u32 %v5889, 7
    %v5891 = vsub.s32 0, %v5890
    %v5892 = vrot.slane %v5887, %v5891
    %5894 = vmatprep.subr.mxu0 0.0
    %5895 = vmatpush1.msra.mxu0 %v5871
    %5896 = vmatprep.subr.mxu0 0.0
    %5897 = vmatpush1.msra.mxu0 %v5872
    %5898 = vmatprep.subr.mxu0 0.0
    %5899 = vmatpush1.msra.mxu0 %v5873
    %5900 = vmatprep.subr.mxu0 0.0
    %5901 = vmatpush1.msra.mxu0 %v5874
    %5902 = vmatprep.subr.mxu0 0.0
    %5903 = vmatpush1.msra.mxu0 %v5875
    %5904 = vmatprep.subr.mxu0 0.0
    %5905 = vmatpush1.msra.mxu0 %v5876
    %5906 = vmatprep.subr.mxu0 0.0
    %5907 = vmatpush1.msra.mxu0 %v5877
    %5908 = vmatprep.subr.mxu0 0.0
    %5909 = vmatpush1.msra.mxu0 %v5878
    %5910 = vmatprep.subr.mxu0 0.0
    %5911 = vmatpush1.msra.mxu0 %v5879
    %5912 = vmatprep.subr.mxu0 0.0
    %5913 = vmatpush1.msra.mxu0 %v5880
    %5914 = vmatprep.subr.mxu0 0.0
    %5915 = vmatpush1.msra.mxu0 %v5881
    %5916 = vmatprep.subr.mxu0 0.0
    %5917 = vmatpush1.msra.mxu0 %v5882
    %5918 = vmatprep.subr.mxu0 0.0
    %5919 = vmatpush1.msra.mxu0 %v5883
    %5920 = vmatprep.subr.mxu0 0.0
    %5921 = vmatpush1.msra.mxu0 %v5884
    %5922 = vmatprep.subr.mxu0 0.0
    %5923 = vmatpush1.msra.mxu0 %v5885
    %5924 = vmatprep.subr.mxu0 0.0
    %5925 = vmatpush1.msra.mxu0 %v5886
    %5926 = vmatprep.subr.mxu0 0.0
    %5927 = vmatpush1.msra.mxu0 0.0
    %5928 = vmatprep.subr.mxu0 0.0
    %5929 = vmatpush1.msra.mxu0 0.0
    %5930 = vmatprep.subr.mxu0 0.0
    %5931 = vmatpush1.msra.mxu0 0.0
    %5932 = vmatprep.subr.mxu0 0.0
    %5933 = vmatpush1.msra.mxu0 0.0
    %5934 = vmatprep.subr.mxu0 0.0
    %5935 = vmatpush1.msra.mxu0 0.0
    %5936 = vmatprep.subr.mxu0 0.0
    %5937 = vmatpush1.msra.mxu0 0.0
    %5938 = vmatprep.subr.mxu0 0.0
    %5939 = vmatpush1.msra.mxu0 0.0
    %5940 = vmatprep.subr.mxu0 0.0
    %5941 = vmatpush1.msra.mxu0 0.0
    %5942 = vmatprep.subr.mxu0 0.0
    %5943 = vmatpush1.msra.mxu0 0.0
    %5944 = vmatprep.subr.mxu0 0.0
    %5945 = vmatpush1.msra.mxu0 0.0
    %5946 = vmatprep.subr.mxu0 0.0
    %5947 = vmatpush1.msra.mxu0 0.0
    %5948 = vmatprep.subr.mxu0 0.0
    %5949 = vmatpush1.msra.mxu0 0.0
    %5950 = vmatprep.subr.mxu0 0.0
    %5951 = vmatpush1.msra.mxu0 0.0
    %5952 = vmatprep.subr.mxu0 0.0
    %5953 = vmatpush1.msra.mxu0 0.0
    %5954 = vmatprep.subr.mxu0 0.0
    %5955 = vmatpush1.msra.mxu0 0.0
    %5956 = vmatprep.subr.mxu0 0.0
    %5957 = vmatpush1.msra.mxu0 0.0
    %5958 = vmatprep.mubr.f32.mxu0 0.0
    %5959 = vmatmul.mubr.f32.gmra.mrb[0].mxu0 %v5870
    %v5960 = vpop.f32.mrb[0].mxu0
    %v5961 = vadd.f32 %v5892, %v5960
    %v5962 = vpop.f32.mrb[0].mxu0
    %5963 = vdwg.mxu0
    %5964 = vst [vmem:[#allocation11] sm:$0x3] %v5961
    // Predicated region
    $region58: #{tpu_custom_call.1} parent=1 // pred_check
      _
    $region59: #{tpu_custom_call.1} parent=1 // pred_check_branch
      %5966 = sbr.rel (0) target = $region61
    $region60: #{tpu_custom_call.1} parent=1 // pred_region
      %s5968 = ssub.s32 32, 32
      %5969 = vsyncadd [#allocation6], %s5968
      %s5971 = sshll.u32 [#allocation10], 4
      %s5972 = int_to_ptr.vmem [resolvable:$true] %s5971
      %5974 = dma.vmem_to_hbm [thread:$0]  %s5972, 32, %s11, [#allocation6]
    $region61: #{tpu_custom_call.1} parent=1 // pred_fallthru
      _
    // Predicated region
    $region62: #{tpu_custom_call.1} parent=1 // pred_check
      _
    $region63: #{tpu_custom_call.1} parent=1 // pred_check_branch
      %5976 = sbr.rel (0) target = $region65
    $region64: #{tpu_custom_call.1} parent=1 // pred_region
      %s5978 = ssub.s32 32, 32
      %5979 = vsyncadd [#allocation12], %s5978
      %s5981 = sshll.u32 [#allocation11], 4
      %s5982 = int_to_ptr.vmem [resolvable:$true] %s5981
      %5984 = dma.vmem_to_hbm [thread:$0]  %s5982, 32, %s12, [#allocation12]
    $region65: #{tpu_custom_call.1} parent=1 // pred_fallthru
      _
    // Predicated region
    $region66: #{tpu_custom_call.1} parent=1 // pred_check
      _
    $region67: #{tpu_custom_call.1} parent=1 // pred_check_branch
      %5986 = sbr.rel (0) target = $region69
    $region68: #{tpu_custom_call.1} parent=1 // pred_region
      %5987 = dma.done [#allocation6], 32
    $region69: #{tpu_custom_call.1} parent=1 // pred_fallthru
      _
    // Predicated region
    $region70: #{tpu_custom_call.1} parent=1 // pred_check
      _
    $region71: #{tpu_custom_call.1} parent=1 // pred_check_branch
      %5989 = sbr.rel (0) target = $region73
    $region72: #{tpu_custom_call.1} parent=1 // pred_region
      %5990 = dma.done [#allocation12], 32
    $region73: #{tpu_custom_call.1} parent=1 // pred_fallthru
      _
    %5991 = vsyncpa [#allocation5], 1
    %5992 = vsyncpa [#allocation8], 1
    %5993 = vsyncpa [#allocation6], 1
    %5994 = vsyncpa [#allocation12], 1

</llo_original>
